<compile_context>
chip_gen: v5e
topology: v5e:2x2
jax: 0.10.0
libtpu: 0.0.40
codegen_flags: <defaults>
</compile_context>

<pallas_src>
import functools

import jax
import jax.numpy as jnp
from jax.experimental import pallas as pl
from jax.experimental.pallas import tpu as pltpu


# ---------------------------------------------------------------------------
# Fused encoder kernel (one batch element per grid step)
# ---------------------------------------------------------------------------
def _encoder_kernel(x_ref, w1_ref, w2_ref, w3_ref, b1_ref, b2_ref, b3_ref,
                    m_ref, h2_ref, hd_ref, h1_buf, h2_buf,
                    *, taps, guard, length, cout):
    L, G = length, guard
    mask = m_ref[...] != 0.0                 # (1, L) interior-of-padded-grid

    def conv(w_ref, src, n_out):
        # src: (InCh, L + 2G) guarded, flattened, spatially padded activation.
        acc = jnp.zeros((n_out, L), jnp.float32)
        for t, d in enumerate(taps):         # static unrolled kh*kw taps
            acc = acc + jnp.dot(w_ref[t], src[:, G + d:G + d + L],
                                preferred_element_type=jnp.float32)
        return acc

    def glu(acc, b_ref):
        a = acc + b_ref[...]                 # (2*Cout, L) + (2*Cout, 1)
        # value * sigmoid(gate); zero the padded border (also kills any
        # garbage picked up from the scratch guard zones).
        return jnp.where(mask, a[:cout] * jax.nn.sigmoid(a[cout:]), 0.0)

    x = x_ref[0]                                           # (Cin, L + 2G)

    # glu2d_1
    h1 = glu(conv(w1_ref, x, 2 * cout), b1_ref)            # (Cout, L)
    h1_buf[:, G:G + L] = h1

    # glu2d_2
    h2 = glu(conv(w2_ref, h1_buf[...], 2 * cout), b2_ref)  # (Cout, L)
    h2_ref[0] = h2.astype(h2_ref.dtype)
    h2_buf[:, G:G + L] = h2

    # conv2d_3 (stride-1 on the full grid; wrapper subsamples for stride>1)
    a3 = conv(w3_ref, h2_buf[...], cout) + b3_ref[...]
    hd_ref[0] = jnp.where(mask, a3, 0.0).astype(hd_ref.dtype)


# ---------------------------------------------------------------------------
# GCUNet3Encoder forward
# ---------------------------------------------------------------------------
@functools.partial(jax.jit, static_argnames=("stride", "pad"))
def gcunet3_encoder(x, params, *, stride, pad):
    n, cin, h, w = x.shape
    c2, _, kh, kw = params["w1"].shape
    cout = c2 // 2
    if kh != kw:
        raise NotImplementedError("square kernels only")
    k = kh
    if k != 2 * pad + 1:
        raise NotImplementedError("fused kernel assumes 'same' padding")

    hp, wp = h + 2 * pad, w + 2 * pad
    L = hp * wp                      # flattened padded-plane length (lanes)
    G = pad * wp + pad               # max |shift| of any conv tap
    Lg = L + 2 * G                   # guarded length

    # Flattened, spatially padded, guard-padded input: (N, Cin, Lg).
    xp = jnp.pad(x, ((0, 0), (0, 0), (pad, pad), (pad, pad))).reshape(n, cin, L)
    xg = jnp.pad(xp, ((0, 0), (0, 0), (G, G)))

    # Per-tap weights, tap index t = i*k + j  ->  (kh*kw, OutCh, InCh).
    taps = tuple((i - pad) * wp + (j - pad) for i in range(k) for j in range(k))
    w1r = params["w1"].transpose(2, 3, 0, 1).reshape(k * k, c2, cin)
    w2r = params["w2"].transpose(2, 3, 0, 1).reshape(k * k, c2, cout)
    w3r = params["w3"].transpose(2, 3, 0, 1).reshape(k * k, cout, cout)
    b1 = params["b1"].reshape(c2, 1)
    b2 = params["b2"].reshape(c2, 1)
    b3 = params["b3"].reshape(cout, 1)

    # Interior mask over the padded (hp, wp) grid, flattened.
    rr = jnp.arange(hp).reshape(hp, 1)
    cc = jnp.arange(wp).reshape(1, wp)
    mask = (((rr >= pad) & (rr < pad + h) & (cc >= pad) & (cc < pad + w))
            .astype(x.dtype).reshape(1, L))

    kernel = functools.partial(_encoder_kernel, taps=taps, guard=G,
                               length=L, cout=cout)

    h2p, hdp = pl.pallas_call(
        kernel,
        out_shape=(jax.ShapeDtypeStruct((n, cout, L), x.dtype),
                   jax.ShapeDtypeStruct((n, cout, L), x.dtype)),
        grid_spec=pltpu.PrefetchScalarGridSpec(
            num_scalar_prefetch=0,
            grid=(n,),
            in_specs=[
                pl.BlockSpec((1, cin, Lg), lambda b: (b, 0, 0)),
                pl.BlockSpec((k * k, c2, cin), lambda b: (0, 0, 0)),
                pl.BlockSpec((k * k, c2, cout), lambda b: (0, 0, 0)),
                pl.BlockSpec((k * k, cout, cout), lambda b: (0, 0, 0)),
                pl.BlockSpec((c2, 1), lambda b: (0, 0)),
                pl.BlockSpec((c2, 1), lambda b: (0, 0)),
                pl.BlockSpec((cout, 1), lambda b: (0, 0)),
                pl.BlockSpec((1, L), lambda b: (0, 0)),
            ],
            out_specs=[
                pl.BlockSpec((1, cout, L), lambda b: (b, 0, 0)),
                pl.BlockSpec((1, cout, L), lambda b: (b, 0, 0)),
            ],
            scratch_shapes=[pltpu.VMEM((cout, Lg), jnp.float32),
                            pltpu.VMEM((cout, Lg), jnp.float32)],
        ),
        compiler_params=pltpu.CompilerParams(
            dimension_semantics=("parallel",)),
    )(xg, w1r, w2r, w3r, b1, b2, b3, mask)

    # h2: interior of the padded grid (layout plumbing only, tiny slices).
    h2 = h2p.reshape(n, cout, hp, wp)[:, :, pad:pad + h, pad:pad + w]

    # hd: strided subsample of the stride-1 conv2d_3 result.
    ho3 = (h + 2 * pad - k) // stride + 1
    wo3 = (w + 2 * pad - k) // stride + 1
    hdf = hdp.reshape(n, cout, hp, wp)
    hd = hdf[:, :,
             pad:pad + stride * (ho3 - 1) + 1:stride,
             pad:pad + stride * (wo3 - 1) + 1:stride]
    return hd, h2


# ---------------------------------------------------------------------------
# Pure-JAX reference (lax conv) for correctness check
# ---------------------------------------------------------------------------
def _ref_conv(x, w, b, stride, pad):
    y = jax.lax.conv_general_dilated(
        x, w, (stride, stride), [(pad, pad), (pad, pad)],
        dimension_numbers=("NCHW", "OIHW", "NCHW"))
    return y + b.reshape(1, -1, 1, 1)


def _ref_glu_conv(x, w, b, stride, pad):
    y = _ref_conv(x, w, b, stride, pad)
    c = y.shape[1] // 2
    return y[:, :c] * jax.nn.sigmoid(y[:, c:])


def _ref_encoder(x, p, stride, pad):
    h1 = _ref_glu_conv(x, p["w1"], p["b1"], 1, pad)
    h2 = _ref_glu_conv(h1, p["w2"], p["b2"], 1, pad)
    hd = _ref_conv(h2, p["w3"], p["b3"], stride, pad)
    return hd, h2


# ---------------------------------------------------------------------------
if __name__ == "__main__":
    # Small shapes consistent with the module.
    N, Cin, Cout = 2, 4, 8
    H = W = 16
    K = 3
    PAD = 1
    STRIDE = 2  # encoder downsampling stride on conv2d_3

    key = jax.random.PRNGKey(0)
    ks = jax.random.split(key, 7)
    params = {
        # Glu2d convs output 2*Cout channels (value | gate).
        "w1": 0.1 * jax.random.normal(ks[0], (2 * Cout, Cin, K, K), jnp.float32),
        "b1": 0.1 * jax.random.normal(ks[1], (2 * Cout,), jnp.float32),
        "w2": 0.1 * jax.random.normal(ks[2], (2 * Cout, Cout, K, K), jnp.float32),
        "b2": 0.1 * jax.random.normal(ks[3], (2 * Cout,), jnp.float32),
        "w3": 0.1 * jax.random.normal(ks[4], (Cout, Cout, K, K), jnp.float32),
        "b3": 0.1 * jax.random.normal(ks[5], (Cout,), jnp.float32),
    }
    x = jax.random.normal(ks[6], (N, Cin, H, W), jnp.float32)

    hd, h2 = gcunet3_encoder(x, params, stride=STRIDE, pad=PAD)
    jax.block_until_ready((hd, h2))

    hd_ref, h2_ref = _ref_encoder(x, params, STRIDE, PAD)
    assert hd.shape == (N, Cout, H // STRIDE, W // STRIDE), hd.shape
    assert h2.shape == (N, Cout, H, W), h2.shape
    assert jnp.allclose(hd, hd_ref, rtol=1e-4, atol=1e-5)
    assert jnp.allclose(h2, h2_ref, rtol=1e-4, atol=1e-5)

    print("KERNEL_OK")
</pallas_src>

<mosaic_0001>
module attributes {stable_mosaic.version = 11 : i64} {
  func.func @_encoder_kernel(%arg0: i32, %arg1: memref<1x4x362xf32, #tpu.memory_space<vmem>>, %arg2: memref<9x16x4xf32, #tpu.memory_space<vmem>>, %arg3: memref<9x16x8xf32, #tpu.memory_space<vmem>>, %arg4: memref<9x8x8xf32, #tpu.memory_space<vmem>>, %arg5: memref<16x1xf32, #tpu.memory_space<vmem>>, %arg6: memref<16x1xf32, #tpu.memory_space<vmem>>, %arg7: memref<8x1xf32, #tpu.memory_space<vmem>>, %arg8: memref<1x324xf32, #tpu.memory_space<vmem>>, %arg9: memref<1x8x324xf32, #tpu.memory_space<vmem>>, %arg10: memref<1x8x324xf32, #tpu.memory_space<vmem>>, %arg11: memref<8x362xf32, #tpu.memory_space<vmem>>, %arg12: memref<8x362xf32, #tpu.memory_space<vmem>>) attributes {dimension_semantics = [#tpu.dimension_semantics<parallel>], iteration_bounds = array<i64: 2>, scalar_prefetch = 0 : i64, scratch_operands = 2 : i64, tpu.core_type = #tpu.core_type<tc>, window_params = [{transform_indices = @transform_0, window_bounds = array<i64: 1, 4, 362>}, {pipeline_mode = #tpu.pipeline_mode<synchronous>, transform_indices = @transform_1, window_bounds = array<i64: 9, 16, 4>}, {pipeline_mode = #tpu.pipeline_mode<synchronous>, transform_indices = @transform_2, window_bounds = array<i64: 9, 16, 8>}, {pipeline_mode = #tpu.pipeline_mode<synchronous>, transform_indices = @transform_3, window_bounds = array<i64: 9, 8, 8>}, {pipeline_mode = #tpu.pipeline_mode<synchronous>, transform_indices = @transform_4, window_bounds = array<i64: 16, 1>}, {pipeline_mode = #tpu.pipeline_mode<synchronous>, transform_indices = @transform_5, window_bounds = array<i64: 16, 1>}, {pipeline_mode = #tpu.pipeline_mode<synchronous>, transform_indices = @transform_6, window_bounds = array<i64: 8, 1>}, {pipeline_mode = #tpu.pipeline_mode<synchronous>, transform_indices = @transform_7, window_bounds = array<i64: 1, 324>}, {transform_indices = @transform_8, window_bounds = array<i64: 1, 8, 324>}, {transform_indices = @transform_9, window_bounds = array<i64: 1, 8, 324>}]} {
    %c0 = arith.constant 0 : index
    %c0_0 = arith.constant 0 : index
    %0 = vector.load %arg8[%c0, %c0_0] : memref<1x324xf32, #tpu.memory_space<vmem>>, vector<1x324xf32>
    %cst = arith.constant 0.000000e+00 : f32
    %1 = vector.broadcast %cst : f32 to vector<1x324xf32>
    %2 = arith.cmpf one, %0, %1 : vector<1x324xf32>
    %c0_1 = arith.constant 0 : index
    %c0_2 = arith.constant 0 : index
    %c0_3 = arith.constant 0 : index
    %3 = vector.load %arg1[%c0_1, %c0_2, %c0_3] : memref<1x4x362xf32, #tpu.memory_space<vmem>>, vector<1x4x362xf32>
    %4 = vector.shape_cast %3 : vector<1x4x362xf32> to vector<4x362xf32>
    %cst_4 = arith.constant 0.000000e+00 : f32
    %5 = vector.broadcast %cst_4 : f32 to vector<16x324xf32>
    %c0_5 = arith.constant 0 : index
    %c0_6 = arith.constant 0 : index
    %c0_7 = arith.constant 0 : index
    %6 = vector.load %arg2[%c0_5, %c0_6, %c0_7] : memref<9x16x4xf32, #tpu.memory_space<vmem>>, vector<1x16x4xf32>
    %7 = vector.shape_cast %6 : vector<1x16x4xf32> to vector<16x4xf32>
    %8 = vector.extract_strided_slice %4 {offsets = [0, 0], sizes = [4, 324], strides = [1, 1]} : vector<4x362xf32> to vector<4x324xf32>
    %cst_8 = arith.constant dense<0.000000e+00> : vector<16x324xf32>
    %9 = tpu.matmul %7, %8, %cst_8 {dimension_numbers = #tpu.dot_dimension_numbers<[1], [0], [0], [1], [0, 0, 1, 1], [], []>} : vector<16x4xf32>, vector<4x324xf32>, vector<16x324xf32> -> vector<16x324xf32>
    %10 = arith.addf %5, %9 : vector<16x324xf32>
    %c1 = arith.constant 1 : index
    %c0_9 = arith.constant 0 : index
    %c0_10 = arith.constant 0 : index
    %11 = vector.load %arg2[%c1, %c0_9, %c0_10] : memref<9x16x4xf32, #tpu.memory_space<vmem>>, vector<1x16x4xf32>
    %12 = vector.shape_cast %11 : vector<1x16x4xf32> to vector<16x4xf32>
    %13 = vector.extract_strided_slice %4 {offsets = [0, 1], sizes = [4, 324], strides = [1, 1]} : vector<4x362xf32> to vector<4x324xf32>
    %cst_11 = arith.constant dense<0.000000e+00> : vector<16x324xf32>
    %14 = tpu.matmul %12, %13, %cst_11 {dimension_numbers = #tpu.dot_dimension_numbers<[1], [0], [0], [1], [0, 0, 1, 1], [], []>} : vector<16x4xf32>, vector<4x324xf32>, vector<16x324xf32> -> vector<16x324xf32>
    %15 = arith.addf %10, %14 : vector<16x324xf32>
    %c2 = arith.constant 2 : index
    %c0_12 = arith.constant 0 : index
    %c0_13 = arith.constant 0 : index
    %16 = vector.load %arg2[%c2, %c0_12, %c0_13] : memref<9x16x4xf32, #tpu.memory_space<vmem>>, vector<1x16x4xf32>
    %17 = vector.shape_cast %16 : vector<1x16x4xf32> to vector<16x4xf32>
    %18 = vector.extract_strided_slice %4 {offsets = [0, 2], sizes = [4, 324], strides = [1, 1]} : vector<4x362xf32> to vector<4x324xf32>
    %cst_14 = arith.constant dense<0.000000e+00> : vector<16x324xf32>
    %19 = tpu.matmul %17, %18, %cst_14 {dimension_numbers = #tpu.dot_dimension_numbers<[1], [0], [0], [1], [0, 0, 1, 1], [], []>} : vector<16x4xf32>, vector<4x324xf32>, vector<16x324xf32> -> vector<16x324xf32>
    %20 = arith.addf %15, %19 : vector<16x324xf32>
    %c3 = arith.constant 3 : index
    %c0_15 = arith.constant 0 : index
    %c0_16 = arith.constant 0 : index
    %21 = vector.load %arg2[%c3, %c0_15, %c0_16] : memref<9x16x4xf32, #tpu.memory_space<vmem>>, vector<1x16x4xf32>
    %22 = vector.shape_cast %21 : vector<1x16x4xf32> to vector<16x4xf32>
    %23 = vector.extract_strided_slice %4 {offsets = [0, 18], sizes = [4, 324], strides = [1, 1]} : vector<4x362xf32> to vector<4x324xf32>
    %cst_17 = arith.constant dense<0.000000e+00> : vector<16x324xf32>
    %24 = tpu.matmul %22, %23, %cst_17 {dimension_numbers = #tpu.dot_dimension_numbers<[1], [0], [0], [1], [0, 0, 1, 1], [], []>} : vector<16x4xf32>, vector<4x324xf32>, vector<16x324xf32> -> vector<16x324xf32>
    %25 = arith.addf %20, %24 : vector<16x324xf32>
    %c4 = arith.constant 4 : index
    %c0_18 = arith.constant 0 : index
    %c0_19 = arith.constant 0 : index
    %26 = vector.load %arg2[%c4, %c0_18, %c0_19] : memref<9x16x4xf32, #tpu.memory_space<vmem>>, vector<1x16x4xf32>
    %27 = vector.shape_cast %26 : vector<1x16x4xf32> to vector<16x4xf32>
    %28 = vector.extract_strided_slice %4 {offsets = [0, 19], sizes = [4, 324], strides = [1, 1]} : vector<4x362xf32> to vector<4x324xf32>
    %cst_20 = arith.constant dense<0.000000e+00> : vector<16x324xf32>
    %29 = tpu.matmul %27, %28, %cst_20 {dimension_numbers = #tpu.dot_dimension_numbers<[1], [0], [0], [1], [0, 0, 1, 1], [], []>} : vector<16x4xf32>, vector<4x324xf32>, vector<16x324xf32> -> vector<16x324xf32>
    %30 = arith.addf %25, %29 : vector<16x324xf32>
    %c5 = arith.constant 5 : index
    %c0_21 = arith.constant 0 : index
    %c0_22 = arith.constant 0 : index
    %31 = vector.load %arg2[%c5, %c0_21, %c0_22] : memref<9x16x4xf32, #tpu.memory_space<vmem>>, vector<1x16x4xf32>
    %32 = vector.shape_cast %31 : vector<1x16x4xf32> to vector<16x4xf32>
    %33 = vector.extract_strided_slice %4 {offsets = [0, 20], sizes = [4, 324], strides = [1, 1]} : vector<4x362xf32> to vector<4x324xf32>
    %cst_23 = arith.constant dense<0.000000e+00> : vector<16x324xf32>
    %34 = tpu.matmul %32, %33, %cst_23 {dimension_numbers = #tpu.dot_dimension_numbers<[1], [0], [0], [1], [0, 0, 1, 1], [], []>} : vector<16x4xf32>, vector<4x324xf32>, vector<16x324xf32> -> vector<16x324xf32>
    %35 = arith.addf %30, %34 : vector<16x324xf32>
    %c6 = arith.constant 6 : index
    %c0_24 = arith.constant 0 : index
    %c0_25 = arith.constant 0 : index
    %36 = vector.load %arg2[%c6, %c0_24, %c0_25] : memref<9x16x4xf32, #tpu.memory_space<vmem>>, vector<1x16x4xf32>
    %37 = vector.shape_cast %36 : vector<1x16x4xf32> to vector<16x4xf32>
    %38 = vector.extract_strided_slice %4 {offsets = [0, 36], sizes = [4, 324], strides = [1, 1]} : vector<4x362xf32> to vector<4x324xf32>
    %cst_26 = arith.constant dense<0.000000e+00> : vector<16x324xf32>
    %39 = tpu.matmul %37, %38, %cst_26 {dimension_numbers = #tpu.dot_dimension_numbers<[1], [0], [0], [1], [0, 0, 1, 1], [], []>} : vector<16x4xf32>, vector<4x324xf32>, vector<16x324xf32> -> vector<16x324xf32>
    %40 = arith.addf %35, %39 : vector<16x324xf32>
    %c7 = arith.constant 7 : index
    %c0_27 = arith.constant 0 : index
    %c0_28 = arith.constant 0 : index
    %41 = vector.load %arg2[%c7, %c0_27, %c0_28] : memref<9x16x4xf32, #tpu.memory_space<vmem>>, vector<1x16x4xf32>
    %42 = vector.shape_cast %41 : vector<1x16x4xf32> to vector<16x4xf32>
    %43 = vector.extract_strided_slice %4 {offsets = [0, 37], sizes = [4, 324], strides = [1, 1]} : vector<4x362xf32> to vector<4x324xf32>
    %cst_29 = arith.constant dense<0.000000e+00> : vector<16x324xf32>
    %44 = tpu.matmul %42, %43, %cst_29 {dimension_numbers = #tpu.dot_dimension_numbers<[1], [0], [0], [1], [0, 0, 1, 1], [], []>} : vector<16x4xf32>, vector<4x324xf32>, vector<16x324xf32> -> vector<16x324xf32>
    %45 = arith.addf %40, %44 : vector<16x324xf32>
    %c8 = arith.constant 8 : index
    %c0_30 = arith.constant 0 : index
    %c0_31 = arith.constant 0 : index
    %46 = vector.load %arg2[%c8, %c0_30, %c0_31] : memref<9x16x4xf32, #tpu.memory_space<vmem>>, vector<1x16x4xf32>
    %47 = vector.shape_cast %46 : vector<1x16x4xf32> to vector<16x4xf32>
    %48 = vector.extract_strided_slice %4 {offsets = [0, 38], sizes = [4, 324], strides = [1, 1]} : vector<4x362xf32> to vector<4x324xf32>
    %cst_32 = arith.constant dense<0.000000e+00> : vector<16x324xf32>
    %49 = tpu.matmul %47, %48, %cst_32 {dimension_numbers = #tpu.dot_dimension_numbers<[1], [0], [0], [1], [0, 0, 1, 1], [], []>} : vector<16x4xf32>, vector<4x324xf32>, vector<16x324xf32> -> vector<16x324xf32>
    %50 = arith.addf %45, %49 : vector<16x324xf32>
    %c0_33 = arith.constant 0 : index
    %c0_34 = arith.constant 0 : index
    %51 = vector.load %arg5[%c0_33, %c0_34] : memref<16x1xf32, #tpu.memory_space<vmem>>, vector<16x1xf32>
    %52 = vector.broadcast %51 : vector<16x1xf32> to vector<16x324xf32>
    %53 = arith.addf %50, %52 : vector<16x324xf32>
    %54 = vector.extract_strided_slice %53 {offsets = [0, 0], sizes = [8, 324], strides = [1, 1]} : vector<16x324xf32> to vector<8x324xf32>
    %55 = vector.extract_strided_slice %53 {offsets = [8, 0], sizes = [8, 324], strides = [1, 1]} : vector<16x324xf32> to vector<8x324xf32>
    %56 = arith.negf %55 : vector<8x324xf32>
    %57 = math.exp %56 : vector<8x324xf32>
    %cst_35 = arith.constant 1.000000e+00 : f32
    %58 = vector.broadcast %cst_35 : f32 to vector<8x324xf32>
    %59 = arith.addf %58, %57 : vector<8x324xf32>
    %60 = arith.divf %58, %59 : vector<8x324xf32>
    %61 = arith.mulf %54, %60 : vector<8x324xf32>
    %cst_36 = arith.constant 0.000000e+00 : f32
    %62 = vector.shape_cast %2 : vector<1x324xi1> to vector<1x324xi1>
    %63 = vector.broadcast %62 : vector<1x324xi1> to vector<8x324xi1>
    %64 = vector.broadcast %cst_36 : f32 to vector<8x324xf32>
    %65 = arith.select %63, %61, %64 : vector<8x324xi1>, vector<8x324xf32>
    %c0_37 = arith.constant 0 : index
    %c19 = arith.constant 19 : index
    %66 = vector.load %arg11[%c0_37, %c19] : memref<8x362xf32, #tpu.memory_space<vmem>>, vector<8x324xf32>
    tpu.vector_store %arg11[%c0_37, %c19], %65 {strides = array<i32>} : memref<8x362xf32, #tpu.memory_space<vmem>>, vector<8x324xf32>,
    %c0_38 = arith.constant 0 : index
    %c0_39 = arith.constant 0 : index
    %67 = vector.load %arg11[%c0_38, %c0_39] : memref<8x362xf32, #tpu.memory_space<vmem>>, vector<8x362xf32>
    %cst_40 = arith.constant 0.000000e+00 : f32
    %68 = vector.broadcast %cst_40 : f32 to vector<16x324xf32>
    %c0_41 = arith.constant 0 : index
    %c0_42 = arith.constant 0 : index
    %c0_43 = arith.constant 0 : index
    %69 = vector.load %arg3[%c0_41, %c0_42, %c0_43] : memref<9x16x8xf32, #tpu.memory_space<vmem>>, vector<1x16x8xf32>
    %70 = vector.shape_cast %69 : vector<1x16x8xf32> to vector<16x8xf32>
    %71 = vector.extract_strided_slice %67 {offsets = [0, 0], sizes = [8, 324], strides = [1, 1]} : vector<8x362xf32> to vector<8x324xf32>
    %cst_44 = arith.constant dense<0.000000e+00> : vector<16x324xf32>
    %72 = tpu.matmul %70, %71, %cst_44 {dimension_numbers = #tpu.dot_dimension_numbers<[1], [0], [0], [1], [0, 0, 1, 1], [], []>} : vector<16x8xf32>, vector<8x324xf32>, vector<16x324xf32> -> vector<16x324xf32>
    %73 = arith.addf %68, %72 : vector<16x324xf32>
    %c1_45 = arith.constant 1 : index
    %c0_46 = arith.constant 0 : index
    %c0_47 = arith.constant 0 : index
    %74 = vector.load %arg3[%c1_45, %c0_46, %c0_47] : memref<9x16x8xf32, #tpu.memory_space<vmem>>, vector<1x16x8xf32>
    %75 = vector.shape_cast %74 : vector<1x16x8xf32> to vector<16x8xf32>
    %76 = vector.extract_strided_slice %67 {offsets = [0, 1], sizes = [8, 324], strides = [1, 1]} : vector<8x362xf32> to vector<8x324xf32>
    %cst_48 = arith.constant dense<0.000000e+00> : vector<16x324xf32>
    %77 = tpu.matmul %75, %76, %cst_48 {dimension_numbers = #tpu.dot_dimension_numbers<[1], [0], [0], [1], [0, 0, 1, 1], [], []>} : vector<16x8xf32>, vector<8x324xf32>, vector<16x324xf32> -> vector<16x324xf32>
    %78 = arith.addf %73, %77 : vector<16x324xf32>
    %c2_49 = arith.constant 2 : index
    %c0_50 = arith.constant 0 : index
    %c0_51 = arith.constant 0 : index
    %79 = vector.load %arg3[%c2_49, %c0_50, %c0_51] : memref<9x16x8xf32, #tpu.memory_space<vmem>>, vector<1x16x8xf32>
    %80 = vector.shape_cast %79 : vector<1x16x8xf32> to vector<16x8xf32>
    %81 = vector.extract_strided_slice %67 {offsets = [0, 2], sizes = [8, 324], strides = [1, 1]} : vector<8x362xf32> to vector<8x324xf32>
    %cst_52 = arith.constant dense<0.000000e+00> : vector<16x324xf32>
    %82 = tpu.matmul %80, %81, %cst_52 {dimension_numbers = #tpu.dot_dimension_numbers<[1], [0], [0], [1], [0, 0, 1, 1], [], []>} : vector<16x8xf32>, vector<8x324xf32>, vector<16x324xf32> -> vector<16x324xf32>
    %83 = arith.addf %78, %82 : vector<16x324xf32>
    %c3_53 = arith.constant 3 : index
    %c0_54 = arith.constant 0 : index
    %c0_55 = arith.constant 0 : index
    %84 = vector.load %arg3[%c3_53, %c0_54, %c0_55] : memref<9x16x8xf32, #tpu.memory_space<vmem>>, vector<1x16x8xf32>
    %85 = vector.shape_cast %84 : vector<1x16x8xf32> to vector<16x8xf32>
    %86 = vector.extract_strided_slice %67 {offsets = [0, 18], sizes = [8, 324], strides = [1, 1]} : vector<8x362xf32> to vector<8x324xf32>
    %cst_56 = arith.constant dense<0.000000e+00> : vector<16x324xf32>
    %87 = tpu.matmul %85, %86, %cst_56 {dimension_numbers = #tpu.dot_dimension_numbers<[1], [0], [0], [1], [0, 0, 1, 1], [], []>} : vector<16x8xf32>, vector<8x324xf32>, vector<16x324xf32> -> vector<16x324xf32>
    %88 = arith.addf %83, %87 : vector<16x324xf32>
    %c4_57 = arith.constant 4 : index
    %c0_58 = arith.constant 0 : index
    %c0_59 = arith.constant 0 : index
    %89 = vector.load %arg3[%c4_57, %c0_58, %c0_59] : memref<9x16x8xf32, #tpu.memory_space<vmem>>, vector<1x16x8xf32>
    %90 = vector.shape_cast %89 : vector<1x16x8xf32> to vector<16x8xf32>
    %91 = vector.extract_strided_slice %67 {offsets = [0, 19], sizes = [8, 324], strides = [1, 1]} : vector<8x362xf32> to vector<8x324xf32>
    %cst_60 = arith.constant dense<0.000000e+00> : vector<16x324xf32>
    %92 = tpu.matmul %90, %91, %cst_60 {dimension_numbers = #tpu.dot_dimension_numbers<[1], [0], [0], [1], [0, 0, 1, 1], [], []>} : vector<16x8xf32>, vector<8x324xf32>, vector<16x324xf32> -> vector<16x324xf32>
    %93 = arith.addf %88, %92 : vector<16x324xf32>
    %c5_61 = arith.constant 5 : index
    %c0_62 = arith.constant 0 : index
    %c0_63 = arith.constant 0 : index
    %94 = vector.load %arg3[%c5_61, %c0_62, %c0_63] : memref<9x16x8xf32, #tpu.memory_space<vmem>>, vector<1x16x8xf32>
    %95 = vector.shape_cast %94 : vector<1x16x8xf32> to vector<16x8xf32>
    %96 = vector.extract_strided_slice %67 {offsets = [0, 20], sizes = [8, 324], strides = [1, 1]} : vector<8x362xf32> to vector<8x324xf32>
    %cst_64 = arith.constant dense<0.000000e+00> : vector<16x324xf32>
    %97 = tpu.matmul %95, %96, %cst_64 {dimension_numbers = #tpu.dot_dimension_numbers<[1], [0], [0], [1], [0, 0, 1, 1], [], []>} : vector<16x8xf32>, vector<8x324xf32>, vector<16x324xf32> -> vector<16x324xf32>
    %98 = arith.addf %93, %97 : vector<16x324xf32>
    %c6_65 = arith.constant 6 : index
    %c0_66 = arith.constant 0 : index
    %c0_67 = arith.constant 0 : index
    %99 = vector.load %arg3[%c6_65, %c0_66, %c0_67] : memref<9x16x8xf32, #tpu.memory_space<vmem>>, vector<1x16x8xf32>
    %100 = vector.shape_cast %99 : vector<1x16x8xf32> to vector<16x8xf32>
    %101 = vector.extract_strided_slice %67 {offsets = [0, 36], sizes = [8, 324], strides = [1, 1]} : vector<8x362xf32> to vector<8x324xf32>
    %cst_68 = arith.constant dense<0.000000e+00> : vector<16x324xf32>
    %102 = tpu.matmul %100, %101, %cst_68 {dimension_numbers = #tpu.dot_dimension_numbers<[1], [0], [0], [1], [0, 0, 1, 1], [], []>} : vector<16x8xf32>, vector<8x324xf32>, vector<16x324xf32> -> vector<16x324xf32>
    %103 = arith.addf %98, %102 : vector<16x324xf32>
    %c7_69 = arith.constant 7 : index
    %c0_70 = arith.constant 0 : index
    %c0_71 = arith.constant 0 : index
    %104 = vector.load %arg3[%c7_69, %c0_70, %c0_71] : memref<9x16x8xf32, #tpu.memory_space<vmem>>, vector<1x16x8xf32>
    %105 = vector.shape_cast %104 : vector<1x16x8xf32> to vector<16x8xf32>
    %106 = vector.extract_strided_slice %67 {offsets = [0, 37], sizes = [8, 324], strides = [1, 1]} : vector<8x362xf32> to vector<8x324xf32>
    %cst_72 = arith.constant dense<0.000000e+00> : vector<16x324xf32>
    %107 = tpu.matmul %105, %106, %cst_72 {dimension_numbers = #tpu.dot_dimension_numbers<[1], [0], [0], [1], [0, 0, 1, 1], [], []>} : vector<16x8xf32>, vector<8x324xf32>, vector<16x324xf32> -> vector<16x324xf32>
    %108 = arith.addf %103, %107 : vector<16x324xf32>
    %c8_73 = arith.constant 8 : index
    %c0_74 = arith.constant 0 : index
    %c0_75 = arith.constant 0 : index
    %109 = vector.load %arg3[%c8_73, %c0_74, %c0_75] : memref<9x16x8xf32, #tpu.memory_space<vmem>>, vector<1x16x8xf32>
    %110 = vector.shape_cast %109 : vector<1x16x8xf32> to vector<16x8xf32>
    %111 = vector.extract_strided_slice %67 {offsets = [0, 38], sizes = [8, 324], strides = [1, 1]} : vector<8x362xf32> to vector<8x324xf32>
    %cst_76 = arith.constant dense<0.000000e+00> : vector<16x324xf32>
    %112 = tpu.matmul %110, %111, %cst_76 {dimension_numbers = #tpu.dot_dimension_numbers<[1], [0], [0], [1], [0, 0, 1, 1], [], []>} : vector<16x8xf32>, vector<8x324xf32>, vector<16x324xf32> -> vector<16x324xf32>
    %113 = arith.addf %108, %112 : vector<16x324xf32>
    %c0_77 = arith.constant 0 : index
    %c0_78 = arith.constant 0 : index
    %114 = vector.load %arg6[%c0_77, %c0_78] : memref<16x1xf32, #tpu.memory_space<vmem>>, vector<16x1xf32>
    %115 = vector.broadcast %114 : vector<16x1xf32> to vector<16x324xf32>
    %116 = arith.addf %113, %115 : vector<16x324xf32>
    %117 = vector.extract_strided_slice %116 {offsets = [0, 0], sizes = [8, 324], strides = [1, 1]} : vector<16x324xf32> to vector<8x324xf32>
    %118 = vector.extract_strided_slice %116 {offsets = [8, 0], sizes = [8, 324], strides = [1, 1]} : vector<16x324xf32> to vector<8x324xf32>
    %119 = arith.negf %118 : vector<8x324xf32>
    %120 = math.exp %119 : vector<8x324xf32>
    %cst_79 = arith.constant 1.000000e+00 : f32
    %121 = vector.broadcast %cst_79 : f32 to vector<8x324xf32>
    %122 = arith.addf %121, %120 : vector<8x324xf32>
    %123 = arith.divf %121, %122 : vector<8x324xf32>
    %124 = arith.mulf %117, %123 : vector<8x324xf32>
    %cst_80 = arith.constant 0.000000e+00 : f32
    %125 = vector.shape_cast %2 : vector<1x324xi1> to vector<1x324xi1>
    %126 = vector.broadcast %125 : vector<1x324xi1> to vector<8x324xi1>
    %127 = vector.broadcast %cst_80 : f32 to vector<8x324xf32>
    %128 = arith.select %126, %124, %127 : vector<8x324xi1>, vector<8x324xf32>
    %c0_81 = arith.constant 0 : index
    %c0_82 = arith.constant 0 : index
    %c0_83 = arith.constant 0 : index
    %129 = vector.load %arg9[%c0_81, %c0_82, %c0_83] : memref<1x8x324xf32, #tpu.memory_space<vmem>>, vector<1x8x324xf32>
    %130 = vector.shape_cast %129 : vector<1x8x324xf32> to vector<8x324xf32>
    %131 = vector.shape_cast %128 : vector<8x324xf32> to vector<1x8x324xf32>
    tpu.vector_store %arg9[%c0_81, %c0_82, %c0_83], %131 {strides = array<i32>} : memref<1x8x324xf32, #tpu.memory_space<vmem>>, vector<1x8x324xf32>,
    %c0_84 = arith.constant 0 : index
    %c19_85 = arith.constant 19 : index
    %132 = vector.load %arg12[%c0_84, %c19_85] : memref<8x362xf32, #tpu.memory_space<vmem>>, vector<8x324xf32>
    tpu.vector_store %arg12[%c0_84, %c19_85], %128 {strides = array<i32>} : memref<8x362xf32, #tpu.memory_space<vmem>>, vector<8x324xf32>,
    %c0_86 = arith.constant 0 : index
    %c0_87 = arith.constant 0 : index
    %133 = vector.load %arg12[%c0_86, %c0_87] : memref<8x362xf32, #tpu.memory_space<vmem>>, vector<8x362xf32>
    %cst_88 = arith.constant 0.000000e+00 : f32
    %134 = vector.broadcast %cst_88 : f32 to vector<8x324xf32>
    %c0_89 = arith.constant 0 : index
    %c0_90 = arith.constant 0 : index
    %c0_91 = arith.constant 0 : index
    %135 = vector.load %arg4[%c0_89, %c0_90, %c0_91] : memref<9x8x8xf32, #tpu.memory_space<vmem>>, vector<1x8x8xf32>
    %136 = vector.shape_cast %135 : vector<1x8x8xf32> to vector<8x8xf32>
    %137 = vector.extract_strided_slice %133 {offsets = [0, 0], sizes = [8, 324], strides = [1, 1]} : vector<8x362xf32> to vector<8x324xf32>
    %cst_92 = arith.constant dense<0.000000e+00> : vector<8x324xf32>
    %138 = tpu.matmul %136, %137, %cst_92 {dimension_numbers = #tpu.dot_dimension_numbers<[1], [0], [0], [1], [0, 0, 1, 1], [], []>} : vector<8x8xf32>, vector<8x324xf32>, vector<8x324xf32> -> vector<8x324xf32>
    %139 = arith.addf %134, %138 : vector<8x324xf32>
    %c1_93 = arith.constant 1 : index
    %c0_94 = arith.constant 0 : index
    %c0_95 = arith.constant 0 : index
    %140 = vector.load %arg4[%c1_93, %c0_94, %c0_95] : memref<9x8x8xf32, #tpu.memory_space<vmem>>, vector<1x8x8xf32>
    %141 = vector.shape_cast %140 : vector<1x8x8xf32> to vector<8x8xf32>
    %142 = vector.extract_strided_slice %133 {offsets = [0, 1], sizes = [8, 324], strides = [1, 1]} : vector<8x362xf32> to vector<8x324xf32>
    %cst_96 = arith.constant dense<0.000000e+00> : vector<8x324xf32>
    %143 = tpu.matmul %141, %142, %cst_96 {dimension_numbers = #tpu.dot_dimension_numbers<[1], [0], [0], [1], [0, 0, 1, 1], [], []>} : vector<8x8xf32>, vector<8x324xf32>, vector<8x324xf32> -> vector<8x324xf32>
    %144 = arith.addf %139, %143 : vector<8x324xf32>
    %c2_97 = arith.constant 2 : index
    %c0_98 = arith.constant 0 : index
    %c0_99 = arith.constant 0 : index
    %145 = vector.load %arg4[%c2_97, %c0_98, %c0_99] : memref<9x8x8xf32, #tpu.memory_space<vmem>>, vector<1x8x8xf32>
    %146 = vector.shape_cast %145 : vector<1x8x8xf32> to vector<8x8xf32>
    %147 = vector.extract_strided_slice %133 {offsets = [0, 2], sizes = [8, 324], strides = [1, 1]} : vector<8x362xf32> to vector<8x324xf32>
    %cst_100 = arith.constant dense<0.000000e+00> : vector<8x324xf32>
    %148 = tpu.matmul %146, %147, %cst_100 {dimension_numbers = #tpu.dot_dimension_numbers<[1], [0], [0], [1], [0, 0, 1, 1], [], []>} : vector<8x8xf32>, vector<8x324xf32>, vector<8x324xf32> -> vector<8x324xf32>
    %149 = arith.addf %144, %148 : vector<8x324xf32>
    %c3_101 = arith.constant 3 : index
    %c0_102 = arith.constant 0 : index
    %c0_103 = arith.constant 0 : index
    %150 = vector.load %arg4[%c3_101, %c0_102, %c0_103] : memref<9x8x8xf32, #tpu.memory_space<vmem>>, vector<1x8x8xf32>
    %151 = vector.shape_cast %150 : vector<1x8x8xf32> to vector<8x8xf32>
    %152 = vector.extract_strided_slice %133 {offsets = [0, 18], sizes = [8, 324], strides = [1, 1]} : vector<8x362xf32> to vector<8x324xf32>
    %cst_104 = arith.constant dense<0.000000e+00> : vector<8x324xf32>
    %153 = tpu.matmul %151, %152, %cst_104 {dimension_numbers = #tpu.dot_dimension_numbers<[1], [0], [0], [1], [0, 0, 1, 1], [], []>} : vector<8x8xf32>, vector<8x324xf32>, vector<8x324xf32> -> vector<8x324xf32>
    %154 = arith.addf %149, %153 : vector<8x324xf32>
    %c4_105 = arith.constant 4 : index
    %c0_106 = arith.constant 0 : index
    %c0_107 = arith.constant 0 : index
    %155 = vector.load %arg4[%c4_105, %c0_106, %c0_107] : memref<9x8x8xf32, #tpu.memory_space<vmem>>, vector<1x8x8xf32>
    %156 = vector.shape_cast %155 : vector<1x8x8xf32> to vector<8x8xf32>
    %157 = vector.extract_strided_slice %133 {offsets = [0, 19], sizes = [8, 324], strides = [1, 1]} : vector<8x362xf32> to vector<8x324xf32>
    %cst_108 = arith.constant dense<0.000000e+00> : vector<8x324xf32>
    %158 = tpu.matmul %156, %157, %cst_108 {dimension_numbers = #tpu.dot_dimension_numbers<[1], [0], [0], [1], [0, 0, 1, 1], [], []>} : vector<8x8xf32>, vector<8x324xf32>, vector<8x324xf32> -> vector<8x324xf32>
    %159 = arith.addf %154, %158 : vector<8x324xf32>
    %c5_109 = arith.constant 5 : index
    %c0_110 = arith.constant 0 : index
    %c0_111 = arith.constant 0 : index
    %160 = vector.load %arg4[%c5_109, %c0_110, %c0_111] : memref<9x8x8xf32, #tpu.memory_space<vmem>>, vector<1x8x8xf32>
    %161 = vector.shape_cast %160 : vector<1x8x8xf32> to vector<8x8xf32>
    %162 = vector.extract_strided_slice %133 {offsets = [0, 20], sizes = [8, 324], strides = [1, 1]} : vector<8x362xf32> to vector<8x324xf32>
    %cst_112 = arith.constant dense<0.000000e+00> : vector<8x324xf32>
    %163 = tpu.matmul %161, %162, %cst_112 {dimension_numbers = #tpu.dot_dimension_numbers<[1], [0], [0], [1], [0, 0, 1, 1], [], []>} : vector<8x8xf32>, vector<8x324xf32>, vector<8x324xf32> -> vector<8x324xf32>
    %164 = arith.addf %159, %163 : vector<8x324xf32>
    %c6_113 = arith.constant 6 : index
    %c0_114 = arith.constant 0 : index
    %c0_115 = arith.constant 0 : index
    %165 = vector.load %arg4[%c6_113, %c0_114, %c0_115] : memref<9x8x8xf32, #tpu.memory_space<vmem>>, vector<1x8x8xf32>
    %166 = vector.shape_cast %165 : vector<1x8x8xf32> to vector<8x8xf32>
    %167 = vector.extract_strided_slice %133 {offsets = [0, 36], sizes = [8, 324], strides = [1, 1]} : vector<8x362xf32> to vector<8x324xf32>
    %cst_116 = arith.constant dense<0.000000e+00> : vector<8x324xf32>
    %168 = tpu.matmul %166, %167, %cst_116 {dimension_numbers = #tpu.dot_dimension_numbers<[1], [0], [0], [1], [0, 0, 1, 1], [], []>} : vector<8x8xf32>, vector<8x324xf32>, vector<8x324xf32> -> vector<8x324xf32>
    %169 = arith.addf %164, %168 : vector<8x324xf32>
    %c7_117 = arith.constant 7 : index
    %c0_118 = arith.constant 0 : index
    %c0_119 = arith.constant 0 : index
    %170 = vector.load %arg4[%c7_117, %c0_118, %c0_119] : memref<9x8x8xf32, #tpu.memory_space<vmem>>, vector<1x8x8xf32>
    %171 = vector.shape_cast %170 : vector<1x8x8xf32> to vector<8x8xf32>
    %172 = vector.extract_strided_slice %133 {offsets = [0, 37], sizes = [8, 324], strides = [1, 1]} : vector<8x362xf32> to vector<8x324xf32>
    %cst_120 = arith.constant dense<0.000000e+00> : vector<8x324xf32>
    %173 = tpu.matmul %171, %172, %cst_120 {dimension_numbers = #tpu.dot_dimension_numbers<[1], [0], [0], [1], [0, 0, 1, 1], [], []>} : vector<8x8xf32>, vector<8x324xf32>, vector<8x324xf32> -> vector<8x324xf32>
    %174 = arith.addf %169, %173 : vector<8x324xf32>
    %c8_121 = arith.constant 8 : index
    %c0_122 = arith.constant 0 : index
    %c0_123 = arith.constant 0 : index
    %175 = vector.load %arg4[%c8_121, %c0_122, %c0_123] : memref<9x8x8xf32, #tpu.memory_space<vmem>>, vector<1x8x8xf32>
    %176 = vector.shape_cast %175 : vector<1x8x8xf32> to vector<8x8xf32>
    %177 = vector.extract_strided_slice %133 {offsets = [0, 38], sizes = [8, 324], strides = [1, 1]} : vector<8x362xf32> to vector<8x324xf32>
    %cst_124 = arith.constant dense<0.000000e+00> : vector<8x324xf32>
    %178 = tpu.matmul %176, %177, %cst_124 {dimension_numbers = #tpu.dot_dimension_numbers<[1], [0], [0], [1], [0, 0, 1, 1], [], []>} : vector<8x8xf32>, vector<8x324xf32>, vector<8x324xf32> -> vector<8x324xf32>
    %179 = arith.addf %174, %178 : vector<8x324xf32>
    %c0_125 = arith.constant 0 : index
    %c0_126 = arith.constant 0 : index
    %180 = vector.load %arg7[%c0_125, %c0_126] : memref<8x1xf32, #tpu.memory_space<vmem>>, vector<8x1xf32>
    %181 = vector.broadcast %180 : vector<8x1xf32> to vector<8x324xf32>
    %182 = arith.addf %179, %181 : vector<8x324xf32>
    %cst_127 = arith.constant 0.000000e+00 : f32
    %183 = vector.shape_cast %2 : vector<1x324xi1> to vector<1x324xi1>
    %184 = vector.broadcast %183 : vector<1x324xi1> to vector<8x324xi1>
    %185 = vector.broadcast %cst_127 : f32 to vector<8x324xf32>
    %186 = arith.select %184, %182, %185 : vector<8x324xi1>, vector<8x324xf32>
    %c0_128 = arith.constant 0 : index
    %c0_129 = arith.constant 0 : index
    %c0_130 = arith.constant 0 : index
    %187 = vector.load %arg10[%c0_128, %c0_129, %c0_130] : memref<1x8x324xf32, #tpu.memory_space<vmem>>, vector<1x8x324xf32>
    %188 = vector.shape_cast %187 : vector<1x8x324xf32> to vector<8x324xf32>
    %189 = vector.shape_cast %186 : vector<8x324xf32> to vector<1x8x324xf32>
    tpu.vector_store %arg10[%c0_128, %c0_129, %c0_130], %189 {strides = array<i32>} : memref<1x8x324xf32, #tpu.memory_space<vmem>>, vector<1x8x324xf32>,
    return
  }
  func.func @transform_0(%arg0: i32) -> (i32, i32, i32) {
    %c0_i32 = arith.constant 0 : i32
    %c0_i32_0 = arith.constant 0 : i32
    %c0_i32_1 = arith.constant 0 : i32
    return %arg0, %c0_i32, %c0_i32_0 : i32, i32, i32
  }
  func.func @transform_1(%arg0: i32) -> (i32, i32, i32) {
    %c0_i32 = arith.constant 0 : i32
    %c0_i32_0 = arith.constant 0 : i32
    %c0_i32_1 = arith.constant 0 : i32
    %c0_i32_2 = arith.constant 0 : i32
    return %c0_i32, %c0_i32_0, %c0_i32_1 : i32, i32, i32
  }
  func.func @transform_2(%arg0: i32) -> (i32, i32, i32) {
    %c0_i32 = arith.constant 0 : i32
    %c0_i32_0 = arith.constant 0 : i32
    %c0_i32_1 = arith.constant 0 : i32
    %c0_i32_2 = arith.constant 0 : i32
    return %c0_i32, %c0_i32_0, %c0_i32_1 : i32, i32, i32
  }
  func.func @transform_3(%arg0: i32) -> (i32, i32, i32) {
    %c0_i32 = arith.constant 0 : i32
    %c0_i32_0 = arith.constant 0 : i32
    %c0_i32_1 = arith.constant 0 : i32
    %c0_i32_2 = arith.constant 0 : i32
    return %c0_i32, %c0_i32_0, %c0_i32_1 : i32, i32, i32
  }
  func.func @transform_4(%arg0: i32) -> (i32, i32) {
    %c0_i32 = arith.constant 0 : i32
    %c0_i32_0 = arith.constant 0 : i32
    %c0_i32_1 = arith.constant 0 : i32
    return %c0_i32, %c0_i32_0 : i32, i32
  }
  func.func @transform_5(%arg0: i32) -> (i32, i32) {
    %c0_i32 = arith.constant 0 : i32
    %c0_i32_0 = arith.constant 0 : i32
    %c0_i32_1 = arith.constant 0 : i32
    return %c0_i32, %c0_i32_0 : i32, i32
  }
  func.func @transform_6(%arg0: i32) -> (i32, i32) {
    %c0_i32 = arith.constant 0 : i32
    %c0_i32_0 = arith.constant 0 : i32
    %c0_i32_1 = arith.constant 0 : i32
    return %c0_i32, %c0_i32_0 : i32, i32
  }
  func.func @transform_7(%arg0: i32) -> (i32, i32) {
    %c0_i32 = arith.constant 0 : i32
    %c0_i32_0 = arith.constant 0 : i32
    %c0_i32_1 = arith.constant 0 : i32
    return %c0_i32, %c0_i32_0 : i32, i32
  }
  func.func @transform_8(%arg0: i32) -> (i32, i32, i32) {
    %c0_i32 = arith.constant 0 : i32
    %c0_i32_0 = arith.constant 0 : i32
    %c0_i32_1 = arith.constant 0 : i32
    return %arg0, %c0_i32, %c0_i32_0 : i32, i32, i32
  }
  func.func @transform_9(%arg0: i32) -> (i32, i32, i32) {
    %c0_i32 = arith.constant 0 : i32
    %c0_i32_0 = arith.constant 0 : i32
    %c0_i32_1 = arith.constant 0 : i32
    return %arg0, %c0_i32, %c0_i32_0 : i32, i32, i32
  }
}

</mosaic_0001>

<llo_original>
// kernel: gcunet3_encoder.1
$region0: #{gcunet3_encoder.1}
  #allocation0 [shape = 'u32[]', space=smem, size = 0x4, offset = 0x4, fixed_abs, tag = 'smem constant byte address 0x4 - core index']
  #allocation1 [shape = 'u32[72,128]{1,0:T(1,128)}', space=vmem, size = 0x9000, scoped, tag = 'internal scratch']
  #allocation2 [shape = 'f32[8,362]{1,0:T(8,128)}', space=vmem, size = 0x3000, scoped, tag = 'scratch operand']
  #allocation3 [shape = 'f32[8,362]{1,0:T(8,128)}', space=vmem, size = 0x3000, scoped, tag = 'scratch operand']
  %s0 = inlined_call_operand.vmem [shape: f32[2,4,362], index: 0, kind: input, shape index: {}]
  %s1 = inlined_call_operand.vmem [shape: f32[9,16,4], index: 1, kind: input, shape index: {}]
  %s2 = inlined_call_operand.vmem [shape: f32[9,16,8], index: 2, kind: input, shape index: {}]
  %s3 = inlined_call_operand.vmem [shape: f32[9,8,8], index: 3, kind: input, shape index: {}]
  %s4 = inlined_call_operand.vmem [shape: f32[16,1], index: 4, kind: input, shape index: {}]
  %s5 = inlined_call_operand.vmem [shape: f32[16,1], index: 5, kind: input, shape index: {}]
  %s6 = inlined_call_operand.vmem [shape: f32[8,1], index: 6, kind: input, shape index: {}]
  %s7 = inlined_call_operand.vmem [shape: f32[1,324], index: 7, kind: input, shape index: {}]
  %s8 = inlined_call_operand.vmem [shape: f32[2,8,324], index: 8, kind: output, shape index: {0}]
  %s9 = inlined_call_operand.vmem [shape: f32[2,8,324], index: 9, kind: output, shape index: {1}]
  %10 = xla_tuple %s8, %s9
  %s11 = sld [smem:[#allocation0]]
  $region73: #{gcunet3_encoder.1} parent=0
    _
  %s13 = ssub.s32 1, %s11
  %s14 = scalar_select 0, %s13, %s11
  loop: start=0, step=1, limit=4
  $region2: #{gcunet3_encoder.1} parent=0 // loop_pre_header
    _
  $region3: #{gcunet3_encoder.1} parent=0 // loop_header
    %s16 = sphi 0, %s20
    %p17 = scmp.ge.s32.totalorder %s16, 4
    %s26 = sphi 0, %s28
    %s29 = sphi 0, %s26
    %s30 = sphi 0, %s29
    %s46 = sphi 0, %s30
    %s50 = sphi 0, %s50
    %s52 = sphi 0, %s50
    %s53 = sphi 0, %s52
    %s67 = sphi 0, %s53
    %s71 = sphi 0, %s71
    %s73 = sphi 0, %s71
    %s74 = sphi 0, %s73
    %s88 = sphi 0, %s74
    %s92 = sphi 0, %s92
    %s94 = sphi 0, %s92
    %s95 = sphi 0, %s94
    %s109 = sphi 0, %s95
    %s113 = sphi 0, %s113
    %s115 = sphi 0, %s113
    %s116 = sphi 0, %s115
    %s130 = sphi 0, %s116
    %s134 = sphi 0, %s134
    %s136 = sphi 0, %s134
    %s137 = sphi 0, %s136
    %s151 = sphi 0, %s137
    %s155 = sphi 0, %s155
    %s157 = sphi 0, %s155
    %s158 = sphi 0, %s157
    %s172 = sphi 0, %s158
    %s176 = sphi 0, %s176
    %s178 = sphi 0, %s176
    %s179 = sphi 0, %s178
    %s193 = sphi 0, %s179
    %s199 = sphi 0, %s201
    %s202 = sphi 0, %s199
    %s203 = sphi 0, %s202
    %s219 = sphi 0, %s203
    %s225 = sphi 0, %s227
    %s228 = sphi 0, %s225
    %s229 = sphi 0, %s228
    %s245 = sphi 0, %s229
  $region4: #{gcunet3_encoder.1} parent=0 // loop_header_branch
    %19 = sbr.rel (%p17) target = $region8
  $region5: #{gcunet3_encoder.1} parent=0 // loop_body
    %s21 = ssub.s32 %s16, 1
    %s22 = ssub.s32 %s16, 2
    %s23 = sadd.s32 %s16, 1
    %s24 = ssub.s32 %s16, %s23
    %p25 = scmp.eq.s32.totalorder %s24, 0
    %s27 = sadd.s32 %s26, 1
    %s28 = scalar_select %p25, %s26, %s27
    %p31 = pneg %p25
    %p32 = scmp.eq.s32.totalorder %s16, 1
    %p33 = por %p31, %p32
    %p34 = scmp.ne.s32.totalorder %s26, %s29
    %p35 = scmp.eq.s32.totalorder %s16, 0
    %p36 = por %p34, %p35
    %p37 = scmp.ne.s32.totalorder %s26, %s29
    %p38 = scmp.eq.s32.totalorder %s21, 1
    %p39 = por %p37, %p38
    %p40 = scmp.ne.s32.totalorder %s29, %s30
    %p41 = scmp.eq.s32.totalorder %s21, 0
    %p42 = por %p40, %p41
    %p43 = scmp.ne.s32.totalorder %s29, %s30
    %p44 = scmp.eq.s32.totalorder %s22, 1
    %p45 = por %p43, %p44
    %p47 = scmp.ne.s32.totalorder %s30, %s46
    %p48 = scmp.eq.s32.totalorder %s22, 0
    %p49 = por %p47, %p48
    %s51 = sadd.s32 %s50, 1
    %p54 = scmp.eq.s32.totalorder %s16, 1
    %p55 = scmp.ne.s32.totalorder %s50, %s52
    %p56 = scmp.eq.s32.totalorder %s16, 0
    %p57 = por %p55, %p56
    %p58 = scmp.ne.s32.totalorder %s50, %s52
    %p59 = scmp.eq.s32.totalorder %s21, 1
    %p60 = por %p58, %p59
    %p61 = scmp.ne.s32.totalorder %s52, %s53
    %p62 = scmp.eq.s32.totalorder %s21, 0
    %p63 = por %p61, %p62
    %p64 = scmp.ne.s32.totalorder %s52, %s53
    %p65 = scmp.eq.s32.totalorder %s22, 1
    %p66 = por %p64, %p65
    %p68 = scmp.ne.s32.totalorder %s53, %s67
    %p69 = scmp.eq.s32.totalorder %s22, 0
    %p70 = por %p68, %p69
    %s72 = sadd.s32 %s71, 1
    %p75 = scmp.eq.s32.totalorder %s16, 1
    %p76 = scmp.ne.s32.totalorder %s71, %s73
    %p77 = scmp.eq.s32.totalorder %s16, 0
    %p78 = por %p76, %p77
    %p79 = scmp.ne.s32.totalorder %s71, %s73
    %p80 = scmp.eq.s32.totalorder %s21, 1
    %p81 = por %p79, %p80
    %p82 = scmp.ne.s32.totalorder %s73, %s74
    %p83 = scmp.eq.s32.totalorder %s21, 0
    %p84 = por %p82, %p83
    %p85 = scmp.ne.s32.totalorder %s73, %s74
    %p86 = scmp.eq.s32.totalorder %s22, 1
    %p87 = por %p85, %p86
    %p89 = scmp.ne.s32.totalorder %s74, %s88
    %p90 = scmp.eq.s32.totalorder %s22, 0
    %p91 = por %p89, %p90
    %s93 = sadd.s32 %s92, 1
    %p96 = scmp.eq.s32.totalorder %s16, 1
    %p97 = scmp.ne.s32.totalorder %s92, %s94
    %p98 = scmp.eq.s32.totalorder %s16, 0
    %p99 = por %p97, %p98
    %p100 = scmp.ne.s32.totalorder %s92, %s94
    %p101 = scmp.eq.s32.totalorder %s21, 1
    %p102 = por %p100, %p101
    %p103 = scmp.ne.s32.totalorder %s94, %s95
    %p104 = scmp.eq.s32.totalorder %s21, 0
    %p105 = por %p103, %p104
    %p106 = scmp.ne.s32.totalorder %s94, %s95
    %p107 = scmp.eq.s32.totalorder %s22, 1
    %p108 = por %p106, %p107
    %p110 = scmp.ne.s32.totalorder %s95, %s109
    %p111 = scmp.eq.s32.totalorder %s22, 0
    %p112 = por %p110, %p111
    %s114 = sadd.s32 %s113, 1
    %p117 = scmp.eq.s32.totalorder %s16, 1
    %p118 = scmp.ne.s32.totalorder %s113, %s115
    %p119 = scmp.eq.s32.totalorder %s16, 0
    %p120 = por %p118, %p119
    %p121 = scmp.ne.s32.totalorder %s113, %s115
    %p122 = scmp.eq.s32.totalorder %s21, 1
    %p123 = por %p121, %p122
    %p124 = scmp.ne.s32.totalorder %s115, %s116
    %p125 = scmp.eq.s32.totalorder %s21, 0
    %p126 = por %p124, %p125
    %p127 = scmp.ne.s32.totalorder %s115, %s116
    %p128 = scmp.eq.s32.totalorder %s22, 1
    %p129 = por %p127, %p128
    %p131 = scmp.ne.s32.totalorder %s116, %s130
    %p132 = scmp.eq.s32.totalorder %s22, 0
    %p133 = por %p131, %p132
    %s135 = sadd.s32 %s134, 1
    %p138 = scmp.eq.s32.totalorder %s16, 1
    %p139 = scmp.ne.s32.totalorder %s134, %s136
    %p140 = scmp.eq.s32.totalorder %s16, 0
    %p141 = por %p139, %p140
    %p142 = scmp.ne.s32.totalorder %s134, %s136
    %p143 = scmp.eq.s32.totalorder %s21, 1
    %p144 = por %p142, %p143
    %p145 = scmp.ne.s32.totalorder %s136, %s137
    %p146 = scmp.eq.s32.totalorder %s21, 0
    %p147 = por %p145, %p146
    %p148 = scmp.ne.s32.totalorder %s136, %s137
    %p149 = scmp.eq.s32.totalorder %s22, 1
    %p150 = por %p148, %p149
    %p152 = scmp.ne.s32.totalorder %s137, %s151
    %p153 = scmp.eq.s32.totalorder %s22, 0
    %p154 = por %p152, %p153
    %s156 = sadd.s32 %s155, 1
    %p159 = scmp.eq.s32.totalorder %s16, 1
    %p160 = scmp.ne.s32.totalorder %s155, %s157
    %p161 = scmp.eq.s32.totalorder %s16, 0
    %p162 = por %p160, %p161
    %p163 = scmp.ne.s32.totalorder %s155, %s157
    %p164 = scmp.eq.s32.totalorder %s21, 1
    %p165 = por %p163, %p164
    %p166 = scmp.ne.s32.totalorder %s157, %s158
    %p167 = scmp.eq.s32.totalorder %s21, 0
    %p168 = por %p166, %p167
    %p169 = scmp.ne.s32.totalorder %s157, %s158
    %p170 = scmp.eq.s32.totalorder %s22, 1
    %p171 = por %p169, %p170
    %p173 = scmp.ne.s32.totalorder %s158, %s172
    %p174 = scmp.eq.s32.totalorder %s22, 0
    %p175 = por %p173, %p174
    %s177 = sadd.s32 %s176, 1
    %p180 = scmp.eq.s32.totalorder %s16, 1
    %p181 = scmp.ne.s32.totalorder %s176, %s178
    %p182 = scmp.eq.s32.totalorder %s16, 0
    %p183 = por %p181, %p182
    %p184 = scmp.ne.s32.totalorder %s176, %s178
    %p185 = scmp.eq.s32.totalorder %s21, 1
    %p186 = por %p184, %p185
    %p187 = scmp.ne.s32.totalorder %s178, %s179
    %p188 = scmp.eq.s32.totalorder %s21, 0
    %p189 = por %p187, %p188
    %p190 = scmp.ne.s32.totalorder %s178, %s179
    %p191 = scmp.eq.s32.totalorder %s22, 1
    %p192 = por %p190, %p191
    %p194 = scmp.ne.s32.totalorder %s179, %s193
    %p195 = scmp.eq.s32.totalorder %s22, 0
    %p196 = por %p194, %p195
    %s197 = ssub.s32 %s16, %s23
    %p198 = scmp.eq.s32.totalorder %s197, 0
    %s200 = sadd.s32 %s199, 1
    %s201 = scalar_select %p198, %s199, %s200
    %p204 = pneg %p198
    %p205 = scmp.eq.s32.totalorder %s16, 1
    %p206 = por %p204, %p205
    %p207 = scmp.ne.s32.totalorder %s199, %s202
    %p208 = scmp.eq.s32.totalorder %s16, 0
    %p209 = por %p207, %p208
    %p210 = scmp.ne.s32.totalorder %s199, %s202
    %p211 = scmp.eq.s32.totalorder %s21, 1
    %p212 = por %p210, %p211
    %p213 = scmp.ne.s32.totalorder %s202, %s203
    %p214 = scmp.eq.s32.totalorder %s21, 0
    %p215 = por %p213, %p214
    %p216 = scmp.ne.s32.totalorder %s202, %s203
    %p217 = scmp.eq.s32.totalorder %s22, 1
    %p218 = por %p216, %p217
    %p220 = scmp.ne.s32.totalorder %s203, %s219
    %p221 = scmp.eq.s32.totalorder %s22, 0
    %p222 = por %p220, %p221
    %s223 = ssub.s32 %s16, %s23
    %p224 = scmp.eq.s32.totalorder %s223, 0
    %s226 = sadd.s32 %s225, 1
    %s227 = scalar_select %p224, %s225, %s226
    %p230 = pneg %p224
    %p231 = scmp.eq.s32.totalorder %s16, 1
    %p232 = por %p230, %p231
    %p233 = scmp.ne.s32.totalorder %s225, %s228
    %p234 = scmp.eq.s32.totalorder %s16, 0
    %p235 = por %p233, %p234
    %p236 = scmp.ne.s32.totalorder %s225, %s228
    %p237 = scmp.eq.s32.totalorder %s21, 1
    %p238 = por %p236, %p237
    %p239 = scmp.ne.s32.totalorder %s228, %s229
    %p240 = scmp.eq.s32.totalorder %s21, 0
    %p241 = por %p239, %p240
    %p242 = scmp.ne.s32.totalorder %s228, %s229
    %p243 = scmp.eq.s32.totalorder %s22, 1
    %p244 = por %p242, %p243
    %p246 = scmp.ne.s32.totalorder %s229, %s245
    %p247 = scmp.eq.s32.totalorder %s22, 0
    %p248 = por %p246, %p247
    %p249 = scmp.le.s32.totalorder 1, %s16
    %p250 = scmp.lt.s32.totalorder %s16, 3
    %p251 = pnand %p249, %p250
    %p252 = pneg %p251
    // Predicated region
    $region9: #{gcunet3_encoder.1} parent=5 // pred_check
      _
    $region10: #{gcunet3_encoder.1} parent=5 // pred_check_branch
      %254 = sbr.rel (%p251) target = $region12
    $region11: #{gcunet3_encoder.1} parent=5 // pred_region
      %s255 = ssub.s32 %s16, 1
      // Predicated region
      $region13: #{gcunet3_encoder.1} parent=11 // pred_check
        %p256 = pneg %p63
      $region14: #{gcunet3_encoder.1} parent=11 // pred_check_branch
        %258 = sbr.rel (%p256) target = $region16
      $region15: #{gcunet3_encoder.1} parent=11 // pred_region
        _
      $region16: #{gcunet3_encoder.1} parent=11 // pred_fallthru
        _
      // Predicated region
      $region17: #{gcunet3_encoder.1} parent=11 // pred_check
        %p259 = pneg %p84
      $region18: #{gcunet3_encoder.1} parent=11 // pred_check_branch
        %261 = sbr.rel (%p259) target = $region20
      $region19: #{gcunet3_encoder.1} parent=11 // pred_region
        _
      $region20: #{gcunet3_encoder.1} parent=11 // pred_fallthru
        _
      // Predicated region
      $region21: #{gcunet3_encoder.1} parent=11 // pred_check
        %p262 = pneg %p105
      $region22: #{gcunet3_encoder.1} parent=11 // pred_check_branch
        %264 = sbr.rel (%p262) target = $region24
      $region23: #{gcunet3_encoder.1} parent=11 // pred_region
        _
      $region24: #{gcunet3_encoder.1} parent=11 // pred_fallthru
        _
      // Predicated region
      $region25: #{gcunet3_encoder.1} parent=11 // pred_check
        %p265 = pneg %p126
      $region26: #{gcunet3_encoder.1} parent=11 // pred_check_branch
        %267 = sbr.rel (%p265) target = $region28
      $region27: #{gcunet3_encoder.1} parent=11 // pred_region
        _
      $region28: #{gcunet3_encoder.1} parent=11 // pred_fallthru
        _
      // Predicated region
      $region29: #{gcunet3_encoder.1} parent=11 // pred_check
        %p268 = pneg %p147
      $region30: #{gcunet3_encoder.1} parent=11 // pred_check_branch
        %270 = sbr.rel (%p268) target = $region32
      $region31: #{gcunet3_encoder.1} parent=11 // pred_region
        _
      $region32: #{gcunet3_encoder.1} parent=11 // pred_fallthru
        _
      // Predicated region
      $region33: #{gcunet3_encoder.1} parent=11 // pred_check
        %p271 = pneg %p168
      $region34: #{gcunet3_encoder.1} parent=11 // pred_check_branch
        %273 = sbr.rel (%p271) target = $region36
      $region35: #{gcunet3_encoder.1} parent=11 // pred_region
        _
      $region36: #{gcunet3_encoder.1} parent=11 // pred_fallthru
        _
      // Predicated region
      $region37: #{gcunet3_encoder.1} parent=11 // pred_check
        %p274 = pneg %p189
      $region38: #{gcunet3_encoder.1} parent=11 // pred_check_branch
        %276 = sbr.rel (%p274) target = $region40
      $region39: #{gcunet3_encoder.1} parent=11 // pred_region
        _
      $region40: #{gcunet3_encoder.1} parent=11 // pred_fallthru
        _
    $region12: #{gcunet3_encoder.1} parent=5 // pred_fallthru
      _
    %p277 = scmp.lt.s32.totalorder %s16, 2
    // Predicated region
    $region41: #{gcunet3_encoder.1} parent=5 // pred_check
      %p278 = pneg %p277
    $region42: #{gcunet3_encoder.1} parent=5 // pred_check_branch
      %280 = sbr.rel (%p278) target = $region44
    $region43: #{gcunet3_encoder.1} parent=5 // pred_region
      // Predicated region
      $region45: #{gcunet3_encoder.1} parent=43 // pred_check
        %p281 = pneg %p36
      $region46: #{gcunet3_encoder.1} parent=43 // pred_check_branch
        %283 = sbr.rel (%p281) target = $region48
      $region47: #{gcunet3_encoder.1} parent=43 // pred_region
        %p284 = scmp.lt.s32.totalorder %s16, 1
        %s285 = scalar_select %p284, %s16, 1
        %s286 = smul.addr %s285, 3
        %s287 = smul.addr %s286, 4
        %s288 = scalar_lea.vmem %s0, %s287
      $region48: #{gcunet3_encoder.1} parent=43 // pred_fallthru
        _
    $region44: #{gcunet3_encoder.1} parent=5 // pred_fallthru
      _
    %p289 = scmp.le.s32.totalorder 1, %s16
    %p290 = scmp.lt.s32.totalorder %s16, 3
    %p291 = pnand %p289, %p290
    %p292 = pneg %p291
    // Predicated region
    $region49: #{gcunet3_encoder.1} parent=5 // pred_check
      _
    $region50: #{gcunet3_encoder.1} parent=5 // pred_check_branch
      %294 = sbr.rel (%p291) target = $region52
    $region51: #{gcunet3_encoder.1} parent=5 // pred_region
      %s295 = ssub.s32 %s16, 1
      %p296 = scmp.lt.s32.totalorder %s21, 1
      %s297 = scalar_select %p296, %s21, 1
      %s298 = smul.addr %s297, 3
      %s299 = smul.addr %s298, 4
      %s300 = scalar_lea.vmem %s0, %s299
      %p301 = pneg %p42
      %p302 = pneg %p39
      %p303 = pneg %p63
      %p304 = pneg %p60
      %p305 = pneg %p84
      %p306 = pneg %p81
      %p307 = pneg %p105
      %p308 = pneg %p102
      %p309 = pneg %p126
      %p310 = pneg %p123
      %p311 = pneg %p147
      %p312 = pneg %p144
      %p313 = pneg %p168
      %p314 = pneg %p165
      %p315 = pneg %p189
      %p316 = pneg %p186
      %p317 = pneg %p215
      %p318 = pneg %p212
      %p319 = scmp.lt.s32.totalorder %s21, 1
      %s320 = scalar_select %p319, %s21, 1
      %s321 = smul.addr %s320, 3
      %s322 = smul.addr %s321, 8
      %s323 = scalar_lea.vmem %s8, %s322
      %p324 = pneg %p241
      %p325 = pneg %p238
      %p326 = scmp.lt.s32.totalorder %s21, 1
      %s327 = scalar_select %p326, %s21, 1
      %s328 = smul.addr %s327, 3
      %s329 = smul.addr %s328, 8
      %s330 = scalar_lea.vmem %s9, %s329
      %p331 = scmp.lt.s32.totalorder %s21, 1
      %s332 = scalar_select %p331, %s21, 1
      %s333 = smul.addr %s332, 3
      %s334 = smul.addr %s333, 4
      %s335 = scalar_lea.vmem %s0, %s334
      %p336 = scmp.lt.s32.totalorder %s21, 1
      %s337 = scalar_select %p336, %s21, 1
      %s338 = smul.addr %s337, 3
      %s339 = smul.addr %s338, 8
      %s340 = scalar_lea.vmem %s8, %s339
      %p341 = scmp.lt.s32.totalorder %s21, 1
      %s342 = scalar_select %p341, %s21, 1
      %s343 = smul.addr %s342, 3
      %s344 = smul.addr %s343, 8
      %s345 = scalar_lea.vmem %s9, %s344
      %v346 = vld [vmem:[%s7] sm:$0x7]
      %vm347 = vcmp.ne.f32.partialorder %v346, 0.0
      %v348 = vld [vmem:[%s335] sm:$0xff]
      %v349 = vld [vmem:[%s335 + $0x8] sm:$0xf]
      %v350 = vld [vmem:[%s1] sm:$0xff]
      %v351 = vld [vmem:[%s1 + $0x8] sm:$0xff]
      %s352 = scalar_lea.vmem %s1, 16
      %v353 = vld [vmem:[%s352] sm:$0xff]
      %v354 = vld [vmem:[%s352 + $0x8] sm:$0xff]
      %357 = vst [vmem:[#allocation1] ss:$2 sm:$0xff] %v348
      %s358 = scalar_lea.vmem [#allocation1], 16
      %359 = vst [vmem:[%s358] ss:$2 sm:$0xff] %v349
      %v360 = vld.sshfl [vmem:[#allocation1] sm:$0xff pattern:$0x75316420]
      %v361 = vld.sshfl [vmem:[#allocation1 + $0x8] sm:$0xff pattern:$0x75316420]
      %v362 = vld.sshfl [vmem:[#allocation1 + $0x10] sm:$0xff pattern:$0x75316420]
      %363 = vrot.lane.b32.xlu0 %v360, 127
      %v364 = vpop.permute.xlu0 %363
      %365 = vrot.lane.b32.xlu0 %v361, 127
      %v366 = vpop.permute.xlu0 %365
      %367 = vrot.lane.b32.xlu0 %v362, 127
      %v368 = vpop.permute.xlu0 %367
      %vm369 = vcmask 1039360
      %v370 = vsel %vm369, %v364, %v366
      %v371 = vsel %vm369, %v366, %v368
      %vm372 = vcmask 31744
      %v374 = vsel %vm372, %v353, 0
      %v377 = vsel %vm372, %v354, 0
      %vm379 = vcmask 1043456
      %v380 = vsel %vm379, %v370, 0
      %v382 = vsel %vm379, %v371, 0
      %v384 = vsel %vm379, %v368, 0
      %386 = vmatpush.msra.mxu0 0.0
      %387 = vmatpush.msra.mxu0 0.0
      %388 = vmatpush.msra.mxu0 0.0
      %389 = vmatpush.msra.mxu0 0.0
      %390 = vmatpush.msra.mxu0 0.0
      %391 = vmatpush.msra.mxu0 0.0
      %392 = vmatpush.msra.mxu0 0.0
      %393 = vmatpush.msra.mxu0 0.0
      %394 = vmatpush.msra.mxu0 0.0
      %395 = vmatpush.msra.mxu0 0.0
      %396 = vmatpush.msra.mxu0 0.0
      %397 = vmatpush.msra.mxu0 0.0
      %398 = vmatpush.msra.mxu0 0.0
      %399 = vmatpush.msra.mxu0 0.0
      %400 = vmatpush.msra.mxu0 0.0
      %401 = vmatpush.msra.mxu0 %v380
      %402 = vmatmul.f32.gmra.mxu0 %v374
      %v403 = vpop.f32.mrf.mxu0
      %v404 = vadd.f32 0.0, %v403
      %405 = vmatmul.f32.gmra.mxu0 %v377
      %v406 = vpop.f32.mrf.mxu0
      %v407 = vadd.f32 0.0, %v406
      %408 = vdwg.mxu0
      %409 = vmatpush.msra.mxu0 0.0
      %410 = vmatpush.msra.mxu0 0.0
      %411 = vmatpush.msra.mxu0 0.0
      %412 = vmatpush.msra.mxu0 0.0
      %413 = vmatpush.msra.mxu0 0.0
      %414 = vmatpush.msra.mxu0 0.0
      %415 = vmatpush.msra.mxu0 0.0
      %416 = vmatpush.msra.mxu0 0.0
      %417 = vmatpush.msra.mxu0 0.0
      %418 = vmatpush.msra.mxu0 0.0
      %419 = vmatpush.msra.mxu0 0.0
      %420 = vmatpush.msra.mxu0 0.0
      %421 = vmatpush.msra.mxu0 0.0
      %422 = vmatpush.msra.mxu0 0.0
      %423 = vmatpush.msra.mxu0 0.0
      %424 = vmatpush.msra.mxu0 %v382
      %425 = vmatmul.f32.gmra.mxu0 %v374
      %v426 = vpop.f32.mrf.mxu0
      %v427 = vadd.f32 0.0, %v426
      %428 = vmatmul.f32.gmra.mxu0 %v377
      %v429 = vpop.f32.mrf.mxu0
      %v430 = vadd.f32 0.0, %v429
      %431 = vdwg.mxu0
      %432 = vmatpush.msra.mxu0 0.0
      %433 = vmatpush.msra.mxu0 0.0
      %434 = vmatpush.msra.mxu0 0.0
      %435 = vmatpush.msra.mxu0 0.0
      %436 = vmatpush.msra.mxu0 0.0
      %437 = vmatpush.msra.mxu0 0.0
      %438 = vmatpush.msra.mxu0 0.0
      %439 = vmatpush.msra.mxu0 0.0
      %440 = vmatpush.msra.mxu0 0.0
      %441 = vmatpush.msra.mxu0 0.0
      %442 = vmatpush.msra.mxu0 0.0
      %443 = vmatpush.msra.mxu0 0.0
      %444 = vmatpush.msra.mxu0 0.0
      %445 = vmatpush.msra.mxu0 0.0
      %446 = vmatpush.msra.mxu0 0.0
      %447 = vmatpush.msra.mxu0 %v384
      %448 = vmatmul.f32.gmra.mxu0 %v374
      %v449 = vpop.f32.mrf.mxu0
      %v450 = vadd.f32 0.0, %v449
      %451 = vmatmul.f32.gmra.mxu0 %v377
      %v452 = vpop.f32.mrf.mxu0
      %v453 = vadd.f32 0.0, %v452
      %454 = vdwg.mxu0
      %455 = vst [vmem:[#allocation1] ss:$2 sm:$0xff] %v348
      %s456 = scalar_lea.vmem [#allocation1], 16
      %457 = vst [vmem:[%s456] ss:$2 sm:$0xff] %v349
      %v458 = vld.sshfl [vmem:[#allocation1] sm:$0xff pattern:$0x75316420]
      %v459 = vld.sshfl [vmem:[#allocation1 + $0x8] sm:$0xff pattern:$0x75316420]
      %v460 = vld.sshfl [vmem:[#allocation1 + $0x10] sm:$0xff pattern:$0x75316420]
      %v462 = vsel %vm372, %v350, 0
      %v465 = vsel %vm372, %v351, 0
      %v467 = vsel %vm379, %v458, 0
      %v469 = vsel %vm379, %v459, 0
      %v471 = vsel %vm379, %v460, 0
      %473 = vmatpush.msra.mxu0 0.0
      %474 = vmatpush.msra.mxu0 0.0
      %475 = vmatpush.msra.mxu0 0.0
      %476 = vmatpush.msra.mxu0 0.0
      %477 = vmatpush.msra.mxu0 0.0
      %478 = vmatpush.msra.mxu0 0.0
      %479 = vmatpush.msra.mxu0 0.0
      %480 = vmatpush.msra.mxu0 0.0
      %481 = vmatpush.msra.mxu0 0.0
      %482 = vmatpush.msra.mxu0 0.0
      %483 = vmatpush.msra.mxu0 0.0
      %484 = vmatpush.msra.mxu0 0.0
      %485 = vmatpush.msra.mxu0 0.0
      %486 = vmatpush.msra.mxu0 0.0
      %487 = vmatpush.msra.mxu0 0.0
      %488 = vmatpush.msra.mxu0 %v467
      %489 = vmatmul.f32.gmra.mxu0 %v462
      %v490 = vpop.f32.mrf.mxu0
      %v491 = vadd.f32 %v404, %v490
      %492 = vmatmul.f32.gmra.mxu0 %v465
      %v493 = vpop.f32.mrf.mxu0
      %v494 = vadd.f32 %v407, %v493
      %495 = vdwg.mxu0
      %496 = vmatpush.msra.mxu0 0.0
      %497 = vmatpush.msra.mxu0 0.0
      %498 = vmatpush.msra.mxu0 0.0
      %499 = vmatpush.msra.mxu0 0.0
      %500 = vmatpush.msra.mxu0 0.0
      %501 = vmatpush.msra.mxu0 0.0
      %502 = vmatpush.msra.mxu0 0.0
      %503 = vmatpush.msra.mxu0 0.0
      %504 = vmatpush.msra.mxu0 0.0
      %505 = vmatpush.msra.mxu0 0.0
      %506 = vmatpush.msra.mxu0 0.0
      %507 = vmatpush.msra.mxu0 0.0
      %508 = vmatpush.msra.mxu0 0.0
      %509 = vmatpush.msra.mxu0 0.0
      %510 = vmatpush.msra.mxu0 0.0
      %511 = vmatpush.msra.mxu0 %v469
      %512 = vmatmul.f32.gmra.mxu0 %v462
      %v513 = vpop.f32.mrf.mxu0
      %v514 = vadd.f32 %v427, %v513
      %515 = vmatmul.f32.gmra.mxu0 %v465
      %v516 = vpop.f32.mrf.mxu0
      %v517 = vadd.f32 %v430, %v516
      %518 = vdwg.mxu0
      %519 = vmatpush.msra.mxu0 0.0
      %520 = vmatpush.msra.mxu0 0.0
      %521 = vmatpush.msra.mxu0 0.0
      %522 = vmatpush.msra.mxu0 0.0
      %523 = vmatpush.msra.mxu0 0.0
      %524 = vmatpush.msra.mxu0 0.0
      %525 = vmatpush.msra.mxu0 0.0
      %526 = vmatpush.msra.mxu0 0.0
      %527 = vmatpush.msra.mxu0 0.0
      %528 = vmatpush.msra.mxu0 0.0
      %529 = vmatpush.msra.mxu0 0.0
      %530 = vmatpush.msra.mxu0 0.0
      %531 = vmatpush.msra.mxu0 0.0
      %532 = vmatpush.msra.mxu0 0.0
      %533 = vmatpush.msra.mxu0 0.0
      %534 = vmatpush.msra.mxu0 %v471
      %535 = vmatmul.f32.gmra.mxu0 %v462
      %v536 = vpop.f32.mrf.mxu0
      %v537 = vadd.f32 %v450, %v536
      %538 = vmatmul.f32.gmra.mxu0 %v465
      %v539 = vpop.f32.mrf.mxu0
      %v540 = vadd.f32 %v453, %v539
      %541 = vdwg.mxu0
      %s542 = scalar_lea.vmem %s1, 32
      %v543 = vld [vmem:[%s542] sm:$0xff]
      %v544 = vld [vmem:[%s542 + $0x8] sm:$0xff]
      %545 = vst [vmem:[#allocation1] ss:$2 sm:$0xff] %v348
      %s546 = scalar_lea.vmem [#allocation1], 16
      %547 = vst [vmem:[%s546] ss:$2 sm:$0xff] %v349
      %v548 = vld.sshfl [vmem:[#allocation1] sm:$0xff pattern:$0x75316420]
      %v549 = vld.sshfl [vmem:[#allocation1 + $0x8] sm:$0xff pattern:$0x75316420]
      %v550 = vld.sshfl [vmem:[#allocation1 + $0x10] sm:$0xff pattern:$0x75316420]
      %551 = vrot.lane.b32.xlu0 %v548, 126
      %v552 = vpop.permute.xlu0 %551
      %553 = vrot.lane.b32.xlu0 %v549, 126
      %v554 = vpop.permute.xlu0 %553
      %555 = vrot.lane.b32.xlu0 %v550, 126
      %v556 = vpop.permute.xlu0 %555
      %vm557 = vcmask 1031168
      %v558 = vsel %vm557, %v552, %v554
      %v559 = vsel %vm557, %v554, %v556
      %v561 = vsel %vm372, %v543, 0
      %v564 = vsel %vm372, %v544, 0
      %v566 = vsel %vm379, %v558, 0
      %v568 = vsel %vm379, %v559, 0
      %v570 = vsel %vm379, %v556, 0
      %572 = vmatpush.msra.mxu0 0.0
      %573 = vmatpush.msra.mxu0 0.0
      %574 = vmatpush.msra.mxu0 0.0
      %575 = vmatpush.msra.mxu0 0.0
      %576 = vmatpush.msra.mxu0 0.0
      %577 = vmatpush.msra.mxu0 0.0
      %578 = vmatpush.msra.mxu0 0.0
      %579 = vmatpush.msra.mxu0 0.0
      %580 = vmatpush.msra.mxu0 0.0
      %581 = vmatpush.msra.mxu0 0.0
      %582 = vmatpush.msra.mxu0 0.0
      %583 = vmatpush.msra.mxu0 0.0
      %584 = vmatpush.msra.mxu0 0.0
      %585 = vmatpush.msra.mxu0 0.0
      %586 = vmatpush.msra.mxu0 0.0
      %587 = vmatpush.msra.mxu0 %v566
      %588 = vmatmul.f32.gmra.mxu0 %v561
      %v589 = vpop.f32.mrf.mxu0
      %v590 = vadd.f32 0.0, %v589
      %591 = vmatmul.f32.gmra.mxu0 %v564
      %v592 = vpop.f32.mrf.mxu0
      %v593 = vadd.f32 0.0, %v592
      %594 = vdwg.mxu0
      %595 = vmatpush.msra.mxu0 0.0
      %596 = vmatpush.msra.mxu0 0.0
      %597 = vmatpush.msra.mxu0 0.0
      %598 = vmatpush.msra.mxu0 0.0
      %599 = vmatpush.msra.mxu0 0.0
      %600 = vmatpush.msra.mxu0 0.0
      %601 = vmatpush.msra.mxu0 0.0
      %602 = vmatpush.msra.mxu0 0.0
      %603 = vmatpush.msra.mxu0 0.0
      %604 = vmatpush.msra.mxu0 0.0
      %605 = vmatpush.msra.mxu0 0.0
      %606 = vmatpush.msra.mxu0 0.0
      %607 = vmatpush.msra.mxu0 0.0
      %608 = vmatpush.msra.mxu0 0.0
      %609 = vmatpush.msra.mxu0 0.0
      %610 = vmatpush.msra.mxu0 %v568
      %611 = vmatmul.f32.gmra.mxu0 %v561
      %v612 = vpop.f32.mrf.mxu0
      %v613 = vadd.f32 0.0, %v612
      %614 = vmatmul.f32.gmra.mxu0 %v564
      %v615 = vpop.f32.mrf.mxu0
      %v616 = vadd.f32 0.0, %v615
      %617 = vdwg.mxu0
      %618 = vmatpush.msra.mxu0 0.0
      %619 = vmatpush.msra.mxu0 0.0
      %620 = vmatpush.msra.mxu0 0.0
      %621 = vmatpush.msra.mxu0 0.0
      %622 = vmatpush.msra.mxu0 0.0
      %623 = vmatpush.msra.mxu0 0.0
      %624 = vmatpush.msra.mxu0 0.0
      %625 = vmatpush.msra.mxu0 0.0
      %626 = vmatpush.msra.mxu0 0.0
      %627 = vmatpush.msra.mxu0 0.0
      %628 = vmatpush.msra.mxu0 0.0
      %629 = vmatpush.msra.mxu0 0.0
      %630 = vmatpush.msra.mxu0 0.0
      %631 = vmatpush.msra.mxu0 0.0
      %632 = vmatpush.msra.mxu0 0.0
      %633 = vmatpush.msra.mxu0 %v570
      %634 = vmatmul.f32.gmra.mxu0 %v561
      %v635 = vpop.f32.mrf.mxu0
      %v636 = vadd.f32 0.0, %v635
      %637 = vmatmul.f32.gmra.mxu0 %v564
      %v638 = vpop.f32.mrf.mxu0
      %v639 = vadd.f32 0.0, %v638
      %640 = vdwg.mxu0
      %v641 = vadd.f32 %v491, %v590
      %v642 = vadd.f32 %v514, %v613
      %v643 = vadd.f32 %v537, %v636
      %v644 = vadd.f32 %v494, %v593
      %v645 = vadd.f32 %v517, %v616
      %v646 = vadd.f32 %v540, %v639
      %s647 = scalar_lea.vmem %s1, 48
      %v648 = vld [vmem:[%s647] sm:$0xff]
      %v649 = vld [vmem:[%s647 + $0x8] sm:$0xff]
      %650 = vst [vmem:[#allocation1] ss:$2 sm:$0xff] %v348
      %s651 = scalar_lea.vmem [#allocation1], 16
      %652 = vst [vmem:[%s651] ss:$2 sm:$0xff] %v349
      %v653 = vld.sshfl [vmem:[#allocation1] sm:$0xff pattern:$0x75316420]
      %v654 = vld.sshfl [vmem:[#allocation1 + $0x8] sm:$0xff pattern:$0x75316420]
      %v655 = vld.sshfl [vmem:[#allocation1 + $0x10] sm:$0xff pattern:$0x75316420]
      %656 = vrot.lane.b32.xlu0 %v653, 110
      %v657 = vpop.permute.xlu0 %656
      %658 = vrot.lane.b32.xlu0 %v654, 110
      %v659 = vpop.permute.xlu0 %658
      %660 = vrot.lane.b32.xlu0 %v655, 110
      %v661 = vpop.permute.xlu0 %660
      %vm662 = vcmask 900096
      %v663 = vsel %vm662, %v657, %v659
      %v664 = vsel %vm662, %v659, %v661
      %v666 = vsel %vm372, %v648, 0
      %v669 = vsel %vm372, %v649, 0
      %v671 = vsel %vm379, %v663, 0
      %v673 = vsel %vm379, %v664, 0
      %v675 = vsel %vm379, %v661, 0
      %677 = vmatpush.msra.mxu0 0.0
      %678 = vmatpush.msra.mxu0 0.0
      %679 = vmatpush.msra.mxu0 0.0
      %680 = vmatpush.msra.mxu0 0.0
      %681 = vmatpush.msra.mxu0 0.0
      %682 = vmatpush.msra.mxu0 0.0
      %683 = vmatpush.msra.mxu0 0.0
      %684 = vmatpush.msra.mxu0 0.0
      %685 = vmatpush.msra.mxu0 0.0
      %686 = vmatpush.msra.mxu0 0.0
      %687 = vmatpush.msra.mxu0 0.0
      %688 = vmatpush.msra.mxu0 0.0
      %689 = vmatpush.msra.mxu0 0.0
      %690 = vmatpush.msra.mxu0 0.0
      %691 = vmatpush.msra.mxu0 0.0
      %692 = vmatpush.msra.mxu0 %v671
      %693 = vmatmul.f32.gmra.mxu0 %v666
      %v694 = vpop.f32.mrf.mxu0
      %v695 = vadd.f32 0.0, %v694
      %696 = vmatmul.f32.gmra.mxu0 %v669
      %v697 = vpop.f32.mrf.mxu0
      %v698 = vadd.f32 0.0, %v697
      %699 = vdwg.mxu0
      %700 = vmatpush.msra.mxu0 0.0
      %701 = vmatpush.msra.mxu0 0.0
      %702 = vmatpush.msra.mxu0 0.0
      %703 = vmatpush.msra.mxu0 0.0
      %704 = vmatpush.msra.mxu0 0.0
      %705 = vmatpush.msra.mxu0 0.0
      %706 = vmatpush.msra.mxu0 0.0
      %707 = vmatpush.msra.mxu0 0.0
      %708 = vmatpush.msra.mxu0 0.0
      %709 = vmatpush.msra.mxu0 0.0
      %710 = vmatpush.msra.mxu0 0.0
      %711 = vmatpush.msra.mxu0 0.0
      %712 = vmatpush.msra.mxu0 0.0
      %713 = vmatpush.msra.mxu0 0.0
      %714 = vmatpush.msra.mxu0 0.0
      %715 = vmatpush.msra.mxu0 %v673
      %716 = vmatmul.f32.gmra.mxu0 %v666
      %v717 = vpop.f32.mrf.mxu0
      %v718 = vadd.f32 0.0, %v717
      %719 = vmatmul.f32.gmra.mxu0 %v669
      %v720 = vpop.f32.mrf.mxu0
      %v721 = vadd.f32 0.0, %v720
      %722 = vdwg.mxu0
      %723 = vmatpush.msra.mxu0 0.0
      %724 = vmatpush.msra.mxu0 0.0
      %725 = vmatpush.msra.mxu0 0.0
      %726 = vmatpush.msra.mxu0 0.0
      %727 = vmatpush.msra.mxu0 0.0
      %728 = vmatpush.msra.mxu0 0.0
      %729 = vmatpush.msra.mxu0 0.0
      %730 = vmatpush.msra.mxu0 0.0
      %731 = vmatpush.msra.mxu0 0.0
      %732 = vmatpush.msra.mxu0 0.0
      %733 = vmatpush.msra.mxu0 0.0
      %734 = vmatpush.msra.mxu0 0.0
      %735 = vmatpush.msra.mxu0 0.0
      %736 = vmatpush.msra.mxu0 0.0
      %737 = vmatpush.msra.mxu0 0.0
      %738 = vmatpush.msra.mxu0 %v675
      %739 = vmatmul.f32.gmra.mxu0 %v666
      %v740 = vpop.f32.mrf.mxu0
      %v741 = vadd.f32 0.0, %v740
      %742 = vmatmul.f32.gmra.mxu0 %v669
      %v743 = vpop.f32.mrf.mxu0
      %v744 = vadd.f32 0.0, %v743
      %745 = vdwg.mxu0
      %v746 = vadd.f32 %v641, %v695
      %v747 = vadd.f32 %v642, %v718
      %v748 = vadd.f32 %v643, %v741
      %v749 = vadd.f32 %v644, %v698
      %v750 = vadd.f32 %v645, %v721
      %v751 = vadd.f32 %v646, %v744
      %s752 = scalar_lea.vmem %s1, 64
      %v753 = vld [vmem:[%s752] sm:$0xff]
      %v754 = vld [vmem:[%s752 + $0x8] sm:$0xff]
      %755 = vst [vmem:[#allocation1] ss:$2 sm:$0xff] %v348
      %s756 = scalar_lea.vmem [#allocation1], 16
      %757 = vst [vmem:[%s756] ss:$2 sm:$0xff] %v349
      %v758 = vld.sshfl [vmem:[#allocation1] sm:$0xff pattern:$0x75316420]
      %v759 = vld.sshfl [vmem:[#allocation1 + $0x8] sm:$0xff pattern:$0x75316420]
      %v760 = vld.sshfl [vmem:[#allocation1 + $0x10] sm:$0xff pattern:$0x75316420]
      %761 = vrot.lane.b32.xlu0 %v758, 109
      %v762 = vpop.permute.xlu0 %761
      %763 = vrot.lane.b32.xlu0 %v759, 109
      %v764 = vpop.permute.xlu0 %763
      %765 = vrot.lane.b32.xlu0 %v760, 109
      %v766 = vpop.permute.xlu0 %765
      %vm767 = vcmask 891904
      %v768 = vsel %vm767, %v762, %v764
      %v769 = vsel %vm767, %v764, %v766
      %v771 = vsel %vm372, %v753, 0
      %v774 = vsel %vm372, %v754, 0
      %v776 = vsel %vm379, %v768, 0
      %v778 = vsel %vm379, %v769, 0
      %v780 = vsel %vm379, %v766, 0
      %782 = vmatpush.msra.mxu0 0.0
      %783 = vmatpush.msra.mxu0 0.0
      %784 = vmatpush.msra.mxu0 0.0
      %785 = vmatpush.msra.mxu0 0.0
      %786 = vmatpush.msra.mxu0 0.0
      %787 = vmatpush.msra.mxu0 0.0
      %788 = vmatpush.msra.mxu0 0.0
      %789 = vmatpush.msra.mxu0 0.0
      %790 = vmatpush.msra.mxu0 0.0
      %791 = vmatpush.msra.mxu0 0.0
      %792 = vmatpush.msra.mxu0 0.0
      %793 = vmatpush.msra.mxu0 0.0
      %794 = vmatpush.msra.mxu0 0.0
      %795 = vmatpush.msra.mxu0 0.0
      %796 = vmatpush.msra.mxu0 0.0
      %797 = vmatpush.msra.mxu0 %v776
      %798 = vmatmul.f32.gmra.mxu0 %v771
      %v799 = vpop.f32.mrf.mxu0
      %v800 = vadd.f32 0.0, %v799
      %801 = vmatmul.f32.gmra.mxu0 %v774
      %v802 = vpop.f32.mrf.mxu0
      %v803 = vadd.f32 0.0, %v802
      %804 = vdwg.mxu0
      %805 = vmatpush.msra.mxu0 0.0
      %806 = vmatpush.msra.mxu0 0.0
      %807 = vmatpush.msra.mxu0 0.0
      %808 = vmatpush.msra.mxu0 0.0
      %809 = vmatpush.msra.mxu0 0.0
      %810 = vmatpush.msra.mxu0 0.0
      %811 = vmatpush.msra.mxu0 0.0
      %812 = vmatpush.msra.mxu0 0.0
      %813 = vmatpush.msra.mxu0 0.0
      %814 = vmatpush.msra.mxu0 0.0
      %815 = vmatpush.msra.mxu0 0.0
      %816 = vmatpush.msra.mxu0 0.0
      %817 = vmatpush.msra.mxu0 0.0
      %818 = vmatpush.msra.mxu0 0.0
      %819 = vmatpush.msra.mxu0 0.0
      %820 = vmatpush.msra.mxu0 %v778
      %821 = vmatmul.f32.gmra.mxu0 %v771
      %v822 = vpop.f32.mrf.mxu0
      %v823 = vadd.f32 0.0, %v822
      %824 = vmatmul.f32.gmra.mxu0 %v774
      %v825 = vpop.f32.mrf.mxu0
      %v826 = vadd.f32 0.0, %v825
      %827 = vdwg.mxu0
      %828 = vmatpush.msra.mxu0 0.0
      %829 = vmatpush.msra.mxu0 0.0
      %830 = vmatpush.msra.mxu0 0.0
      %831 = vmatpush.msra.mxu0 0.0
      %832 = vmatpush.msra.mxu0 0.0
      %833 = vmatpush.msra.mxu0 0.0
      %834 = vmatpush.msra.mxu0 0.0
      %835 = vmatpush.msra.mxu0 0.0
      %836 = vmatpush.msra.mxu0 0.0
      %837 = vmatpush.msra.mxu0 0.0
      %838 = vmatpush.msra.mxu0 0.0
      %839 = vmatpush.msra.mxu0 0.0
      %840 = vmatpush.msra.mxu0 0.0
      %841 = vmatpush.msra.mxu0 0.0
      %842 = vmatpush.msra.mxu0 0.0
      %843 = vmatpush.msra.mxu0 %v780
      %844 = vmatmul.f32.gmra.mxu0 %v771
      %v845 = vpop.f32.mrf.mxu0
      %v846 = vadd.f32 0.0, %v845
      %847 = vmatmul.f32.gmra.mxu0 %v774
      %v848 = vpop.f32.mrf.mxu0
      %v849 = vadd.f32 0.0, %v848
      %850 = vdwg.mxu0
      %v851 = vadd.f32 %v746, %v800
      %v852 = vadd.f32 %v747, %v823
      %v853 = vadd.f32 %v748, %v846
      %v854 = vadd.f32 %v749, %v803
      %v855 = vadd.f32 %v750, %v826
      %v856 = vadd.f32 %v751, %v849
      %s857 = scalar_lea.vmem %s1, 80
      %v858 = vld [vmem:[%s857] sm:$0xff]
      %v859 = vld [vmem:[%s857 + $0x8] sm:$0xff]
      %860 = vst [vmem:[#allocation1] ss:$2 sm:$0xff] %v348
      %s861 = scalar_lea.vmem [#allocation1], 16
      %862 = vst [vmem:[%s861] ss:$2 sm:$0xff] %v349
      %v863 = vld.sshfl [vmem:[#allocation1] sm:$0xff pattern:$0x75316420]
      %v864 = vld.sshfl [vmem:[#allocation1 + $0x8] sm:$0xff pattern:$0x75316420]
      %v865 = vld.sshfl [vmem:[#allocation1 + $0x10] sm:$0xff pattern:$0x75316420]
      %866 = vrot.lane.b32.xlu0 %v863, 108
      %v867 = vpop.permute.xlu0 %866
      %868 = vrot.lane.b32.xlu0 %v864, 108
      %v869 = vpop.permute.xlu0 %868
      %870 = vrot.lane.b32.xlu0 %v865, 108
      %v871 = vpop.permute.xlu0 %870
      %vm872 = vcmask 883712
      %v873 = vsel %vm872, %v867, %v869
      %v874 = vsel %vm872, %v869, %v871
      %v876 = vsel %vm372, %v858, 0
      %v879 = vsel %vm372, %v859, 0
      %v881 = vsel %vm379, %v873, 0
      %v883 = vsel %vm379, %v874, 0
      %v885 = vsel %vm379, %v871, 0
      %887 = vmatpush.msra.mxu0 0.0
      %888 = vmatpush.msra.mxu0 0.0
      %889 = vmatpush.msra.mxu0 0.0
      %890 = vmatpush.msra.mxu0 0.0
      %891 = vmatpush.msra.mxu0 0.0
      %892 = vmatpush.msra.mxu0 0.0
      %893 = vmatpush.msra.mxu0 0.0
      %894 = vmatpush.msra.mxu0 0.0
      %895 = vmatpush.msra.mxu0 0.0
      %896 = vmatpush.msra.mxu0 0.0
      %897 = vmatpush.msra.mxu0 0.0
      %898 = vmatpush.msra.mxu0 0.0
      %899 = vmatpush.msra.mxu0 0.0
      %900 = vmatpush.msra.mxu0 0.0
      %901 = vmatpush.msra.mxu0 0.0
      %902 = vmatpush.msra.mxu0 %v881
      %903 = vmatmul.f32.gmra.mxu0 %v876
      %v904 = vpop.f32.mrf.mxu0
      %v905 = vadd.f32 0.0, %v904
      %906 = vmatmul.f32.gmra.mxu0 %v879
      %v907 = vpop.f32.mrf.mxu0
      %v908 = vadd.f32 0.0, %v907
      %909 = vdwg.mxu0
      %910 = vmatpush.msra.mxu0 0.0
      %911 = vmatpush.msra.mxu0 0.0
      %912 = vmatpush.msra.mxu0 0.0
      %913 = vmatpush.msra.mxu0 0.0
      %914 = vmatpush.msra.mxu0 0.0
      %915 = vmatpush.msra.mxu0 0.0
      %916 = vmatpush.msra.mxu0 0.0
      %917 = vmatpush.msra.mxu0 0.0
      %918 = vmatpush.msra.mxu0 0.0
      %919 = vmatpush.msra.mxu0 0.0
      %920 = vmatpush.msra.mxu0 0.0
      %921 = vmatpush.msra.mxu0 0.0
      %922 = vmatpush.msra.mxu0 0.0
      %923 = vmatpush.msra.mxu0 0.0
      %924 = vmatpush.msra.mxu0 0.0
      %925 = vmatpush.msra.mxu0 %v883
      %926 = vmatmul.f32.gmra.mxu0 %v876
      %v927 = vpop.f32.mrf.mxu0
      %v928 = vadd.f32 0.0, %v927
      %929 = vmatmul.f32.gmra.mxu0 %v879
      %v930 = vpop.f32.mrf.mxu0
      %v931 = vadd.f32 0.0, %v930
      %932 = vdwg.mxu0
      %933 = vmatpush.msra.mxu0 0.0
      %934 = vmatpush.msra.mxu0 0.0
      %935 = vmatpush.msra.mxu0 0.0
      %936 = vmatpush.msra.mxu0 0.0
      %937 = vmatpush.msra.mxu0 0.0
      %938 = vmatpush.msra.mxu0 0.0
      %939 = vmatpush.msra.mxu0 0.0
      %940 = vmatpush.msra.mxu0 0.0
      %941 = vmatpush.msra.mxu0 0.0
      %942 = vmatpush.msra.mxu0 0.0
      %943 = vmatpush.msra.mxu0 0.0
      %944 = vmatpush.msra.mxu0 0.0
      %945 = vmatpush.msra.mxu0 0.0
      %946 = vmatpush.msra.mxu0 0.0
      %947 = vmatpush.msra.mxu0 0.0
      %948 = vmatpush.msra.mxu0 %v885
      %949 = vmatmul.f32.gmra.mxu0 %v876
      %v950 = vpop.f32.mrf.mxu0
      %v951 = vadd.f32 0.0, %v950
      %952 = vmatmul.f32.gmra.mxu0 %v879
      %v953 = vpop.f32.mrf.mxu0
      %v954 = vadd.f32 0.0, %v953
      %955 = vdwg.mxu0
      %v956 = vadd.f32 %v851, %v905
      %v957 = vadd.f32 %v852, %v928
      %v958 = vadd.f32 %v853, %v951
      %v959 = vadd.f32 %v854, %v908
      %v960 = vadd.f32 %v855, %v931
      %v961 = vadd.f32 %v856, %v954
      %s962 = scalar_lea.vmem %s1, 96
      %v963 = vld [vmem:[%s962] sm:$0xff]
      %v964 = vld [vmem:[%s962 + $0x8] sm:$0xff]
      %965 = vst [vmem:[#allocation1] ss:$2 sm:$0xff] %v348
      %s966 = scalar_lea.vmem [#allocation1], 16
      %967 = vst [vmem:[%s966] ss:$2 sm:$0xff] %v349
      %v968 = vld.sshfl [vmem:[#allocation1] sm:$0xff pattern:$0x75316420]
      %v969 = vld.sshfl [vmem:[#allocation1 + $0x8] sm:$0xff pattern:$0x75316420]
      %v970 = vld.sshfl [vmem:[#allocation1 + $0x10] sm:$0xff pattern:$0x75316420]
      %971 = vrot.lane.b32.xlu0 %v968, 92
      %v972 = vpop.permute.xlu0 %971
      %973 = vrot.lane.b32.xlu0 %v969, 92
      %v974 = vpop.permute.xlu0 %973
      %975 = vrot.lane.b32.xlu0 %v970, 92
      %v976 = vpop.permute.xlu0 %975
      %vm977 = vcmask 752640
      %v978 = vsel %vm977, %v972, %v974
      %v979 = vsel %vm977, %v974, %v976
      %v981 = vsel %vm372, %v963, 0
      %v984 = vsel %vm372, %v964, 0
      %v986 = vsel %vm379, %v978, 0
      %v988 = vsel %vm379, %v979, 0
      %v990 = vsel %vm379, %v976, 0
      %992 = vmatpush.msra.mxu0 0.0
      %993 = vmatpush.msra.mxu0 0.0
      %994 = vmatpush.msra.mxu0 0.0
      %995 = vmatpush.msra.mxu0 0.0
      %996 = vmatpush.msra.mxu0 0.0
      %997 = vmatpush.msra.mxu0 0.0
      %998 = vmatpush.msra.mxu0 0.0
      %999 = vmatpush.msra.mxu0 0.0
      %1000 = vmatpush.msra.mxu0 0.0
      %1001 = vmatpush.msra.mxu0 0.0
      %1002 = vmatpush.msra.mxu0 0.0
      %1003 = vmatpush.msra.mxu0 0.0
      %1004 = vmatpush.msra.mxu0 0.0
      %1005 = vmatpush.msra.mxu0 0.0
      %1006 = vmatpush.msra.mxu0 0.0
      %1007 = vmatpush.msra.mxu0 %v986
      %1008 = vmatmul.f32.gmra.mxu0 %v981
      %v1009 = vpop.f32.mrf.mxu0
      %v1010 = vadd.f32 0.0, %v1009
      %1011 = vmatmul.f32.gmra.mxu0 %v984
      %v1012 = vpop.f32.mrf.mxu0
      %v1013 = vadd.f32 0.0, %v1012
      %1014 = vdwg.mxu0
      %1015 = vmatpush.msra.mxu0 0.0
      %1016 = vmatpush.msra.mxu0 0.0
      %1017 = vmatpush.msra.mxu0 0.0
      %1018 = vmatpush.msra.mxu0 0.0
      %1019 = vmatpush.msra.mxu0 0.0
      %1020 = vmatpush.msra.mxu0 0.0
      %1021 = vmatpush.msra.mxu0 0.0
      %1022 = vmatpush.msra.mxu0 0.0
      %1023 = vmatpush.msra.mxu0 0.0
      %1024 = vmatpush.msra.mxu0 0.0
      %1025 = vmatpush.msra.mxu0 0.0
      %1026 = vmatpush.msra.mxu0 0.0
      %1027 = vmatpush.msra.mxu0 0.0
      %1028 = vmatpush.msra.mxu0 0.0
      %1029 = vmatpush.msra.mxu0 0.0
      %1030 = vmatpush.msra.mxu0 %v988
      %1031 = vmatmul.f32.gmra.mxu0 %v981
      %v1032 = vpop.f32.mrf.mxu0
      %v1033 = vadd.f32 0.0, %v1032
      %1034 = vmatmul.f32.gmra.mxu0 %v984
      %v1035 = vpop.f32.mrf.mxu0
      %v1036 = vadd.f32 0.0, %v1035
      %1037 = vdwg.mxu0
      %1038 = vmatpush.msra.mxu0 0.0
      %1039 = vmatpush.msra.mxu0 0.0
      %1040 = vmatpush.msra.mxu0 0.0
      %1041 = vmatpush.msra.mxu0 0.0
      %1042 = vmatpush.msra.mxu0 0.0
      %1043 = vmatpush.msra.mxu0 0.0
      %1044 = vmatpush.msra.mxu0 0.0
      %1045 = vmatpush.msra.mxu0 0.0
      %1046 = vmatpush.msra.mxu0 0.0
      %1047 = vmatpush.msra.mxu0 0.0
      %1048 = vmatpush.msra.mxu0 0.0
      %1049 = vmatpush.msra.mxu0 0.0
      %1050 = vmatpush.msra.mxu0 0.0
      %1051 = vmatpush.msra.mxu0 0.0
      %1052 = vmatpush.msra.mxu0 0.0
      %1053 = vmatpush.msra.mxu0 %v990
      %1054 = vmatmul.f32.gmra.mxu0 %v981
      %v1055 = vpop.f32.mrf.mxu0
      %v1056 = vadd.f32 0.0, %v1055
      %1057 = vmatmul.f32.gmra.mxu0 %v984
      %v1058 = vpop.f32.mrf.mxu0
      %v1059 = vadd.f32 0.0, %v1058
      %1060 = vdwg.mxu0
      %v1061 = vadd.f32 %v956, %v1010
      %v1062 = vadd.f32 %v957, %v1033
      %v1063 = vadd.f32 %v958, %v1056
      %v1064 = vadd.f32 %v959, %v1013
      %v1065 = vadd.f32 %v960, %v1036
      %v1066 = vadd.f32 %v961, %v1059
      %s1067 = scalar_lea.vmem %s1, 112
      %v1068 = vld [vmem:[%s1067] sm:$0xff]
      %v1069 = vld [vmem:[%s1067 + $0x8] sm:$0xff]
      %1070 = vst [vmem:[#allocation1] ss:$2 sm:$0xff] %v348
      %s1071 = scalar_lea.vmem [#allocation1], 16
      %1072 = vst [vmem:[%s1071] ss:$2 sm:$0xff] %v349
      %v1073 = vld.sshfl [vmem:[#allocation1] sm:$0xff pattern:$0x75316420]
      %v1074 = vld.sshfl [vmem:[#allocation1 + $0x8] sm:$0xff pattern:$0x75316420]
      %v1075 = vld.sshfl [vmem:[#allocation1 + $0x10] sm:$0xff pattern:$0x75316420]
      %1076 = vrot.lane.b32.xlu0 %v1073, 91
      %v1077 = vpop.permute.xlu0 %1076
      %1078 = vrot.lane.b32.xlu0 %v1074, 91
      %v1079 = vpop.permute.xlu0 %1078
      %1080 = vrot.lane.b32.xlu0 %v1075, 91
      %v1081 = vpop.permute.xlu0 %1080
      %vm1082 = vcmask 744448
      %v1083 = vsel %vm1082, %v1077, %v1079
      %v1084 = vsel %vm1082, %v1079, %v1081
      %v1086 = vsel %vm372, %v1068, 0
      %v1089 = vsel %vm372, %v1069, 0
      %v1091 = vsel %vm379, %v1083, 0
      %v1093 = vsel %vm379, %v1084, 0
      %v1095 = vsel %vm379, %v1081, 0
      %1097 = vmatpush.msra.mxu0 0.0
      %1098 = vmatpush.msra.mxu0 0.0
      %1099 = vmatpush.msra.mxu0 0.0
      %1100 = vmatpush.msra.mxu0 0.0
      %1101 = vmatpush.msra.mxu0 0.0
      %1102 = vmatpush.msra.mxu0 0.0
      %1103 = vmatpush.msra.mxu0 0.0
      %1104 = vmatpush.msra.mxu0 0.0
      %1105 = vmatpush.msra.mxu0 0.0
      %1106 = vmatpush.msra.mxu0 0.0
      %1107 = vmatpush.msra.mxu0 0.0
      %1108 = vmatpush.msra.mxu0 0.0
      %1109 = vmatpush.msra.mxu0 0.0
      %1110 = vmatpush.msra.mxu0 0.0
      %1111 = vmatpush.msra.mxu0 0.0
      %1112 = vmatpush.msra.mxu0 %v1091
      %1113 = vmatmul.f32.gmra.mxu0 %v1086
      %v1114 = vpop.f32.mrf.mxu0
      %v1115 = vadd.f32 0.0, %v1114
      %1116 = vmatmul.f32.gmra.mxu0 %v1089
      %v1117 = vpop.f32.mrf.mxu0
      %v1118 = vadd.f32 0.0, %v1117
      %1119 = vdwg.mxu0
      %1120 = vmatpush.msra.mxu0 0.0
      %1121 = vmatpush.msra.mxu0 0.0
      %1122 = vmatpush.msra.mxu0 0.0
      %1123 = vmatpush.msra.mxu0 0.0
      %1124 = vmatpush.msra.mxu0 0.0
      %1125 = vmatpush.msra.mxu0 0.0
      %1126 = vmatpush.msra.mxu0 0.0
      %1127 = vmatpush.msra.mxu0 0.0
      %1128 = vmatpush.msra.mxu0 0.0
      %1129 = vmatpush.msra.mxu0 0.0
      %1130 = vmatpush.msra.mxu0 0.0
      %1131 = vmatpush.msra.mxu0 0.0
      %1132 = vmatpush.msra.mxu0 0.0
      %1133 = vmatpush.msra.mxu0 0.0
      %1134 = vmatpush.msra.mxu0 0.0
      %1135 = vmatpush.msra.mxu0 %v1093
      %1136 = vmatmul.f32.gmra.mxu0 %v1086
      %v1137 = vpop.f32.mrf.mxu0
      %v1138 = vadd.f32 0.0, %v1137
      %1139 = vmatmul.f32.gmra.mxu0 %v1089
      %v1140 = vpop.f32.mrf.mxu0
      %v1141 = vadd.f32 0.0, %v1140
      %1142 = vdwg.mxu0
      %1143 = vmatpush.msra.mxu0 0.0
      %1144 = vmatpush.msra.mxu0 0.0
      %1145 = vmatpush.msra.mxu0 0.0
      %1146 = vmatpush.msra.mxu0 0.0
      %1147 = vmatpush.msra.mxu0 0.0
      %1148 = vmatpush.msra.mxu0 0.0
      %1149 = vmatpush.msra.mxu0 0.0
      %1150 = vmatpush.msra.mxu0 0.0
      %1151 = vmatpush.msra.mxu0 0.0
      %1152 = vmatpush.msra.mxu0 0.0
      %1153 = vmatpush.msra.mxu0 0.0
      %1154 = vmatpush.msra.mxu0 0.0
      %1155 = vmatpush.msra.mxu0 0.0
      %1156 = vmatpush.msra.mxu0 0.0
      %1157 = vmatpush.msra.mxu0 0.0
      %1158 = vmatpush.msra.mxu0 %v1095
      %1159 = vmatmul.f32.gmra.mxu0 %v1086
      %v1160 = vpop.f32.mrf.mxu0
      %v1161 = vadd.f32 0.0, %v1160
      %1162 = vmatmul.f32.gmra.mxu0 %v1089
      %v1163 = vpop.f32.mrf.mxu0
      %v1164 = vadd.f32 0.0, %v1163
      %1165 = vdwg.mxu0
      %v1166 = vadd.f32 %v1061, %v1115
      %v1167 = vadd.f32 %v1062, %v1138
      %v1168 = vadd.f32 %v1063, %v1161
      %v1169 = vadd.f32 %v1064, %v1118
      %v1170 = vadd.f32 %v1065, %v1141
      %v1171 = vadd.f32 %v1066, %v1164
      %s1172 = scalar_lea.vmem %s1, 128
      %v1173 = vld [vmem:[%s1172] sm:$0xff]
      %v1174 = vld [vmem:[%s1172 + $0x8] sm:$0xff]
      %1175 = vst [vmem:[#allocation1] ss:$2 sm:$0xff] %v348
      %s1176 = scalar_lea.vmem [#allocation1], 16
      %1177 = vst [vmem:[%s1176] ss:$2 sm:$0xff] %v349
      %v1178 = vld.sshfl [vmem:[#allocation1] sm:$0xff pattern:$0x75316420]
      %v1179 = vld.sshfl [vmem:[#allocation1 + $0x8] sm:$0xff pattern:$0x75316420]
      %v1180 = vld.sshfl [vmem:[#allocation1 + $0x10] sm:$0xff pattern:$0x75316420]
      %1181 = vrot.lane.b32.xlu0 %v1178, 90
      %v1182 = vpop.permute.xlu0 %1181
      %1183 = vrot.lane.b32.xlu0 %v1179, 90
      %v1184 = vpop.permute.xlu0 %1183
      %1185 = vrot.lane.b32.xlu0 %v1180, 90
      %v1186 = vpop.permute.xlu0 %1185
      %vm1187 = vcmask 736256
      %v1188 = vsel %vm1187, %v1182, %v1184
      %v1189 = vsel %vm1187, %v1184, %v1186
      %v1191 = vsel %vm372, %v1173, 0
      %v1194 = vsel %vm372, %v1174, 0
      %v1196 = vsel %vm379, %v1188, 0
      %v1198 = vsel %vm379, %v1189, 0
      %v1200 = vsel %vm379, %v1186, 0
      %1202 = vmatpush.msra.mxu0 0.0
      %1203 = vmatpush.msra.mxu0 0.0
      %1204 = vmatpush.msra.mxu0 0.0
      %1205 = vmatpush.msra.mxu0 0.0
      %1206 = vmatpush.msra.mxu0 0.0
      %1207 = vmatpush.msra.mxu0 0.0
      %1208 = vmatpush.msra.mxu0 0.0
      %1209 = vmatpush.msra.mxu0 0.0
      %1210 = vmatpush.msra.mxu0 0.0
      %1211 = vmatpush.msra.mxu0 0.0
      %1212 = vmatpush.msra.mxu0 0.0
      %1213 = vmatpush.msra.mxu0 0.0
      %1214 = vmatpush.msra.mxu0 0.0
      %1215 = vmatpush.msra.mxu0 0.0
      %1216 = vmatpush.msra.mxu0 0.0
      %1217 = vmatpush.msra.mxu0 %v1196
      %1218 = vmatmul.f32.gmra.mxu0 %v1191
      %v1219 = vpop.f32.mrf.mxu0
      %v1220 = vadd.f32 0.0, %v1219
      %1221 = vmatmul.f32.gmra.mxu0 %v1194
      %v1222 = vpop.f32.mrf.mxu0
      %v1223 = vadd.f32 0.0, %v1222
      %1224 = vdwg.mxu0
      %1225 = vmatpush.msra.mxu0 0.0
      %1226 = vmatpush.msra.mxu0 0.0
      %1227 = vmatpush.msra.mxu0 0.0
      %1228 = vmatpush.msra.mxu0 0.0
      %1229 = vmatpush.msra.mxu0 0.0
      %1230 = vmatpush.msra.mxu0 0.0
      %1231 = vmatpush.msra.mxu0 0.0
      %1232 = vmatpush.msra.mxu0 0.0
      %1233 = vmatpush.msra.mxu0 0.0
      %1234 = vmatpush.msra.mxu0 0.0
      %1235 = vmatpush.msra.mxu0 0.0
      %1236 = vmatpush.msra.mxu0 0.0
      %1237 = vmatpush.msra.mxu0 0.0
      %1238 = vmatpush.msra.mxu0 0.0
      %1239 = vmatpush.msra.mxu0 0.0
      %1240 = vmatpush.msra.mxu0 %v1198
      %1241 = vmatmul.f32.gmra.mxu0 %v1191
      %v1242 = vpop.f32.mrf.mxu0
      %v1243 = vadd.f32 0.0, %v1242
      %1244 = vmatmul.f32.gmra.mxu0 %v1194
      %v1245 = vpop.f32.mrf.mxu0
      %v1246 = vadd.f32 0.0, %v1245
      %1247 = vdwg.mxu0
      %1248 = vmatpush.msra.mxu0 0.0
      %1249 = vmatpush.msra.mxu0 0.0
      %1250 = vmatpush.msra.mxu0 0.0
      %1251 = vmatpush.msra.mxu0 0.0
      %1252 = vmatpush.msra.mxu0 0.0
      %1253 = vmatpush.msra.mxu0 0.0
      %1254 = vmatpush.msra.mxu0 0.0
      %1255 = vmatpush.msra.mxu0 0.0
      %1256 = vmatpush.msra.mxu0 0.0
      %1257 = vmatpush.msra.mxu0 0.0
      %1258 = vmatpush.msra.mxu0 0.0
      %1259 = vmatpush.msra.mxu0 0.0
      %1260 = vmatpush.msra.mxu0 0.0
      %1261 = vmatpush.msra.mxu0 0.0
      %1262 = vmatpush.msra.mxu0 0.0
      %1263 = vmatpush.msra.mxu0 %v1200
      %1264 = vmatmul.f32.gmra.mxu0 %v1191
      %v1265 = vpop.f32.mrf.mxu0
      %v1266 = vadd.f32 0.0, %v1265
      %1267 = vmatmul.f32.gmra.mxu0 %v1194
      %v1268 = vpop.f32.mrf.mxu0
      %v1269 = vadd.f32 0.0, %v1268
      %1270 = vdwg.mxu0
      %v1271 = vadd.f32 %v1166, %v1220
      %v1272 = vadd.f32 %v1167, %v1243
      %v1273 = vadd.f32 %v1168, %v1266
      %v1274 = vadd.f32 %v1169, %v1223
      %v1275 = vadd.f32 %v1170, %v1246
      %v1276 = vadd.f32 %v1171, %v1269
      %v1277 = vld [vmem:[%s4] sm:$0xff]
      %v1278 = vld [vmem:[%s4 + $0x8] sm:$0xff]
      %1280 = vset.pattern.permute.xlu0 0
      %1281 = vperm.xlu0 %1280, %v1277
      %v1282 = vpop.permute.xlu0 %1281
      %1285 = vset.pattern.permute.xlu0 0
      %1286 = vperm.xlu0 %1285, %v1278
      %v1287 = vpop.permute.xlu0 %1286
      %v1289 = vadd.f32 %v1271, %v1282
      %v1290 = vadd.f32 %v1272, %v1282
      %v1291 = vadd.f32 %v1273, %v1282
      %v1292 = vadd.f32 %v1274, %v1287
      %v1293 = vadd.f32 %v1275, %v1287
      %v1294 = vadd.f32 %v1276, %v1287
      %v1295 = vxor.u32 %v1292, 2147483648
      %v1296 = vxor.u32 %v1293, 2147483648
      %v1297 = vxor.u32 %v1294, 2147483648
      %v1298 = vmul.f32 %v1295, 1.442695
      %v1299 = vpow.pop %v1298
      %v1300 = vmul.f32 %v1296, 1.442695
      %v1301 = vpow.pop %v1300
      %v1302 = vmul.f32 %v1297, 1.442695
      %v1303 = vpow.pop %v1302
      %v1304 = vadd.f32 %v1299, 1.0
      %v1305 = vadd.f32 %v1301, 1.0
      %v1306 = vadd.f32 %v1303, 1.0
      %v1307 = vrcp.pop %v1304
      %v1308 = vmul.f32 %v1304, %v1307
      %v1309 = vsub.f32 1.0, %v1308
      %v1310 = vmul.f32 %v1307, %v1309
      %v1311 = vadd.f32 %v1307, %v1310
      %vm1312 = vweird.f32 %v1304
      %vm1313 = vweird.f32 %v1307
      %vm1314 = vmor %vm1312, %vm1313
      %v1315 = vsel %vm1314, %v1307, %v1311
      %v1316 = vand.u32 2147483647, %v1304
      %vm1317 = vcmp.eq.f32.partialorder %v1316, 8.507059e+37
      %v1318 = vand.u32 %v1304, 2147483648
      %v1319 = vor.u32 1.1754944e-38, %v1318
      %v1320 = vsel %vm1317, %v1319, %v1315
      %v1321 = vmul.f32 1.0, %v1320
      %v1322 = vrcp.pop %v1305
      %v1323 = vmul.f32 %v1305, %v1322
      %v1324 = vsub.f32 1.0, %v1323
      %v1325 = vmul.f32 %v1322, %v1324
      %v1326 = vadd.f32 %v1322, %v1325
      %vm1327 = vweird.f32 %v1305
      %vm1328 = vweird.f32 %v1322
      %vm1329 = vmor %vm1327, %vm1328
      %v1330 = vsel %vm1329, %v1322, %v1326
      %v1331 = vand.u32 2147483647, %v1305
      %vm1332 = vcmp.eq.f32.partialorder %v1331, 8.507059e+37
      %v1333 = vand.u32 %v1305, 2147483648
      %v1334 = vor.u32 1.1754944e-38, %v1333
      %v1335 = vsel %vm1332, %v1334, %v1330
      %v1336 = vmul.f32 1.0, %v1335
      %v1337 = vrcp.pop %v1306
      %v1338 = vmul.f32 %v1306, %v1337
      %v1339 = vsub.f32 1.0, %v1338
      %v1340 = vmul.f32 %v1337, %v1339
      %v1341 = vadd.f32 %v1337, %v1340
      %vm1342 = vweird.f32 %v1306
      %vm1343 = vweird.f32 %v1337
      %vm1344 = vmor %vm1342, %vm1343
      %v1345 = vsel %vm1344, %v1337, %v1341
      %v1346 = vand.u32 2147483647, %v1306
      %vm1347 = vcmp.eq.f32.partialorder %v1346, 8.507059e+37
      %v1348 = vand.u32 %v1306, 2147483648
      %v1349 = vor.u32 1.1754944e-38, %v1348
      %v1350 = vsel %vm1347, %v1349, %v1345
      %v1351 = vmul.f32 1.0, %v1350
      %v1352 = vmul.f32 %v1289, %v1321
      %v1353 = vmul.f32 %v1290, %v1336
      %v1354 = vmul.f32 %v1291, %v1351
      %v1355 = vsel %vm347, 1, 0
      %v1356 = vperm.slane %v1355, 0
      %v1357 = vperm.slane %v1355, 1
      %v1358 = vperm.slane %v1355, 2
      %vm1359 = vcmp.eq.s32.totalorder %v1356, 1
      %vm1360 = vcmp.eq.s32.totalorder %v1357, 1
      %vm1361 = vcmp.eq.s32.totalorder %v1358, 1
      %v1362 = vsel %vm1359, %v1352, 0.0
      %v1363 = vsel %vm1360, %v1353, 0.0
      %v1364 = vsel %vm1361, %v1354, 0.0
      %1368 = vrot.lane.b32.xlu0 %v1362, 19
      %v1369 = vpop.permute.xlu0 %1368
      %1370 = vrot.lane.b32.xlu0 %v1363, 19
      %v1371 = vpop.permute.xlu0 %1370
      %1372 = vrot.lane.b32.xlu0 %v1364, 19
      %v1373 = vpop.permute.xlu0 %1372
      %vm1374 = vcmask 154624
      %v1375 = vsel %vm1374, %v1369, %v1371
      %v1376 = vsel %vm1374, %v1371, %v1373
      %vm1380 = vcmask 1047704
      %1381 = vst.msk [vmem:[#allocation2] sm:$0xff] %vm1380, %v1369
      %1382 = vst [vmem:[#allocation2 + $0x8] sm:$0xff] %v1375
      %vm1383 = vcmask 711680
      %1384 = vst.msk [vmem:[#allocation2 + $0x10] sm:$0xff] %vm1383, %v1376
      %v1385 = vld [vmem:[#allocation2] sm:$0xff]
      %v1386 = vld [vmem:[#allocation2 + $0x8] sm:$0xff]
      %v1387 = vld [vmem:[#allocation2 + $0x10] sm:$0xff]
      %v1388 = vld [vmem:[%s2] sm:$0xff]
      %v1389 = vld [vmem:[%s2 + $0x8] sm:$0xff]
      %s1390 = scalar_lea.vmem %s2, 16
      %v1391 = vld [vmem:[%s1390] sm:$0xff]
      %v1392 = vld [vmem:[%s1390 + $0x8] sm:$0xff]
      %1396 = vrot.lane.b32.xlu0 %v1385, 127
      %v1397 = vpop.permute.xlu0 %1396
      %1398 = vrot.lane.b32.xlu0 %v1386, 127
      %v1399 = vpop.permute.xlu0 %1398
      %1400 = vrot.lane.b32.xlu0 %v1387, 127
      %v1401 = vpop.permute.xlu0 %1400
      %v1402 = vsel %vm369, %v1397, %v1399
      %v1403 = vsel %vm369, %v1399, %v1401
      %vm1407 = vcmask 64512
      %v1409 = vsel %vm1407, %v1391, 0
      %v1412 = vsel %vm1407, %v1392, 0
      %1414 = vmatpush.msra.mxu0 0.0
      %1415 = vmatpush.msra.mxu0 0.0
      %1416 = vmatpush.msra.mxu0 0.0
      %1417 = vmatpush.msra.mxu0 0.0
      %1418 = vmatpush.msra.mxu0 0.0
      %1419 = vmatpush.msra.mxu0 0.0
      %1420 = vmatpush.msra.mxu0 0.0
      %1421 = vmatpush.msra.mxu0 0.0
      %1422 = vmatpush.msra.mxu0 0.0
      %1423 = vmatpush.msra.mxu0 0.0
      %1424 = vmatpush.msra.mxu0 0.0
      %1425 = vmatpush.msra.mxu0 0.0
      %1426 = vmatpush.msra.mxu0 0.0
      %1427 = vmatpush.msra.mxu0 0.0
      %1428 = vmatpush.msra.mxu0 0.0
      %1429 = vmatpush.msra.mxu0 %v1402
      %1430 = vmatmul.f32.gmra.mxu0 %v1409
      %v1431 = vpop.f32.mrf.mxu0
      %v1432 = vadd.f32 0.0, %v1431
      %1433 = vmatmul.f32.gmra.mxu0 %v1412
      %v1434 = vpop.f32.mrf.mxu0
      %v1435 = vadd.f32 0.0, %v1434
      %1436 = vdwg.mxu0
      %1437 = vmatpush.msra.mxu0 0.0
      %1438 = vmatpush.msra.mxu0 0.0
      %1439 = vmatpush.msra.mxu0 0.0
      %1440 = vmatpush.msra.mxu0 0.0
      %1441 = vmatpush.msra.mxu0 0.0
      %1442 = vmatpush.msra.mxu0 0.0
      %1443 = vmatpush.msra.mxu0 0.0
      %1444 = vmatpush.msra.mxu0 0.0
      %1445 = vmatpush.msra.mxu0 0.0
      %1446 = vmatpush.msra.mxu0 0.0
      %1447 = vmatpush.msra.mxu0 0.0
      %1448 = vmatpush.msra.mxu0 0.0
      %1449 = vmatpush.msra.mxu0 0.0
      %1450 = vmatpush.msra.mxu0 0.0
      %1451 = vmatpush.msra.mxu0 0.0
      %1452 = vmatpush.msra.mxu0 %v1403
      %1453 = vmatmul.f32.gmra.mxu0 %v1409
      %v1454 = vpop.f32.mrf.mxu0
      %v1455 = vadd.f32 0.0, %v1454
      %1456 = vmatmul.f32.gmra.mxu0 %v1412
      %v1457 = vpop.f32.mrf.mxu0
      %v1458 = vadd.f32 0.0, %v1457
      %1459 = vdwg.mxu0
      %1460 = vmatpush.msra.mxu0 0.0
      %1461 = vmatpush.msra.mxu0 0.0
      %1462 = vmatpush.msra.mxu0 0.0
      %1463 = vmatpush.msra.mxu0 0.0
      %1464 = vmatpush.msra.mxu0 0.0
      %1465 = vmatpush.msra.mxu0 0.0
      %1466 = vmatpush.msra.mxu0 0.0
      %1467 = vmatpush.msra.mxu0 0.0
      %1468 = vmatpush.msra.mxu0 0.0
      %1469 = vmatpush.msra.mxu0 0.0
      %1470 = vmatpush.msra.mxu0 0.0
      %1471 = vmatpush.msra.mxu0 0.0
      %1472 = vmatpush.msra.mxu0 0.0
      %1473 = vmatpush.msra.mxu0 0.0
      %1474 = vmatpush.msra.mxu0 0.0
      %1475 = vmatpush.msra.mxu0 %v1401
      %1476 = vmatmul.f32.gmra.mxu0 %v1409
      %v1477 = vpop.f32.mrf.mxu0
      %v1478 = vadd.f32 0.0, %v1477
      %1479 = vmatmul.f32.gmra.mxu0 %v1412
      %v1480 = vpop.f32.mrf.mxu0
      %v1481 = vadd.f32 0.0, %v1480
      %1482 = vdwg.mxu0
      %v1484 = vsel %vm1407, %v1388, 0
      %v1487 = vsel %vm1407, %v1389, 0
      %1489 = vmatpush.msra.mxu0 0.0
      %1490 = vmatpush.msra.mxu0 0.0
      %1491 = vmatpush.msra.mxu0 0.0
      %1492 = vmatpush.msra.mxu0 0.0
      %1493 = vmatpush.msra.mxu0 0.0
      %1494 = vmatpush.msra.mxu0 0.0
      %1495 = vmatpush.msra.mxu0 0.0
      %1496 = vmatpush.msra.mxu0 0.0
      %1497 = vmatpush.msra.mxu0 0.0
      %1498 = vmatpush.msra.mxu0 0.0
      %1499 = vmatpush.msra.mxu0 0.0
      %1500 = vmatpush.msra.mxu0 0.0
      %1501 = vmatpush.msra.mxu0 0.0
      %1502 = vmatpush.msra.mxu0 0.0
      %1503 = vmatpush.msra.mxu0 0.0
      %1504 = vmatpush.msra.mxu0 %v1385
      %1505 = vmatmul.f32.gmra.mxu0 %v1484
      %v1506 = vpop.f32.mrf.mxu0
      %v1507 = vadd.f32 %v1432, %v1506
      %1508 = vmatmul.f32.gmra.mxu0 %v1487
      %v1509 = vpop.f32.mrf.mxu0
      %v1510 = vadd.f32 %v1435, %v1509
      %1511 = vdwg.mxu0
      %1512 = vmatpush.msra.mxu0 0.0
      %1513 = vmatpush.msra.mxu0 0.0
      %1514 = vmatpush.msra.mxu0 0.0
      %1515 = vmatpush.msra.mxu0 0.0
      %1516 = vmatpush.msra.mxu0 0.0
      %1517 = vmatpush.msra.mxu0 0.0
      %1518 = vmatpush.msra.mxu0 0.0
      %1519 = vmatpush.msra.mxu0 0.0
      %1520 = vmatpush.msra.mxu0 0.0
      %1521 = vmatpush.msra.mxu0 0.0
      %1522 = vmatpush.msra.mxu0 0.0
      %1523 = vmatpush.msra.mxu0 0.0
      %1524 = vmatpush.msra.mxu0 0.0
      %1525 = vmatpush.msra.mxu0 0.0
      %1526 = vmatpush.msra.mxu0 0.0
      %1527 = vmatpush.msra.mxu0 %v1386
      %1528 = vmatmul.f32.gmra.mxu0 %v1484
      %v1529 = vpop.f32.mrf.mxu0
      %v1530 = vadd.f32 %v1455, %v1529
      %1531 = vmatmul.f32.gmra.mxu0 %v1487
      %v1532 = vpop.f32.mrf.mxu0
      %v1533 = vadd.f32 %v1458, %v1532
      %1534 = vdwg.mxu0
      %1535 = vmatpush.msra.mxu0 0.0
      %1536 = vmatpush.msra.mxu0 0.0
      %1537 = vmatpush.msra.mxu0 0.0
      %1538 = vmatpush.msra.mxu0 0.0
      %1539 = vmatpush.msra.mxu0 0.0
      %1540 = vmatpush.msra.mxu0 0.0
      %1541 = vmatpush.msra.mxu0 0.0
      %1542 = vmatpush.msra.mxu0 0.0
      %1543 = vmatpush.msra.mxu0 0.0
      %1544 = vmatpush.msra.mxu0 0.0
      %1545 = vmatpush.msra.mxu0 0.0
      %1546 = vmatpush.msra.mxu0 0.0
      %1547 = vmatpush.msra.mxu0 0.0
      %1548 = vmatpush.msra.mxu0 0.0
      %1549 = vmatpush.msra.mxu0 0.0
      %1550 = vmatpush.msra.mxu0 %v1387
      %1551 = vmatmul.f32.gmra.mxu0 %v1484
      %v1552 = vpop.f32.mrf.mxu0
      %v1553 = vadd.f32 %v1478, %v1552
      %1554 = vmatmul.f32.gmra.mxu0 %v1487
      %v1555 = vpop.f32.mrf.mxu0
      %v1556 = vadd.f32 %v1481, %v1555
      %1557 = vdwg.mxu0
      %s1558 = scalar_lea.vmem %s2, 32
      %v1559 = vld [vmem:[%s1558] sm:$0xff]
      %v1560 = vld [vmem:[%s1558 + $0x8] sm:$0xff]
      %1561 = vrot.lane.b32.xlu0 %v1385, 126
      %v1562 = vpop.permute.xlu0 %1561
      %1563 = vrot.lane.b32.xlu0 %v1386, 126
      %v1564 = vpop.permute.xlu0 %1563
      %1565 = vrot.lane.b32.xlu0 %v1387, 126
      %v1566 = vpop.permute.xlu0 %1565
      %v1567 = vsel %vm557, %v1562, %v1564
      %v1568 = vsel %vm557, %v1564, %v1566
      %v1573 = vsel %vm1407, %v1559, 0
      %v1576 = vsel %vm1407, %v1560, 0
      %1578 = vmatpush.msra.mxu0 0.0
      %1579 = vmatpush.msra.mxu0 0.0
      %1580 = vmatpush.msra.mxu0 0.0
      %1581 = vmatpush.msra.mxu0 0.0
      %1582 = vmatpush.msra.mxu0 0.0
      %1583 = vmatpush.msra.mxu0 0.0
      %1584 = vmatpush.msra.mxu0 0.0
      %1585 = vmatpush.msra.mxu0 0.0
      %1586 = vmatpush.msra.mxu0 0.0
      %1587 = vmatpush.msra.mxu0 0.0
      %1588 = vmatpush.msra.mxu0 0.0
      %1589 = vmatpush.msra.mxu0 0.0
      %1590 = vmatpush.msra.mxu0 0.0
      %1591 = vmatpush.msra.mxu0 0.0
      %1592 = vmatpush.msra.mxu0 0.0
      %1593 = vmatpush.msra.mxu0 %v1567
      %1594 = vmatmul.f32.gmra.mxu0 %v1573
      %v1595 = vpop.f32.mrf.mxu0
      %v1596 = vadd.f32 0.0, %v1595
      %1597 = vmatmul.f32.gmra.mxu0 %v1576
      %v1598 = vpop.f32.mrf.mxu0
      %v1599 = vadd.f32 0.0, %v1598
      %1600 = vdwg.mxu0
      %1601 = vmatpush.msra.mxu0 0.0
      %1602 = vmatpush.msra.mxu0 0.0
      %1603 = vmatpush.msra.mxu0 0.0
      %1604 = vmatpush.msra.mxu0 0.0
      %1605 = vmatpush.msra.mxu0 0.0
      %1606 = vmatpush.msra.mxu0 0.0
      %1607 = vmatpush.msra.mxu0 0.0
      %1608 = vmatpush.msra.mxu0 0.0
      %1609 = vmatpush.msra.mxu0 0.0
      %1610 = vmatpush.msra.mxu0 0.0
      %1611 = vmatpush.msra.mxu0 0.0
      %1612 = vmatpush.msra.mxu0 0.0
      %1613 = vmatpush.msra.mxu0 0.0
      %1614 = vmatpush.msra.mxu0 0.0
      %1615 = vmatpush.msra.mxu0 0.0
      %1616 = vmatpush.msra.mxu0 %v1568
      %1617 = vmatmul.f32.gmra.mxu0 %v1573
      %v1618 = vpop.f32.mrf.mxu0
      %v1619 = vadd.f32 0.0, %v1618
      %1620 = vmatmul.f32.gmra.mxu0 %v1576
      %v1621 = vpop.f32.mrf.mxu0
      %v1622 = vadd.f32 0.0, %v1621
      %1623 = vdwg.mxu0
      %1624 = vmatpush.msra.mxu0 0.0
      %1625 = vmatpush.msra.mxu0 0.0
      %1626 = vmatpush.msra.mxu0 0.0
      %1627 = vmatpush.msra.mxu0 0.0
      %1628 = vmatpush.msra.mxu0 0.0
      %1629 = vmatpush.msra.mxu0 0.0
      %1630 = vmatpush.msra.mxu0 0.0
      %1631 = vmatpush.msra.mxu0 0.0
      %1632 = vmatpush.msra.mxu0 0.0
      %1633 = vmatpush.msra.mxu0 0.0
      %1634 = vmatpush.msra.mxu0 0.0
      %1635 = vmatpush.msra.mxu0 0.0
      %1636 = vmatpush.msra.mxu0 0.0
      %1637 = vmatpush.msra.mxu0 0.0
      %1638 = vmatpush.msra.mxu0 0.0
      %1639 = vmatpush.msra.mxu0 %v1566
      %1640 = vmatmul.f32.gmra.mxu0 %v1573
      %v1641 = vpop.f32.mrf.mxu0
      %v1642 = vadd.f32 0.0, %v1641
      %1643 = vmatmul.f32.gmra.mxu0 %v1576
      %v1644 = vpop.f32.mrf.mxu0
      %v1645 = vadd.f32 0.0, %v1644
      %1646 = vdwg.mxu0
      %v1647 = vadd.f32 %v1507, %v1596
      %v1648 = vadd.f32 %v1530, %v1619
      %v1649 = vadd.f32 %v1553, %v1642
      %v1650 = vadd.f32 %v1510, %v1599
      %v1651 = vadd.f32 %v1533, %v1622
      %v1652 = vadd.f32 %v1556, %v1645
      %s1653 = scalar_lea.vmem %s2, 48
      %v1654 = vld [vmem:[%s1653] sm:$0xff]
      %v1655 = vld [vmem:[%s1653 + $0x8] sm:$0xff]
      %1656 = vrot.lane.b32.xlu0 %v1385, 110
      %v1657 = vpop.permute.xlu0 %1656
      %1658 = vrot.lane.b32.xlu0 %v1386, 110
      %v1659 = vpop.permute.xlu0 %1658
      %1660 = vrot.lane.b32.xlu0 %v1387, 110
      %v1661 = vpop.permute.xlu0 %1660
      %v1662 = vsel %vm662, %v1657, %v1659
      %v1663 = vsel %vm662, %v1659, %v1661
      %v1668 = vsel %vm1407, %v1654, 0
      %v1671 = vsel %vm1407, %v1655, 0
      %1673 = vmatpush.msra.mxu0 0.0
      %1674 = vmatpush.msra.mxu0 0.0
      %1675 = vmatpush.msra.mxu0 0.0
      %1676 = vmatpush.msra.mxu0 0.0
      %1677 = vmatpush.msra.mxu0 0.0
      %1678 = vmatpush.msra.mxu0 0.0
      %1679 = vmatpush.msra.mxu0 0.0
      %1680 = vmatpush.msra.mxu0 0.0
      %1681 = vmatpush.msra.mxu0 0.0
      %1682 = vmatpush.msra.mxu0 0.0
      %1683 = vmatpush.msra.mxu0 0.0
      %1684 = vmatpush.msra.mxu0 0.0
      %1685 = vmatpush.msra.mxu0 0.0
      %1686 = vmatpush.msra.mxu0 0.0
      %1687 = vmatpush.msra.mxu0 0.0
      %1688 = vmatpush.msra.mxu0 %v1662
      %1689 = vmatmul.f32.gmra.mxu0 %v1668
      %v1690 = vpop.f32.mrf.mxu0
      %v1691 = vadd.f32 0.0, %v1690
      %1692 = vmatmul.f32.gmra.mxu0 %v1671
      %v1693 = vpop.f32.mrf.mxu0
      %v1694 = vadd.f32 0.0, %v1693
      %1695 = vdwg.mxu0
      %1696 = vmatpush.msra.mxu0 0.0
      %1697 = vmatpush.msra.mxu0 0.0
      %1698 = vmatpush.msra.mxu0 0.0
      %1699 = vmatpush.msra.mxu0 0.0
      %1700 = vmatpush.msra.mxu0 0.0
      %1701 = vmatpush.msra.mxu0 0.0
      %1702 = vmatpush.msra.mxu0 0.0
      %1703 = vmatpush.msra.mxu0 0.0
      %1704 = vmatpush.msra.mxu0 0.0
      %1705 = vmatpush.msra.mxu0 0.0
      %1706 = vmatpush.msra.mxu0 0.0
      %1707 = vmatpush.msra.mxu0 0.0
      %1708 = vmatpush.msra.mxu0 0.0
      %1709 = vmatpush.msra.mxu0 0.0
      %1710 = vmatpush.msra.mxu0 0.0
      %1711 = vmatpush.msra.mxu0 %v1663
      %1712 = vmatmul.f32.gmra.mxu0 %v1668
      %v1713 = vpop.f32.mrf.mxu0
      %v1714 = vadd.f32 0.0, %v1713
      %1715 = vmatmul.f32.gmra.mxu0 %v1671
      %v1716 = vpop.f32.mrf.mxu0
      %v1717 = vadd.f32 0.0, %v1716
      %1718 = vdwg.mxu0
      %1719 = vmatpush.msra.mxu0 0.0
      %1720 = vmatpush.msra.mxu0 0.0
      %1721 = vmatpush.msra.mxu0 0.0
      %1722 = vmatpush.msra.mxu0 0.0
      %1723 = vmatpush.msra.mxu0 0.0
      %1724 = vmatpush.msra.mxu0 0.0
      %1725 = vmatpush.msra.mxu0 0.0
      %1726 = vmatpush.msra.mxu0 0.0
      %1727 = vmatpush.msra.mxu0 0.0
      %1728 = vmatpush.msra.mxu0 0.0
      %1729 = vmatpush.msra.mxu0 0.0
      %1730 = vmatpush.msra.mxu0 0.0
      %1731 = vmatpush.msra.mxu0 0.0
      %1732 = vmatpush.msra.mxu0 0.0
      %1733 = vmatpush.msra.mxu0 0.0
      %1734 = vmatpush.msra.mxu0 %v1661
      %1735 = vmatmul.f32.gmra.mxu0 %v1668
      %v1736 = vpop.f32.mrf.mxu0
      %v1737 = vadd.f32 0.0, %v1736
      %1738 = vmatmul.f32.gmra.mxu0 %v1671
      %v1739 = vpop.f32.mrf.mxu0
      %v1740 = vadd.f32 0.0, %v1739
      %1741 = vdwg.mxu0
      %v1742 = vadd.f32 %v1647, %v1691
      %v1743 = vadd.f32 %v1648, %v1714
      %v1744 = vadd.f32 %v1649, %v1737
      %v1745 = vadd.f32 %v1650, %v1694
      %v1746 = vadd.f32 %v1651, %v1717
      %v1747 = vadd.f32 %v1652, %v1740
      %s1748 = scalar_lea.vmem %s2, 64
      %v1749 = vld [vmem:[%s1748] sm:$0xff]
      %v1750 = vld [vmem:[%s1748 + $0x8] sm:$0xff]
      %1751 = vrot.lane.b32.xlu0 %v1385, 109
      %v1752 = vpop.permute.xlu0 %1751
      %1753 = vrot.lane.b32.xlu0 %v1386, 109
      %v1754 = vpop.permute.xlu0 %1753
      %1755 = vrot.lane.b32.xlu0 %v1387, 109
      %v1756 = vpop.permute.xlu0 %1755
      %v1757 = vsel %vm767, %v1752, %v1754
      %v1758 = vsel %vm767, %v1754, %v1756
      %v1763 = vsel %vm1407, %v1749, 0
      %v1766 = vsel %vm1407, %v1750, 0
      %1768 = vmatpush.msra.mxu0 0.0
      %1769 = vmatpush.msra.mxu0 0.0
      %1770 = vmatpush.msra.mxu0 0.0
      %1771 = vmatpush.msra.mxu0 0.0
      %1772 = vmatpush.msra.mxu0 0.0
      %1773 = vmatpush.msra.mxu0 0.0
      %1774 = vmatpush.msra.mxu0 0.0
      %1775 = vmatpush.msra.mxu0 0.0
      %1776 = vmatpush.msra.mxu0 0.0
      %1777 = vmatpush.msra.mxu0 0.0
      %1778 = vmatpush.msra.mxu0 0.0
      %1779 = vmatpush.msra.mxu0 0.0
      %1780 = vmatpush.msra.mxu0 0.0
      %1781 = vmatpush.msra.mxu0 0.0
      %1782 = vmatpush.msra.mxu0 0.0
      %1783 = vmatpush.msra.mxu0 %v1757
      %1784 = vmatmul.f32.gmra.mxu0 %v1763
      %v1785 = vpop.f32.mrf.mxu0
      %v1786 = vadd.f32 0.0, %v1785
      %1787 = vmatmul.f32.gmra.mxu0 %v1766
      %v1788 = vpop.f32.mrf.mxu0
      %v1789 = vadd.f32 0.0, %v1788
      %1790 = vdwg.mxu0
      %1791 = vmatpush.msra.mxu0 0.0
      %1792 = vmatpush.msra.mxu0 0.0
      %1793 = vmatpush.msra.mxu0 0.0
      %1794 = vmatpush.msra.mxu0 0.0
      %1795 = vmatpush.msra.mxu0 0.0
      %1796 = vmatpush.msra.mxu0 0.0
      %1797 = vmatpush.msra.mxu0 0.0
      %1798 = vmatpush.msra.mxu0 0.0
      %1799 = vmatpush.msra.mxu0 0.0
      %1800 = vmatpush.msra.mxu0 0.0
      %1801 = vmatpush.msra.mxu0 0.0
      %1802 = vmatpush.msra.mxu0 0.0
      %1803 = vmatpush.msra.mxu0 0.0
      %1804 = vmatpush.msra.mxu0 0.0
      %1805 = vmatpush.msra.mxu0 0.0
      %1806 = vmatpush.msra.mxu0 %v1758
      %1807 = vmatmul.f32.gmra.mxu0 %v1763
      %v1808 = vpop.f32.mrf.mxu0
      %v1809 = vadd.f32 0.0, %v1808
      %1810 = vmatmul.f32.gmra.mxu0 %v1766
      %v1811 = vpop.f32.mrf.mxu0
      %v1812 = vadd.f32 0.0, %v1811
      %1813 = vdwg.mxu0
      %1814 = vmatpush.msra.mxu0 0.0
      %1815 = vmatpush.msra.mxu0 0.0
      %1816 = vmatpush.msra.mxu0 0.0
      %1817 = vmatpush.msra.mxu0 0.0
      %1818 = vmatpush.msra.mxu0 0.0
      %1819 = vmatpush.msra.mxu0 0.0
      %1820 = vmatpush.msra.mxu0 0.0
      %1821 = vmatpush.msra.mxu0 0.0
      %1822 = vmatpush.msra.mxu0 0.0
      %1823 = vmatpush.msra.mxu0 0.0
      %1824 = vmatpush.msra.mxu0 0.0
      %1825 = vmatpush.msra.mxu0 0.0
      %1826 = vmatpush.msra.mxu0 0.0
      %1827 = vmatpush.msra.mxu0 0.0
      %1828 = vmatpush.msra.mxu0 0.0
      %1829 = vmatpush.msra.mxu0 %v1756
      %1830 = vmatmul.f32.gmra.mxu0 %v1763
      %v1831 = vpop.f32.mrf.mxu0
      %v1832 = vadd.f32 0.0, %v1831
      %1833 = vmatmul.f32.gmra.mxu0 %v1766
      %v1834 = vpop.f32.mrf.mxu0
      %v1835 = vadd.f32 0.0, %v1834
      %1836 = vdwg.mxu0
      %v1837 = vadd.f32 %v1742, %v1786
      %v1838 = vadd.f32 %v1743, %v1809
      %v1839 = vadd.f32 %v1744, %v1832
      %v1840 = vadd.f32 %v1745, %v1789
      %v1841 = vadd.f32 %v1746, %v1812
      %v1842 = vadd.f32 %v1747, %v1835
      %s1843 = scalar_lea.vmem %s2, 80
      %v1844 = vld [vmem:[%s1843] sm:$0xff]
      %v1845 = vld [vmem:[%s1843 + $0x8] sm:$0xff]
      %1846 = vrot.lane.b32.xlu0 %v1385, 108
      %v1847 = vpop.permute.xlu0 %1846
      %1848 = vrot.lane.b32.xlu0 %v1386, 108
      %v1849 = vpop.permute.xlu0 %1848
      %1850 = vrot.lane.b32.xlu0 %v1387, 108
      %v1851 = vpop.permute.xlu0 %1850
      %v1852 = vsel %vm872, %v1847, %v1849
      %v1853 = vsel %vm872, %v1849, %v1851
      %v1858 = vsel %vm1407, %v1844, 0
      %v1861 = vsel %vm1407, %v1845, 0
      %1863 = vmatpush.msra.mxu0 0.0
      %1864 = vmatpush.msra.mxu0 0.0
      %1865 = vmatpush.msra.mxu0 0.0
      %1866 = vmatpush.msra.mxu0 0.0
      %1867 = vmatpush.msra.mxu0 0.0
      %1868 = vmatpush.msra.mxu0 0.0
      %1869 = vmatpush.msra.mxu0 0.0
      %1870 = vmatpush.msra.mxu0 0.0
      %1871 = vmatpush.msra.mxu0 0.0
      %1872 = vmatpush.msra.mxu0 0.0
      %1873 = vmatpush.msra.mxu0 0.0
      %1874 = vmatpush.msra.mxu0 0.0
      %1875 = vmatpush.msra.mxu0 0.0
      %1876 = vmatpush.msra.mxu0 0.0
      %1877 = vmatpush.msra.mxu0 0.0
      %1878 = vmatpush.msra.mxu0 %v1852
      %1879 = vmatmul.f32.gmra.mxu0 %v1858
      %v1880 = vpop.f32.mrf.mxu0
      %v1881 = vadd.f32 0.0, %v1880
      %1882 = vmatmul.f32.gmra.mxu0 %v1861
      %v1883 = vpop.f32.mrf.mxu0
      %v1884 = vadd.f32 0.0, %v1883
      %1885 = vdwg.mxu0
      %1886 = vmatpush.msra.mxu0 0.0
      %1887 = vmatpush.msra.mxu0 0.0
      %1888 = vmatpush.msra.mxu0 0.0
      %1889 = vmatpush.msra.mxu0 0.0
      %1890 = vmatpush.msra.mxu0 0.0
      %1891 = vmatpush.msra.mxu0 0.0
      %1892 = vmatpush.msra.mxu0 0.0
      %1893 = vmatpush.msra.mxu0 0.0
      %1894 = vmatpush.msra.mxu0 0.0
      %1895 = vmatpush.msra.mxu0 0.0
      %1896 = vmatpush.msra.mxu0 0.0
      %1897 = vmatpush.msra.mxu0 0.0
      %1898 = vmatpush.msra.mxu0 0.0
      %1899 = vmatpush.msra.mxu0 0.0
      %1900 = vmatpush.msra.mxu0 0.0
      %1901 = vmatpush.msra.mxu0 %v1853
      %1902 = vmatmul.f32.gmra.mxu0 %v1858
      %v1903 = vpop.f32.mrf.mxu0
      %v1904 = vadd.f32 0.0, %v1903
      %1905 = vmatmul.f32.gmra.mxu0 %v1861
      %v1906 = vpop.f32.mrf.mxu0
      %v1907 = vadd.f32 0.0, %v1906
      %1908 = vdwg.mxu0
      %1909 = vmatpush.msra.mxu0 0.0
      %1910 = vmatpush.msra.mxu0 0.0
      %1911 = vmatpush.msra.mxu0 0.0
      %1912 = vmatpush.msra.mxu0 0.0
      %1913 = vmatpush.msra.mxu0 0.0
      %1914 = vmatpush.msra.mxu0 0.0
      %1915 = vmatpush.msra.mxu0 0.0
      %1916 = vmatpush.msra.mxu0 0.0
      %1917 = vmatpush.msra.mxu0 0.0
      %1918 = vmatpush.msra.mxu0 0.0
      %1919 = vmatpush.msra.mxu0 0.0
      %1920 = vmatpush.msra.mxu0 0.0
      %1921 = vmatpush.msra.mxu0 0.0
      %1922 = vmatpush.msra.mxu0 0.0
      %1923 = vmatpush.msra.mxu0 0.0
      %1924 = vmatpush.msra.mxu0 %v1851
      %1925 = vmatmul.f32.gmra.mxu0 %v1858
      %v1926 = vpop.f32.mrf.mxu0
      %v1927 = vadd.f32 0.0, %v1926
      %1928 = vmatmul.f32.gmra.mxu0 %v1861
      %v1929 = vpop.f32.mrf.mxu0
      %v1930 = vadd.f32 0.0, %v1929
      %1931 = vdwg.mxu0
      %v1932 = vadd.f32 %v1837, %v1881
      %v1933 = vadd.f32 %v1838, %v1904
      %v1934 = vadd.f32 %v1839, %v1927
      %v1935 = vadd.f32 %v1840, %v1884
      %v1936 = vadd.f32 %v1841, %v1907
      %v1937 = vadd.f32 %v1842, %v1930
      %s1938 = scalar_lea.vmem %s2, 96
      %v1939 = vld [vmem:[%s1938] sm:$0xff]
      %v1940 = vld [vmem:[%s1938 + $0x8] sm:$0xff]
      %1941 = vrot.lane.b32.xlu0 %v1385, 92
      %v1942 = vpop.permute.xlu0 %1941
      %1943 = vrot.lane.b32.xlu0 %v1386, 92
      %v1944 = vpop.permute.xlu0 %1943
      %1945 = vrot.lane.b32.xlu0 %v1387, 92
      %v1946 = vpop.permute.xlu0 %1945
      %v1947 = vsel %vm977, %v1942, %v1944
      %v1948 = vsel %vm977, %v1944, %v1946
      %v1953 = vsel %vm1407, %v1939, 0
      %v1956 = vsel %vm1407, %v1940, 0
      %1958 = vmatpush.msra.mxu0 0.0
      %1959 = vmatpush.msra.mxu0 0.0
      %1960 = vmatpush.msra.mxu0 0.0
      %1961 = vmatpush.msra.mxu0 0.0
      %1962 = vmatpush.msra.mxu0 0.0
      %1963 = vmatpush.msra.mxu0 0.0
      %1964 = vmatpush.msra.mxu0 0.0
      %1965 = vmatpush.msra.mxu0 0.0
      %1966 = vmatpush.msra.mxu0 0.0
      %1967 = vmatpush.msra.mxu0 0.0
      %1968 = vmatpush.msra.mxu0 0.0
      %1969 = vmatpush.msra.mxu0 0.0
      %1970 = vmatpush.msra.mxu0 0.0
      %1971 = vmatpush.msra.mxu0 0.0
      %1972 = vmatpush.msra.mxu0 0.0
      %1973 = vmatpush.msra.mxu0 %v1947
      %1974 = vmatmul.f32.gmra.mxu0 %v1953
      %v1975 = vpop.f32.mrf.mxu0
      %v1976 = vadd.f32 0.0, %v1975
      %1977 = vmatmul.f32.gmra.mxu0 %v1956
      %v1978 = vpop.f32.mrf.mxu0
      %v1979 = vadd.f32 0.0, %v1978
      %1980 = vdwg.mxu0
      %1981 = vmatpush.msra.mxu0 0.0
      %1982 = vmatpush.msra.mxu0 0.0
      %1983 = vmatpush.msra.mxu0 0.0
      %1984 = vmatpush.msra.mxu0 0.0
      %1985 = vmatpush.msra.mxu0 0.0
      %1986 = vmatpush.msra.mxu0 0.0
      %1987 = vmatpush.msra.mxu0 0.0
      %1988 = vmatpush.msra.mxu0 0.0
      %1989 = vmatpush.msra.mxu0 0.0
      %1990 = vmatpush.msra.mxu0 0.0
      %1991 = vmatpush.msra.mxu0 0.0
      %1992 = vmatpush.msra.mxu0 0.0
      %1993 = vmatpush.msra.mxu0 0.0
      %1994 = vmatpush.msra.mxu0 0.0
      %1995 = vmatpush.msra.mxu0 0.0
      %1996 = vmatpush.msra.mxu0 %v1948
      %1997 = vmatmul.f32.gmra.mxu0 %v1953
      %v1998 = vpop.f32.mrf.mxu0
      %v1999 = vadd.f32 0.0, %v1998
      %2000 = vmatmul.f32.gmra.mxu0 %v1956
      %v2001 = vpop.f32.mrf.mxu0
      %v2002 = vadd.f32 0.0, %v2001
      %2003 = vdwg.mxu0
      %2004 = vmatpush.msra.mxu0 0.0
      %2005 = vmatpush.msra.mxu0 0.0
      %2006 = vmatpush.msra.mxu0 0.0
      %2007 = vmatpush.msra.mxu0 0.0
      %2008 = vmatpush.msra.mxu0 0.0
      %2009 = vmatpush.msra.mxu0 0.0
      %2010 = vmatpush.msra.mxu0 0.0
      %2011 = vmatpush.msra.mxu0 0.0
      %2012 = vmatpush.msra.mxu0 0.0
      %2013 = vmatpush.msra.mxu0 0.0
      %2014 = vmatpush.msra.mxu0 0.0
      %2015 = vmatpush.msra.mxu0 0.0
      %2016 = vmatpush.msra.mxu0 0.0
      %2017 = vmatpush.msra.mxu0 0.0
      %2018 = vmatpush.msra.mxu0 0.0
      %2019 = vmatpush.msra.mxu0 %v1946
      %2020 = vmatmul.f32.gmra.mxu0 %v1953
      %v2021 = vpop.f32.mrf.mxu0
      %v2022 = vadd.f32 0.0, %v2021
      %2023 = vmatmul.f32.gmra.mxu0 %v1956
      %v2024 = vpop.f32.mrf.mxu0
      %v2025 = vadd.f32 0.0, %v2024
      %2026 = vdwg.mxu0
      %v2027 = vadd.f32 %v1932, %v1976
      %v2028 = vadd.f32 %v1933, %v1999
      %v2029 = vadd.f32 %v1934, %v2022
      %v2030 = vadd.f32 %v1935, %v1979
      %v2031 = vadd.f32 %v1936, %v2002
      %v2032 = vadd.f32 %v1937, %v2025
      %s2033 = scalar_lea.vmem %s2, 112
      %v2034 = vld [vmem:[%s2033] sm:$0xff]
      %v2035 = vld [vmem:[%s2033 + $0x8] sm:$0xff]
      %2036 = vrot.lane.b32.xlu0 %v1385, 91
      %v2037 = vpop.permute.xlu0 %2036
      %2038 = vrot.lane.b32.xlu0 %v1386, 91
      %v2039 = vpop.permute.xlu0 %2038
      %2040 = vrot.lane.b32.xlu0 %v1387, 91
      %v2041 = vpop.permute.xlu0 %2040
      %v2042 = vsel %vm1082, %v2037, %v2039
      %v2043 = vsel %vm1082, %v2039, %v2041
      %v2048 = vsel %vm1407, %v2034, 0
      %v2051 = vsel %vm1407, %v2035, 0
      %2053 = vmatpush.msra.mxu0 0.0
      %2054 = vmatpush.msra.mxu0 0.0
      %2055 = vmatpush.msra.mxu0 0.0
      %2056 = vmatpush.msra.mxu0 0.0
      %2057 = vmatpush.msra.mxu0 0.0
      %2058 = vmatpush.msra.mxu0 0.0
      %2059 = vmatpush.msra.mxu0 0.0
      %2060 = vmatpush.msra.mxu0 0.0
      %2061 = vmatpush.msra.mxu0 0.0
      %2062 = vmatpush.msra.mxu0 0.0
      %2063 = vmatpush.msra.mxu0 0.0
      %2064 = vmatpush.msra.mxu0 0.0
      %2065 = vmatpush.msra.mxu0 0.0
      %2066 = vmatpush.msra.mxu0 0.0
      %2067 = vmatpush.msra.mxu0 0.0
      %2068 = vmatpush.msra.mxu0 %v2042
      %2069 = vmatmul.f32.gmra.mxu0 %v2048
      %v2070 = vpop.f32.mrf.mxu0
      %v2071 = vadd.f32 0.0, %v2070
      %2072 = vmatmul.f32.gmra.mxu0 %v2051
      %v2073 = vpop.f32.mrf.mxu0
      %v2074 = vadd.f32 0.0, %v2073
      %2075 = vdwg.mxu0
      %2076 = vmatpush.msra.mxu0 0.0
      %2077 = vmatpush.msra.mxu0 0.0
      %2078 = vmatpush.msra.mxu0 0.0
      %2079 = vmatpush.msra.mxu0 0.0
      %2080 = vmatpush.msra.mxu0 0.0
      %2081 = vmatpush.msra.mxu0 0.0
      %2082 = vmatpush.msra.mxu0 0.0
      %2083 = vmatpush.msra.mxu0 0.0
      %2084 = vmatpush.msra.mxu0 0.0
      %2085 = vmatpush.msra.mxu0 0.0
      %2086 = vmatpush.msra.mxu0 0.0
      %2087 = vmatpush.msra.mxu0 0.0
      %2088 = vmatpush.msra.mxu0 0.0
      %2089 = vmatpush.msra.mxu0 0.0
      %2090 = vmatpush.msra.mxu0 0.0
      %2091 = vmatpush.msra.mxu0 %v2043
      %2092 = vmatmul.f32.gmra.mxu0 %v2048
      %v2093 = vpop.f32.mrf.mxu0
      %v2094 = vadd.f32 0.0, %v2093
      %2095 = vmatmul.f32.gmra.mxu0 %v2051
      %v2096 = vpop.f32.mrf.mxu0
      %v2097 = vadd.f32 0.0, %v2096
      %2098 = vdwg.mxu0
      %2099 = vmatpush.msra.mxu0 0.0
      %2100 = vmatpush.msra.mxu0 0.0
      %2101 = vmatpush.msra.mxu0 0.0
      %2102 = vmatpush.msra.mxu0 0.0
      %2103 = vmatpush.msra.mxu0 0.0
      %2104 = vmatpush.msra.mxu0 0.0
      %2105 = vmatpush.msra.mxu0 0.0
      %2106 = vmatpush.msra.mxu0 0.0
      %2107 = vmatpush.msra.mxu0 0.0
      %2108 = vmatpush.msra.mxu0 0.0
      %2109 = vmatpush.msra.mxu0 0.0
      %2110 = vmatpush.msra.mxu0 0.0
      %2111 = vmatpush.msra.mxu0 0.0
      %2112 = vmatpush.msra.mxu0 0.0
      %2113 = vmatpush.msra.mxu0 0.0
      %2114 = vmatpush.msra.mxu0 %v2041
      %2115 = vmatmul.f32.gmra.mxu0 %v2048
      %v2116 = vpop.f32.mrf.mxu0
      %v2117 = vadd.f32 0.0, %v2116
      %2118 = vmatmul.f32.gmra.mxu0 %v2051
      %v2119 = vpop.f32.mrf.mxu0
      %v2120 = vadd.f32 0.0, %v2119
      %2121 = vdwg.mxu0
      %v2122 = vadd.f32 %v2027, %v2071
      %v2123 = vadd.f32 %v2028, %v2094
      %v2124 = vadd.f32 %v2029, %v2117
      %v2125 = vadd.f32 %v2030, %v2074
      %v2126 = vadd.f32 %v2031, %v2097
      %v2127 = vadd.f32 %v2032, %v2120
      %s2128 = scalar_lea.vmem %s2, 128
      %v2129 = vld [vmem:[%s2128] sm:$0xff]
      %v2130 = vld [vmem:[%s2128 + $0x8] sm:$0xff]
      %2131 = vrot.lane.b32.xlu0 %v1385, 90
      %v2132 = vpop.permute.xlu0 %2131
      %2133 = vrot.lane.b32.xlu0 %v1386, 90
      %v2134 = vpop.permute.xlu0 %2133
      %2135 = vrot.lane.b32.xlu0 %v1387, 90
      %v2136 = vpop.permute.xlu0 %2135
      %v2137 = vsel %vm1187, %v2132, %v2134
      %v2138 = vsel %vm1187, %v2134, %v2136
      %v2143 = vsel %vm1407, %v2129, 0
      %v2146 = vsel %vm1407, %v2130, 0
      %2148 = vmatpush.msra.mxu0 0.0
      %2149 = vmatpush.msra.mxu0 0.0
      %2150 = vmatpush.msra.mxu0 0.0
      %2151 = vmatpush.msra.mxu0 0.0
      %2152 = vmatpush.msra.mxu0 0.0
      %2153 = vmatpush.msra.mxu0 0.0
      %2154 = vmatpush.msra.mxu0 0.0
      %2155 = vmatpush.msra.mxu0 0.0
      %2156 = vmatpush.msra.mxu0 0.0
      %2157 = vmatpush.msra.mxu0 0.0
      %2158 = vmatpush.msra.mxu0 0.0
      %2159 = vmatpush.msra.mxu0 0.0
      %2160 = vmatpush.msra.mxu0 0.0
      %2161 = vmatpush.msra.mxu0 0.0
      %2162 = vmatpush.msra.mxu0 0.0
      %2163 = vmatpush.msra.mxu0 %v2137
      %2164 = vmatmul.f32.gmra.mxu0 %v2143
      %v2165 = vpop.f32.mrf.mxu0
      %v2166 = vadd.f32 0.0, %v2165
      %2167 = vmatmul.f32.gmra.mxu0 %v2146
      %v2168 = vpop.f32.mrf.mxu0
      %v2169 = vadd.f32 0.0, %v2168
      %2170 = vdwg.mxu0
      %2171 = vmatpush.msra.mxu0 0.0
      %2172 = vmatpush.msra.mxu0 0.0
      %2173 = vmatpush.msra.mxu0 0.0
      %2174 = vmatpush.msra.mxu0 0.0
      %2175 = vmatpush.msra.mxu0 0.0
      %2176 = vmatpush.msra.mxu0 0.0
      %2177 = vmatpush.msra.mxu0 0.0
      %2178 = vmatpush.msra.mxu0 0.0
      %2179 = vmatpush.msra.mxu0 0.0
      %2180 = vmatpush.msra.mxu0 0.0
      %2181 = vmatpush.msra.mxu0 0.0
      %2182 = vmatpush.msra.mxu0 0.0
      %2183 = vmatpush.msra.mxu0 0.0
      %2184 = vmatpush.msra.mxu0 0.0
      %2185 = vmatpush.msra.mxu0 0.0
      %2186 = vmatpush.msra.mxu0 %v2138
      %2187 = vmatmul.f32.gmra.mxu0 %v2143
      %v2188 = vpop.f32.mrf.mxu0
      %v2189 = vadd.f32 0.0, %v2188
      %2190 = vmatmul.f32.gmra.mxu0 %v2146
      %v2191 = vpop.f32.mrf.mxu0
      %v2192 = vadd.f32 0.0, %v2191
      %2193 = vdwg.mxu0
      %2194 = vmatpush.msra.mxu0 0.0
      %2195 = vmatpush.msra.mxu0 0.0
      %2196 = vmatpush.msra.mxu0 0.0
      %2197 = vmatpush.msra.mxu0 0.0
      %2198 = vmatpush.msra.mxu0 0.0
      %2199 = vmatpush.msra.mxu0 0.0
      %2200 = vmatpush.msra.mxu0 0.0
      %2201 = vmatpush.msra.mxu0 0.0
      %2202 = vmatpush.msra.mxu0 0.0
      %2203 = vmatpush.msra.mxu0 0.0
      %2204 = vmatpush.msra.mxu0 0.0
      %2205 = vmatpush.msra.mxu0 0.0
      %2206 = vmatpush.msra.mxu0 0.0
      %2207 = vmatpush.msra.mxu0 0.0
      %2208 = vmatpush.msra.mxu0 0.0
      %2209 = vmatpush.msra.mxu0 %v2136
      %2210 = vmatmul.f32.gmra.mxu0 %v2143
      %v2211 = vpop.f32.mrf.mxu0
      %v2212 = vadd.f32 0.0, %v2211
      %2213 = vmatmul.f32.gmra.mxu0 %v2146
      %v2214 = vpop.f32.mrf.mxu0
      %v2215 = vadd.f32 0.0, %v2214
      %2216 = vdwg.mxu0
      %v2217 = vadd.f32 %v2122, %v2166
      %v2218 = vadd.f32 %v2123, %v2189
      %v2219 = vadd.f32 %v2124, %v2212
      %v2220 = vadd.f32 %v2125, %v2169
      %v2221 = vadd.f32 %v2126, %v2192
      %v2222 = vadd.f32 %v2127, %v2215
      %v2223 = vld [vmem:[%s5] sm:$0xff]
      %v2224 = vld [vmem:[%s5 + $0x8] sm:$0xff]
      %2226 = vset.pattern.permute.xlu0 0
      %2227 = vperm.xlu0 %2226, %v2223
      %v2228 = vpop.permute.xlu0 %2227
      %2231 = vset.pattern.permute.xlu0 0
      %2232 = vperm.xlu0 %2231, %v2224
      %v2233 = vpop.permute.xlu0 %2232
      %v2235 = vadd.f32 %v2217, %v2228
      %v2236 = vadd.f32 %v2218, %v2228
      %v2237 = vadd.f32 %v2219, %v2228
      %v2238 = vadd.f32 %v2220, %v2233
      %v2239 = vadd.f32 %v2221, %v2233
      %v2240 = vadd.f32 %v2222, %v2233
      %v2241 = vxor.u32 %v2238, 2147483648
      %v2242 = vxor.u32 %v2239, 2147483648
      %v2243 = vxor.u32 %v2240, 2147483648
      %v2244 = vmul.f32 %v2241, 1.442695
      %v2245 = vpow.pop %v2244
      %v2246 = vmul.f32 %v2242, 1.442695
      %v2247 = vpow.pop %v2246
      %v2248 = vmul.f32 %v2243, 1.442695
      %v2249 = vpow.pop %v2248
      %v2250 = vadd.f32 %v2245, 1.0
      %v2251 = vadd.f32 %v2247, 1.0
      %v2252 = vadd.f32 %v2249, 1.0
      %v2253 = vrcp.pop %v2250
      %v2254 = vmul.f32 %v2250, %v2253
      %v2255 = vsub.f32 1.0, %v2254
      %v2256 = vmul.f32 %v2253, %v2255
      %v2257 = vadd.f32 %v2253, %v2256
      %vm2258 = vweird.f32 %v2250
      %vm2259 = vweird.f32 %v2253
      %vm2260 = vmor %vm2258, %vm2259
      %v2261 = vsel %vm2260, %v2253, %v2257
      %v2262 = vand.u32 2147483647, %v2250
      %vm2263 = vcmp.eq.f32.partialorder %v2262, 8.507059e+37
      %v2264 = vand.u32 %v2250, 2147483648
      %v2265 = vor.u32 1.1754944e-38, %v2264
      %v2266 = vsel %vm2263, %v2265, %v2261
      %v2267 = vmul.f32 1.0, %v2266
      %v2268 = vrcp.pop %v2251
      %v2269 = vmul.f32 %v2251, %v2268
      %v2270 = vsub.f32 1.0, %v2269
      %v2271 = vmul.f32 %v2268, %v2270
      %v2272 = vadd.f32 %v2268, %v2271
      %vm2273 = vweird.f32 %v2251
      %vm2274 = vweird.f32 %v2268
      %vm2275 = vmor %vm2273, %vm2274
      %v2276 = vsel %vm2275, %v2268, %v2272
      %v2277 = vand.u32 2147483647, %v2251
      %vm2278 = vcmp.eq.f32.partialorder %v2277, 8.507059e+37
      %v2279 = vand.u32 %v2251, 2147483648
      %v2280 = vor.u32 1.1754944e-38, %v2279
      %v2281 = vsel %vm2278, %v2280, %v2276
      %v2282 = vmul.f32 1.0, %v2281
      %v2283 = vrcp.pop %v2252
      %v2284 = vmul.f32 %v2252, %v2283
      %v2285 = vsub.f32 1.0, %v2284
      %v2286 = vmul.f32 %v2283, %v2285
      %v2287 = vadd.f32 %v2283, %v2286
      %vm2288 = vweird.f32 %v2252
      %vm2289 = vweird.f32 %v2283
      %vm2290 = vmor %vm2288, %vm2289
      %v2291 = vsel %vm2290, %v2283, %v2287
      %v2292 = vand.u32 2147483647, %v2252
      %vm2293 = vcmp.eq.f32.partialorder %v2292, 8.507059e+37
      %v2294 = vand.u32 %v2252, 2147483648
      %v2295 = vor.u32 1.1754944e-38, %v2294
      %v2296 = vsel %vm2293, %v2295, %v2291
      %v2297 = vmul.f32 1.0, %v2296
      %v2298 = vmul.f32 %v2235, %v2267
      %v2299 = vmul.f32 %v2236, %v2282
      %v2300 = vmul.f32 %v2237, %v2297
      %v2301 = vsel %vm1359, %v2298, 0.0
      %v2302 = vsel %vm1360, %v2299, 0.0
      %v2303 = vsel %vm1361, %v2300, 0.0
      %2304 = vst [vmem:[%s340] sm:$0xff] %v2301
      %2305 = vst [vmem:[%s340 + $0x8] sm:$0xff] %v2302
      %vm2306 = vcmask 556032
      %2307 = vst.msk [vmem:[%s340 + $0x10] sm:$0xff] %vm2306, %v2303
      %2311 = vrot.lane.b32.xlu0 %v2301, 19
      %v2312 = vpop.permute.xlu0 %2311
      %2313 = vrot.lane.b32.xlu0 %v2302, 19
      %v2314 = vpop.permute.xlu0 %2313
      %2315 = vrot.lane.b32.xlu0 %v2303, 19
      %v2316 = vpop.permute.xlu0 %2315
      %v2317 = vsel %vm1374, %v2312, %v2314
      %v2318 = vsel %vm1374, %v2314, %v2316
      %2322 = vst.msk [vmem:[#allocation3] sm:$0xff] %vm1380, %v2312
      %2323 = vst [vmem:[#allocation3 + $0x8] sm:$0xff] %v2317
      %2324 = vst.msk [vmem:[#allocation3 + $0x10] sm:$0xff] %vm1383, %v2318
      %v2325 = vld [vmem:[#allocation3] sm:$0xff]
      %v2326 = vld [vmem:[#allocation3 + $0x8] sm:$0xff]
      %v2327 = vld [vmem:[#allocation3 + $0x10] sm:$0xff]
      %v2328 = vld [vmem:[%s3] sm:$0xff]
      %s2329 = scalar_lea.vmem %s3, 8
      %v2330 = vld [vmem:[%s2329] sm:$0xff]
      %2334 = vrot.lane.b32.xlu0 %v2325, 127
      %v2335 = vpop.permute.xlu0 %2334
      %2336 = vrot.lane.b32.xlu0 %v2326, 127
      %v2337 = vpop.permute.xlu0 %2336
      %2338 = vrot.lane.b32.xlu0 %v2327, 127
      %v2339 = vpop.permute.xlu0 %2338
      %v2340 = vsel %vm369, %v2335, %v2337
      %v2341 = vsel %vm369, %v2337, %v2339
      %v2346 = vsel %vm1407, %v2330, 0
      %2348 = vmatpush.msra.mxu0 0.0
      %2349 = vmatpush.msra.mxu0 0.0
      %2350 = vmatpush.msra.mxu0 0.0
      %2351 = vmatpush.msra.mxu0 0.0
      %2352 = vmatpush.msra.mxu0 0.0
      %2353 = vmatpush.msra.mxu0 0.0
      %2354 = vmatpush.msra.mxu0 0.0
      %2355 = vmatpush.msra.mxu0 0.0
      %2356 = vmatpush.msra.mxu0 0.0
      %2357 = vmatpush.msra.mxu0 0.0
      %2358 = vmatpush.msra.mxu0 0.0
      %2359 = vmatpush.msra.mxu0 0.0
      %2360 = vmatpush.msra.mxu0 0.0
      %2361 = vmatpush.msra.mxu0 0.0
      %2362 = vmatpush.msra.mxu0 0.0
      %2363 = vmatpush.msra.mxu0 %v2340
      %2364 = vmatmul.f32.gmra.mxu0 %v2346
      %v2365 = vpop.f32.mrf.mxu0
      %v2366 = vadd.f32 0.0, %v2365
      %2367 = vdwg.mxu0
      %2368 = vmatpush.msra.mxu0 0.0
      %2369 = vmatpush.msra.mxu0 0.0
      %2370 = vmatpush.msra.mxu0 0.0
      %2371 = vmatpush.msra.mxu0 0.0
      %2372 = vmatpush.msra.mxu0 0.0
      %2373 = vmatpush.msra.mxu0 0.0
      %2374 = vmatpush.msra.mxu0 0.0
      %2375 = vmatpush.msra.mxu0 0.0
      %2376 = vmatpush.msra.mxu0 0.0
      %2377 = vmatpush.msra.mxu0 0.0
      %2378 = vmatpush.msra.mxu0 0.0
      %2379 = vmatpush.msra.mxu0 0.0
      %2380 = vmatpush.msra.mxu0 0.0
      %2381 = vmatpush.msra.mxu0 0.0
      %2382 = vmatpush.msra.mxu0 0.0
      %2383 = vmatpush.msra.mxu0 %v2341
      %2384 = vmatmul.f32.gmra.mxu0 %v2346
      %v2385 = vpop.f32.mrf.mxu0
      %v2386 = vadd.f32 0.0, %v2385
      %2387 = vdwg.mxu0
      %2388 = vmatpush.msra.mxu0 0.0
      %2389 = vmatpush.msra.mxu0 0.0
      %2390 = vmatpush.msra.mxu0 0.0
      %2391 = vmatpush.msra.mxu0 0.0
      %2392 = vmatpush.msra.mxu0 0.0
      %2393 = vmatpush.msra.mxu0 0.0
      %2394 = vmatpush.msra.mxu0 0.0
      %2395 = vmatpush.msra.mxu0 0.0
      %2396 = vmatpush.msra.mxu0 0.0
      %2397 = vmatpush.msra.mxu0 0.0
      %2398 = vmatpush.msra.mxu0 0.0
      %2399 = vmatpush.msra.mxu0 0.0
      %2400 = vmatpush.msra.mxu0 0.0
      %2401 = vmatpush.msra.mxu0 0.0
      %2402 = vmatpush.msra.mxu0 0.0
      %2403 = vmatpush.msra.mxu0 %v2339
      %2404 = vmatmul.f32.gmra.mxu0 %v2346
      %v2405 = vpop.f32.mrf.mxu0
      %v2406 = vadd.f32 0.0, %v2405
      %2407 = vdwg.mxu0
      %v2409 = vsel %vm1407, %v2328, 0
      %2411 = vmatpush.msra.mxu0 0.0
      %2412 = vmatpush.msra.mxu0 0.0
      %2413 = vmatpush.msra.mxu0 0.0
      %2414 = vmatpush.msra.mxu0 0.0
      %2415 = vmatpush.msra.mxu0 0.0
      %2416 = vmatpush.msra.mxu0 0.0
      %2417 = vmatpush.msra.mxu0 0.0
      %2418 = vmatpush.msra.mxu0 0.0
      %2419 = vmatpush.msra.mxu0 0.0
      %2420 = vmatpush.msra.mxu0 0.0
      %2421 = vmatpush.msra.mxu0 0.0
      %2422 = vmatpush.msra.mxu0 0.0
      %2423 = vmatpush.msra.mxu0 0.0
      %2424 = vmatpush.msra.mxu0 0.0
      %2425 = vmatpush.msra.mxu0 0.0
      %2426 = vmatpush.msra.mxu0 %v2325
      %2427 = vmatmul.f32.gmra.mxu0 %v2409
      %v2428 = vpop.f32.mrf.mxu0
      %v2429 = vadd.f32 %v2366, %v2428
      %2430 = vdwg.mxu0
      %2431 = vmatpush.msra.mxu0 0.0
      %2432 = vmatpush.msra.mxu0 0.0
      %2433 = vmatpush.msra.mxu0 0.0
      %2434 = vmatpush.msra.mxu0 0.0
      %2435 = vmatpush.msra.mxu0 0.0
      %2436 = vmatpush.msra.mxu0 0.0
      %2437 = vmatpush.msra.mxu0 0.0
      %2438 = vmatpush.msra.mxu0 0.0
      %2439 = vmatpush.msra.mxu0 0.0
      %2440 = vmatpush.msra.mxu0 0.0
      %2441 = vmatpush.msra.mxu0 0.0
      %2442 = vmatpush.msra.mxu0 0.0
      %2443 = vmatpush.msra.mxu0 0.0
      %2444 = vmatpush.msra.mxu0 0.0
      %2445 = vmatpush.msra.mxu0 0.0
      %2446 = vmatpush.msra.mxu0 %v2326
      %2447 = vmatmul.f32.gmra.mxu0 %v2409
      %v2448 = vpop.f32.mrf.mxu0
      %v2449 = vadd.f32 %v2386, %v2448
      %2450 = vdwg.mxu0
      %2451 = vmatpush.msra.mxu0 0.0
      %2452 = vmatpush.msra.mxu0 0.0
      %2453 = vmatpush.msra.mxu0 0.0
      %2454 = vmatpush.msra.mxu0 0.0
      %2455 = vmatpush.msra.mxu0 0.0
      %2456 = vmatpush.msra.mxu0 0.0
      %2457 = vmatpush.msra.mxu0 0.0
      %2458 = vmatpush.msra.mxu0 0.0
      %2459 = vmatpush.msra.mxu0 0.0
      %2460 = vmatpush.msra.mxu0 0.0
      %2461 = vmatpush.msra.mxu0 0.0
      %2462 = vmatpush.msra.mxu0 0.0
      %2463 = vmatpush.msra.mxu0 0.0
      %2464 = vmatpush.msra.mxu0 0.0
      %2465 = vmatpush.msra.mxu0 0.0
      %2466 = vmatpush.msra.mxu0 %v2327
      %2467 = vmatmul.f32.gmra.mxu0 %v2409
      %v2468 = vpop.f32.mrf.mxu0
      %v2469 = vadd.f32 %v2406, %v2468
      %2470 = vdwg.mxu0
      %s2471 = scalar_lea.vmem %s3, 16
      %v2472 = vld [vmem:[%s2471] sm:$0xff]
      %2473 = vrot.lane.b32.xlu0 %v2325, 126
      %v2474 = vpop.permute.xlu0 %2473
      %2475 = vrot.lane.b32.xlu0 %v2326, 126
      %v2476 = vpop.permute.xlu0 %2475
      %2477 = vrot.lane.b32.xlu0 %v2327, 126
      %v2478 = vpop.permute.xlu0 %2477
      %v2479 = vsel %vm557, %v2474, %v2476
      %v2480 = vsel %vm557, %v2476, %v2478
      %v2485 = vsel %vm1407, %v2472, 0
      %2487 = vmatpush.msra.mxu0 0.0
      %2488 = vmatpush.msra.mxu0 0.0
      %2489 = vmatpush.msra.mxu0 0.0
      %2490 = vmatpush.msra.mxu0 0.0
      %2491 = vmatpush.msra.mxu0 0.0
      %2492 = vmatpush.msra.mxu0 0.0
      %2493 = vmatpush.msra.mxu0 0.0
      %2494 = vmatpush.msra.mxu0 0.0
      %2495 = vmatpush.msra.mxu0 0.0
      %2496 = vmatpush.msra.mxu0 0.0
      %2497 = vmatpush.msra.mxu0 0.0
      %2498 = vmatpush.msra.mxu0 0.0
      %2499 = vmatpush.msra.mxu0 0.0
      %2500 = vmatpush.msra.mxu0 0.0
      %2501 = vmatpush.msra.mxu0 0.0
      %2502 = vmatpush.msra.mxu0 %v2479
      %2503 = vmatmul.f32.gmra.mxu0 %v2485
      %v2504 = vpop.f32.mrf.mxu0
      %v2505 = vadd.f32 0.0, %v2504
      %2506 = vdwg.mxu0
      %2507 = vmatpush.msra.mxu0 0.0
      %2508 = vmatpush.msra.mxu0 0.0
      %2509 = vmatpush.msra.mxu0 0.0
      %2510 = vmatpush.msra.mxu0 0.0
      %2511 = vmatpush.msra.mxu0 0.0
      %2512 = vmatpush.msra.mxu0 0.0
      %2513 = vmatpush.msra.mxu0 0.0
      %2514 = vmatpush.msra.mxu0 0.0
      %2515 = vmatpush.msra.mxu0 0.0
      %2516 = vmatpush.msra.mxu0 0.0
      %2517 = vmatpush.msra.mxu0 0.0
      %2518 = vmatpush.msra.mxu0 0.0
      %2519 = vmatpush.msra.mxu0 0.0
      %2520 = vmatpush.msra.mxu0 0.0
      %2521 = vmatpush.msra.mxu0 0.0
      %2522 = vmatpush.msra.mxu0 %v2480
      %2523 = vmatmul.f32.gmra.mxu0 %v2485
      %v2524 = vpop.f32.mrf.mxu0
      %v2525 = vadd.f32 0.0, %v2524
      %2526 = vdwg.mxu0
      %2527 = vmatpush.msra.mxu0 0.0
      %2528 = vmatpush.msra.mxu0 0.0
      %2529 = vmatpush.msra.mxu0 0.0
      %2530 = vmatpush.msra.mxu0 0.0
      %2531 = vmatpush.msra.mxu0 0.0
      %2532 = vmatpush.msra.mxu0 0.0
      %2533 = vmatpush.msra.mxu0 0.0
      %2534 = vmatpush.msra.mxu0 0.0
      %2535 = vmatpush.msra.mxu0 0.0
      %2536 = vmatpush.msra.mxu0 0.0
      %2537 = vmatpush.msra.mxu0 0.0
      %2538 = vmatpush.msra.mxu0 0.0
      %2539 = vmatpush.msra.mxu0 0.0
      %2540 = vmatpush.msra.mxu0 0.0
      %2541 = vmatpush.msra.mxu0 0.0
      %2542 = vmatpush.msra.mxu0 %v2478
      %2543 = vmatmul.f32.gmra.mxu0 %v2485
      %v2544 = vpop.f32.mrf.mxu0
      %v2545 = vadd.f32 0.0, %v2544
      %2546 = vdwg.mxu0
      %v2547 = vadd.f32 %v2429, %v2505
      %v2548 = vadd.f32 %v2449, %v2525
      %v2549 = vadd.f32 %v2469, %v2545
      %s2550 = scalar_lea.vmem %s3, 24
      %v2551 = vld [vmem:[%s2550] sm:$0xff]
      %2552 = vrot.lane.b32.xlu0 %v2325, 110
      %v2553 = vpop.permute.xlu0 %2552
      %2554 = vrot.lane.b32.xlu0 %v2326, 110
      %v2555 = vpop.permute.xlu0 %2554
      %2556 = vrot.lane.b32.xlu0 %v2327, 110
      %v2557 = vpop.permute.xlu0 %2556
      %v2558 = vsel %vm662, %v2553, %v2555
      %v2559 = vsel %vm662, %v2555, %v2557
      %v2564 = vsel %vm1407, %v2551, 0
      %2566 = vmatpush.msra.mxu0 0.0
      %2567 = vmatpush.msra.mxu0 0.0
      %2568 = vmatpush.msra.mxu0 0.0
      %2569 = vmatpush.msra.mxu0 0.0
      %2570 = vmatpush.msra.mxu0 0.0
      %2571 = vmatpush.msra.mxu0 0.0
      %2572 = vmatpush.msra.mxu0 0.0
      %2573 = vmatpush.msra.mxu0 0.0
      %2574 = vmatpush.msra.mxu0 0.0
      %2575 = vmatpush.msra.mxu0 0.0
      %2576 = vmatpush.msra.mxu0 0.0
      %2577 = vmatpush.msra.mxu0 0.0
      %2578 = vmatpush.msra.mxu0 0.0
      %2579 = vmatpush.msra.mxu0 0.0
      %2580 = vmatpush.msra.mxu0 0.0
      %2581 = vmatpush.msra.mxu0 %v2558
      %2582 = vmatmul.f32.gmra.mxu0 %v2564
      %v2583 = vpop.f32.mrf.mxu0
      %v2584 = vadd.f32 0.0, %v2583
      %2585 = vdwg.mxu0
      %2586 = vmatpush.msra.mxu0 0.0
      %2587 = vmatpush.msra.mxu0 0.0
      %2588 = vmatpush.msra.mxu0 0.0
      %2589 = vmatpush.msra.mxu0 0.0
      %2590 = vmatpush.msra.mxu0 0.0
      %2591 = vmatpush.msra.mxu0 0.0
      %2592 = vmatpush.msra.mxu0 0.0
      %2593 = vmatpush.msra.mxu0 0.0
      %2594 = vmatpush.msra.mxu0 0.0
      %2595 = vmatpush.msra.mxu0 0.0
      %2596 = vmatpush.msra.mxu0 0.0
      %2597 = vmatpush.msra.mxu0 0.0
      %2598 = vmatpush.msra.mxu0 0.0
      %2599 = vmatpush.msra.mxu0 0.0
      %2600 = vmatpush.msra.mxu0 0.0
      %2601 = vmatpush.msra.mxu0 %v2559
      %2602 = vmatmul.f32.gmra.mxu0 %v2564
      %v2603 = vpop.f32.mrf.mxu0
      %v2604 = vadd.f32 0.0, %v2603
      %2605 = vdwg.mxu0
      %2606 = vmatpush.msra.mxu0 0.0
      %2607 = vmatpush.msra.mxu0 0.0
      %2608 = vmatpush.msra.mxu0 0.0
      %2609 = vmatpush.msra.mxu0 0.0
      %2610 = vmatpush.msra.mxu0 0.0
      %2611 = vmatpush.msra.mxu0 0.0
      %2612 = vmatpush.msra.mxu0 0.0
      %2613 = vmatpush.msra.mxu0 0.0
      %2614 = vmatpush.msra.mxu0 0.0
      %2615 = vmatpush.msra.mxu0 0.0
      %2616 = vmatpush.msra.mxu0 0.0
      %2617 = vmatpush.msra.mxu0 0.0
      %2618 = vmatpush.msra.mxu0 0.0
      %2619 = vmatpush.msra.mxu0 0.0
      %2620 = vmatpush.msra.mxu0 0.0
      %2621 = vmatpush.msra.mxu0 %v2557
      %2622 = vmatmul.f32.gmra.mxu0 %v2564
      %v2623 = vpop.f32.mrf.mxu0
      %v2624 = vadd.f32 0.0, %v2623
      %2625 = vdwg.mxu0
      %v2626 = vadd.f32 %v2547, %v2584
      %v2627 = vadd.f32 %v2548, %v2604
      %v2628 = vadd.f32 %v2549, %v2624
      %s2629 = scalar_lea.vmem %s3, 32
      %v2630 = vld [vmem:[%s2629] sm:$0xff]
      %2631 = vrot.lane.b32.xlu0 %v2325, 109
      %v2632 = vpop.permute.xlu0 %2631
      %2633 = vrot.lane.b32.xlu0 %v2326, 109
      %v2634 = vpop.permute.xlu0 %2633
      %2635 = vrot.lane.b32.xlu0 %v2327, 109
      %v2636 = vpop.permute.xlu0 %2635
      %v2637 = vsel %vm767, %v2632, %v2634
      %v2638 = vsel %vm767, %v2634, %v2636
      %v2643 = vsel %vm1407, %v2630, 0
      %2645 = vmatpush.msra.mxu0 0.0
      %2646 = vmatpush.msra.mxu0 0.0
      %2647 = vmatpush.msra.mxu0 0.0
      %2648 = vmatpush.msra.mxu0 0.0
      %2649 = vmatpush.msra.mxu0 0.0
      %2650 = vmatpush.msra.mxu0 0.0
      %2651 = vmatpush.msra.mxu0 0.0
      %2652 = vmatpush.msra.mxu0 0.0
      %2653 = vmatpush.msra.mxu0 0.0
      %2654 = vmatpush.msra.mxu0 0.0
      %2655 = vmatpush.msra.mxu0 0.0
      %2656 = vmatpush.msra.mxu0 0.0
      %2657 = vmatpush.msra.mxu0 0.0
      %2658 = vmatpush.msra.mxu0 0.0
      %2659 = vmatpush.msra.mxu0 0.0
      %2660 = vmatpush.msra.mxu0 %v2637
      %2661 = vmatmul.f32.gmra.mxu0 %v2643
      %v2662 = vpop.f32.mrf.mxu0
      %v2663 = vadd.f32 0.0, %v2662
      %2664 = vdwg.mxu0
      %2665 = vmatpush.msra.mxu0 0.0
      %2666 = vmatpush.msra.mxu0 0.0
      %2667 = vmatpush.msra.mxu0 0.0
      %2668 = vmatpush.msra.mxu0 0.0
      %2669 = vmatpush.msra.mxu0 0.0
      %2670 = vmatpush.msra.mxu0 0.0
      %2671 = vmatpush.msra.mxu0 0.0
      %2672 = vmatpush.msra.mxu0 0.0
      %2673 = vmatpush.msra.mxu0 0.0
      %2674 = vmatpush.msra.mxu0 0.0
      %2675 = vmatpush.msra.mxu0 0.0
      %2676 = vmatpush.msra.mxu0 0.0
      %2677 = vmatpush.msra.mxu0 0.0
      %2678 = vmatpush.msra.mxu0 0.0
      %2679 = vmatpush.msra.mxu0 0.0
      %2680 = vmatpush.msra.mxu0 %v2638
      %2681 = vmatmul.f32.gmra.mxu0 %v2643
      %v2682 = vpop.f32.mrf.mxu0
      %v2683 = vadd.f32 0.0, %v2682
      %2684 = vdwg.mxu0
      %2685 = vmatpush.msra.mxu0 0.0
      %2686 = vmatpush.msra.mxu0 0.0
      %2687 = vmatpush.msra.mxu0 0.0
      %2688 = vmatpush.msra.mxu0 0.0
      %2689 = vmatpush.msra.mxu0 0.0
      %2690 = vmatpush.msra.mxu0 0.0
      %2691 = vmatpush.msra.mxu0 0.0
      %2692 = vmatpush.msra.mxu0 0.0
      %2693 = vmatpush.msra.mxu0 0.0
      %2694 = vmatpush.msra.mxu0 0.0
      %2695 = vmatpush.msra.mxu0 0.0
      %2696 = vmatpush.msra.mxu0 0.0
      %2697 = vmatpush.msra.mxu0 0.0
      %2698 = vmatpush.msra.mxu0 0.0
      %2699 = vmatpush.msra.mxu0 0.0
      %2700 = vmatpush.msra.mxu0 %v2636
      %2701 = vmatmul.f32.gmra.mxu0 %v2643
      %v2702 = vpop.f32.mrf.mxu0
      %v2703 = vadd.f32 0.0, %v2702
      %2704 = vdwg.mxu0
      %v2705 = vadd.f32 %v2626, %v2663
      %v2706 = vadd.f32 %v2627, %v2683
      %v2707 = vadd.f32 %v2628, %v2703
      %s2708 = scalar_lea.vmem %s3, 40
      %v2709 = vld [vmem:[%s2708] sm:$0xff]
      %2710 = vrot.lane.b32.xlu0 %v2325, 108
      %v2711 = vpop.permute.xlu0 %2710
      %2712 = vrot.lane.b32.xlu0 %v2326, 108
      %v2713 = vpop.permute.xlu0 %2712
      %2714 = vrot.lane.b32.xlu0 %v2327, 108
      %v2715 = vpop.permute.xlu0 %2714
      %v2716 = vsel %vm872, %v2711, %v2713
      %v2717 = vsel %vm872, %v2713, %v2715
      %v2722 = vsel %vm1407, %v2709, 0
      %2724 = vmatpush.msra.mxu0 0.0
      %2725 = vmatpush.msra.mxu0 0.0
      %2726 = vmatpush.msra.mxu0 0.0
      %2727 = vmatpush.msra.mxu0 0.0
      %2728 = vmatpush.msra.mxu0 0.0
      %2729 = vmatpush.msra.mxu0 0.0
      %2730 = vmatpush.msra.mxu0 0.0
      %2731 = vmatpush.msra.mxu0 0.0
      %2732 = vmatpush.msra.mxu0 0.0
      %2733 = vmatpush.msra.mxu0 0.0
      %2734 = vmatpush.msra.mxu0 0.0
      %2735 = vmatpush.msra.mxu0 0.0
      %2736 = vmatpush.msra.mxu0 0.0
      %2737 = vmatpush.msra.mxu0 0.0
      %2738 = vmatpush.msra.mxu0 0.0
      %2739 = vmatpush.msra.mxu0 %v2716
      %2740 = vmatmul.f32.gmra.mxu0 %v2722
      %v2741 = vpop.f32.mrf.mxu0
      %v2742 = vadd.f32 0.0, %v2741
      %2743 = vdwg.mxu0
      %2744 = vmatpush.msra.mxu0 0.0
      %2745 = vmatpush.msra.mxu0 0.0
      %2746 = vmatpush.msra.mxu0 0.0
      %2747 = vmatpush.msra.mxu0 0.0
      %2748 = vmatpush.msra.mxu0 0.0
      %2749 = vmatpush.msra.mxu0 0.0
      %2750 = vmatpush.msra.mxu0 0.0
      %2751 = vmatpush.msra.mxu0 0.0
      %2752 = vmatpush.msra.mxu0 0.0
      %2753 = vmatpush.msra.mxu0 0.0
      %2754 = vmatpush.msra.mxu0 0.0
      %2755 = vmatpush.msra.mxu0 0.0
      %2756 = vmatpush.msra.mxu0 0.0
      %2757 = vmatpush.msra.mxu0 0.0
      %2758 = vmatpush.msra.mxu0 0.0
      %2759 = vmatpush.msra.mxu0 %v2717
      %2760 = vmatmul.f32.gmra.mxu0 %v2722
      %v2761 = vpop.f32.mrf.mxu0
      %v2762 = vadd.f32 0.0, %v2761
      %2763 = vdwg.mxu0
      %2764 = vmatpush.msra.mxu0 0.0
      %2765 = vmatpush.msra.mxu0 0.0
      %2766 = vmatpush.msra.mxu0 0.0
      %2767 = vmatpush.msra.mxu0 0.0
      %2768 = vmatpush.msra.mxu0 0.0
      %2769 = vmatpush.msra.mxu0 0.0
      %2770 = vmatpush.msra.mxu0 0.0
      %2771 = vmatpush.msra.mxu0 0.0
      %2772 = vmatpush.msra.mxu0 0.0
      %2773 = vmatpush.msra.mxu0 0.0
      %2774 = vmatpush.msra.mxu0 0.0
      %2775 = vmatpush.msra.mxu0 0.0
      %2776 = vmatpush.msra.mxu0 0.0
      %2777 = vmatpush.msra.mxu0 0.0
      %2778 = vmatpush.msra.mxu0 0.0
      %2779 = vmatpush.msra.mxu0 %v2715
      %2780 = vmatmul.f32.gmra.mxu0 %v2722
      %v2781 = vpop.f32.mrf.mxu0
      %v2782 = vadd.f32 0.0, %v2781
      %2783 = vdwg.mxu0
      %v2784 = vadd.f32 %v2705, %v2742
      %v2785 = vadd.f32 %v2706, %v2762
      %v2786 = vadd.f32 %v2707, %v2782
      %s2787 = scalar_lea.vmem %s3, 48
      %v2788 = vld [vmem:[%s2787] sm:$0xff]
      %2789 = vrot.lane.b32.xlu0 %v2325, 92
      %v2790 = vpop.permute.xlu0 %2789
      %2791 = vrot.lane.b32.xlu0 %v2326, 92
      %v2792 = vpop.permute.xlu0 %2791
      %2793 = vrot.lane.b32.xlu0 %v2327, 92
      %v2794 = vpop.permute.xlu0 %2793
      %v2795 = vsel %vm977, %v2790, %v2792
      %v2796 = vsel %vm977, %v2792, %v2794
      %v2801 = vsel %vm1407, %v2788, 0
      %2803 = vmatpush.msra.mxu0 0.0
      %2804 = vmatpush.msra.mxu0 0.0
      %2805 = vmatpush.msra.mxu0 0.0
      %2806 = vmatpush.msra.mxu0 0.0
      %2807 = vmatpush.msra.mxu0 0.0
      %2808 = vmatpush.msra.mxu0 0.0
      %2809 = vmatpush.msra.mxu0 0.0
      %2810 = vmatpush.msra.mxu0 0.0
      %2811 = vmatpush.msra.mxu0 0.0
      %2812 = vmatpush.msra.mxu0 0.0
      %2813 = vmatpush.msra.mxu0 0.0
      %2814 = vmatpush.msra.mxu0 0.0
      %2815 = vmatpush.msra.mxu0 0.0
      %2816 = vmatpush.msra.mxu0 0.0
      %2817 = vmatpush.msra.mxu0 0.0
      %2818 = vmatpush.msra.mxu0 %v2795
      %2819 = vmatmul.f32.gmra.mxu0 %v2801
      %v2820 = vpop.f32.mrf.mxu0
      %v2821 = vadd.f32 0.0, %v2820
      %2822 = vdwg.mxu0
      %2823 = vmatpush.msra.mxu0 0.0
      %2824 = vmatpush.msra.mxu0 0.0
      %2825 = vmatpush.msra.mxu0 0.0
      %2826 = vmatpush.msra.mxu0 0.0
      %2827 = vmatpush.msra.mxu0 0.0
      %2828 = vmatpush.msra.mxu0 0.0
      %2829 = vmatpush.msra.mxu0 0.0
      %2830 = vmatpush.msra.mxu0 0.0
      %2831 = vmatpush.msra.mxu0 0.0
      %2832 = vmatpush.msra.mxu0 0.0
      %2833 = vmatpush.msra.mxu0 0.0
      %2834 = vmatpush.msra.mxu0 0.0
      %2835 = vmatpush.msra.mxu0 0.0
      %2836 = vmatpush.msra.mxu0 0.0
      %2837 = vmatpush.msra.mxu0 0.0
      %2838 = vmatpush.msra.mxu0 %v2796
      %2839 = vmatmul.f32.gmra.mxu0 %v2801
      %v2840 = vpop.f32.mrf.mxu0
      %v2841 = vadd.f32 0.0, %v2840
      %2842 = vdwg.mxu0
      %2843 = vmatpush.msra.mxu0 0.0
      %2844 = vmatpush.msra.mxu0 0.0
      %2845 = vmatpush.msra.mxu0 0.0
      %2846 = vmatpush.msra.mxu0 0.0
      %2847 = vmatpush.msra.mxu0 0.0
      %2848 = vmatpush.msra.mxu0 0.0
      %2849 = vmatpush.msra.mxu0 0.0
      %2850 = vmatpush.msra.mxu0 0.0
      %2851 = vmatpush.msra.mxu0 0.0
      %2852 = vmatpush.msra.mxu0 0.0
      %2853 = vmatpush.msra.mxu0 0.0
      %2854 = vmatpush.msra.mxu0 0.0
      %2855 = vmatpush.msra.mxu0 0.0
      %2856 = vmatpush.msra.mxu0 0.0
      %2857 = vmatpush.msra.mxu0 0.0
      %2858 = vmatpush.msra.mxu0 %v2794
      %2859 = vmatmul.f32.gmra.mxu0 %v2801
      %v2860 = vpop.f32.mrf.mxu0
      %v2861 = vadd.f32 0.0, %v2860
      %2862 = vdwg.mxu0
      %v2863 = vadd.f32 %v2784, %v2821
      %v2864 = vadd.f32 %v2785, %v2841
      %v2865 = vadd.f32 %v2786, %v2861
      %s2866 = scalar_lea.vmem %s3, 56
      %v2867 = vld [vmem:[%s2866] sm:$0xff]
      %2868 = vrot.lane.b32.xlu0 %v2325, 91
      %v2869 = vpop.permute.xlu0 %2868
      %2870 = vrot.lane.b32.xlu0 %v2326, 91
      %v2871 = vpop.permute.xlu0 %2870
      %2872 = vrot.lane.b32.xlu0 %v2327, 91
      %v2873 = vpop.permute.xlu0 %2872
      %v2874 = vsel %vm1082, %v2869, %v2871
      %v2875 = vsel %vm1082, %v2871, %v2873
      %v2880 = vsel %vm1407, %v2867, 0
      %2882 = vmatpush.msra.mxu0 0.0
      %2883 = vmatpush.msra.mxu0 0.0
      %2884 = vmatpush.msra.mxu0 0.0
      %2885 = vmatpush.msra.mxu0 0.0
      %2886 = vmatpush.msra.mxu0 0.0
      %2887 = vmatpush.msra.mxu0 0.0
      %2888 = vmatpush.msra.mxu0 0.0
      %2889 = vmatpush.msra.mxu0 0.0
      %2890 = vmatpush.msra.mxu0 0.0
      %2891 = vmatpush.msra.mxu0 0.0
      %2892 = vmatpush.msra.mxu0 0.0
      %2893 = vmatpush.msra.mxu0 0.0
      %2894 = vmatpush.msra.mxu0 0.0
      %2895 = vmatpush.msra.mxu0 0.0
      %2896 = vmatpush.msra.mxu0 0.0
      %2897 = vmatpush.msra.mxu0 %v2874
      %2898 = vmatmul.f32.gmra.mxu0 %v2880
      %v2899 = vpop.f32.mrf.mxu0
      %v2900 = vadd.f32 0.0, %v2899
      %2901 = vdwg.mxu0
      %2902 = vmatpush.msra.mxu0 0.0
      %2903 = vmatpush.msra.mxu0 0.0
      %2904 = vmatpush.msra.mxu0 0.0
      %2905 = vmatpush.msra.mxu0 0.0
      %2906 = vmatpush.msra.mxu0 0.0
      %2907 = vmatpush.msra.mxu0 0.0
      %2908 = vmatpush.msra.mxu0 0.0
      %2909 = vmatpush.msra.mxu0 0.0
      %2910 = vmatpush.msra.mxu0 0.0
      %2911 = vmatpush.msra.mxu0 0.0
      %2912 = vmatpush.msra.mxu0 0.0
      %2913 = vmatpush.msra.mxu0 0.0
      %2914 = vmatpush.msra.mxu0 0.0
      %2915 = vmatpush.msra.mxu0 0.0
      %2916 = vmatpush.msra.mxu0 0.0
      %2917 = vmatpush.msra.mxu0 %v2875
      %2918 = vmatmul.f32.gmra.mxu0 %v2880
      %v2919 = vpop.f32.mrf.mxu0
      %v2920 = vadd.f32 0.0, %v2919
      %2921 = vdwg.mxu0
      %2922 = vmatpush.msra.mxu0 0.0
      %2923 = vmatpush.msra.mxu0 0.0
      %2924 = vmatpush.msra.mxu0 0.0
      %2925 = vmatpush.msra.mxu0 0.0
      %2926 = vmatpush.msra.mxu0 0.0
      %2927 = vmatpush.msra.mxu0 0.0
      %2928 = vmatpush.msra.mxu0 0.0
      %2929 = vmatpush.msra.mxu0 0.0
      %2930 = vmatpush.msra.mxu0 0.0
      %2931 = vmatpush.msra.mxu0 0.0
      %2932 = vmatpush.msra.mxu0 0.0
      %2933 = vmatpush.msra.mxu0 0.0
      %2934 = vmatpush.msra.mxu0 0.0
      %2935 = vmatpush.msra.mxu0 0.0
      %2936 = vmatpush.msra.mxu0 0.0
      %2937 = vmatpush.msra.mxu0 %v2873
      %2938 = vmatmul.f32.gmra.mxu0 %v2880
      %v2939 = vpop.f32.mrf.mxu0
      %v2940 = vadd.f32 0.0, %v2939
      %2941 = vdwg.mxu0
      %v2942 = vadd.f32 %v2863, %v2900
      %v2943 = vadd.f32 %v2864, %v2920
      %v2944 = vadd.f32 %v2865, %v2940
      %s2945 = scalar_lea.vmem %s3, 64
      %v2946 = vld [vmem:[%s2945] sm:$0xff]
      %2947 = vrot.lane.b32.xlu0 %v2325, 90
      %v2948 = vpop.permute.xlu0 %2947
      %2949 = vrot.lane.b32.xlu0 %v2326, 90
      %v2950 = vpop.permute.xlu0 %2949
      %2951 = vrot.lane.b32.xlu0 %v2327, 90
      %v2952 = vpop.permute.xlu0 %2951
      %v2953 = vsel %vm1187, %v2948, %v2950
      %v2954 = vsel %vm1187, %v2950, %v2952
      %v2959 = vsel %vm1407, %v2946, 0
      %2961 = vmatpush.msra.mxu0 0.0
      %2962 = vmatpush.msra.mxu0 0.0
      %2963 = vmatpush.msra.mxu0 0.0
      %2964 = vmatpush.msra.mxu0 0.0
      %2965 = vmatpush.msra.mxu0 0.0
      %2966 = vmatpush.msra.mxu0 0.0
      %2967 = vmatpush.msra.mxu0 0.0
      %2968 = vmatpush.msra.mxu0 0.0
      %2969 = vmatpush.msra.mxu0 0.0
      %2970 = vmatpush.msra.mxu0 0.0
      %2971 = vmatpush.msra.mxu0 0.0
      %2972 = vmatpush.msra.mxu0 0.0
      %2973 = vmatpush.msra.mxu0 0.0
      %2974 = vmatpush.msra.mxu0 0.0
      %2975 = vmatpush.msra.mxu0 0.0
      %2976 = vmatpush.msra.mxu0 %v2953
      %2977 = vmatmul.f32.gmra.mxu0 %v2959
      %v2978 = vpop.f32.mrf.mxu0
      %v2979 = vadd.f32 0.0, %v2978
      %2980 = vdwg.mxu0
      %2981 = vmatpush.msra.mxu0 0.0
      %2982 = vmatpush.msra.mxu0 0.0
      %2983 = vmatpush.msra.mxu0 0.0
      %2984 = vmatpush.msra.mxu0 0.0
      %2985 = vmatpush.msra.mxu0 0.0
      %2986 = vmatpush.msra.mxu0 0.0
      %2987 = vmatpush.msra.mxu0 0.0
      %2988 = vmatpush.msra.mxu0 0.0
      %2989 = vmatpush.msra.mxu0 0.0
      %2990 = vmatpush.msra.mxu0 0.0
      %2991 = vmatpush.msra.mxu0 0.0
      %2992 = vmatpush.msra.mxu0 0.0
      %2993 = vmatpush.msra.mxu0 0.0
      %2994 = vmatpush.msra.mxu0 0.0
      %2995 = vmatpush.msra.mxu0 0.0
      %2996 = vmatpush.msra.mxu0 %v2954
      %2997 = vmatmul.f32.gmra.mxu0 %v2959
      %v2998 = vpop.f32.mrf.mxu0
      %v2999 = vadd.f32 0.0, %v2998
      %3000 = vdwg.mxu0
      %3001 = vmatpush.msra.mxu0 0.0
      %3002 = vmatpush.msra.mxu0 0.0
      %3003 = vmatpush.msra.mxu0 0.0
      %3004 = vmatpush.msra.mxu0 0.0
      %3005 = vmatpush.msra.mxu0 0.0
      %3006 = vmatpush.msra.mxu0 0.0
      %3007 = vmatpush.msra.mxu0 0.0
      %3008 = vmatpush.msra.mxu0 0.0
      %3009 = vmatpush.msra.mxu0 0.0
      %3010 = vmatpush.msra.mxu0 0.0
      %3011 = vmatpush.msra.mxu0 0.0
      %3012 = vmatpush.msra.mxu0 0.0
      %3013 = vmatpush.msra.mxu0 0.0
      %3014 = vmatpush.msra.mxu0 0.0
      %3015 = vmatpush.msra.mxu0 0.0
      %3016 = vmatpush.msra.mxu0 %v2952
      %3017 = vmatmul.f32.gmra.mxu0 %v2959
      %v3018 = vpop.f32.mrf.mxu0
      %v3019 = vadd.f32 0.0, %v3018
      %3020 = vdwg.mxu0
      %v3021 = vadd.f32 %v2942, %v2979
      %v3022 = vadd.f32 %v2943, %v2999
      %v3023 = vadd.f32 %v2944, %v3019
      %v3024 = vld [vmem:[%s6] sm:$0xff]
      %3026 = vset.pattern.permute.xlu0 0
      %3027 = vperm.xlu0 %3026, %v3024
      %v3028 = vpop.permute.xlu0 %3027
      %v3030 = vadd.f32 %v3021, %v3028
      %v3031 = vadd.f32 %v3022, %v3028
      %v3032 = vadd.f32 %v3023, %v3028
      %v3033 = vsel %vm1359, %v3030, 0.0
      %v3034 = vsel %vm1360, %v3031, 0.0
      %v3035 = vsel %vm1361, %v3032, 0.0
      %3036 = vst [vmem:[%s345] sm:$0xff] %v3033
      %3037 = vst [vmem:[%s345 + $0x8] sm:$0xff] %v3034
      %3038 = vst.msk [vmem:[%s345 + $0x10] sm:$0xff] %vm2306, %v3035
      %p3039 = scmp.lt.s32.totalorder %s21, 1
      %s3040 = scalar_select %p3039, %s21, 1
      %s3041 = smul.addr %s3040, 3
      %s3042 = smul.addr %s3041, 8
      %s3043 = scalar_lea.vmem %s8, %s3042
      %p3044 = scmp.lt.s32.totalorder %s21, 1
      %s3045 = scalar_select %p3044, %s21, 1
      %s3046 = smul.addr %s3045, 3
      %s3047 = smul.addr %s3046, 8
      %s3048 = scalar_lea.vmem %s9, %s3047
      // Predicated region
      $region53: #{gcunet3_encoder.1} parent=51 // pred_check
        %p3049 = pneg %p212
      $region54: #{gcunet3_encoder.1} parent=51 // pred_check_branch
        %3051 = sbr.rel (%p3049) target = $region56
      $region55: #{gcunet3_encoder.1} parent=51 // pred_region
        _
      $region56: #{gcunet3_encoder.1} parent=51 // pred_fallthru
        _
      // Predicated region
      $region57: #{gcunet3_encoder.1} parent=51 // pred_check
        %p3052 = pneg %p238
      $region58: #{gcunet3_encoder.1} parent=51 // pred_check_branch
        %3054 = sbr.rel (%p3052) target = $region60
      $region59: #{gcunet3_encoder.1} parent=51 // pred_region
        _
      $region60: #{gcunet3_encoder.1} parent=51 // pred_fallthru
        _
    $region52: #{gcunet3_encoder.1} parent=5 // pred_fallthru
      _
    %p3055 = scmp.le.s32.totalorder 2, %s16
    // Predicated region
    $region61: #{gcunet3_encoder.1} parent=5 // pred_check
      %p3056 = pneg %p3055
    $region62: #{gcunet3_encoder.1} parent=5 // pred_check_branch
      %3058 = sbr.rel (%p3056) target = $region64
    $region63: #{gcunet3_encoder.1} parent=5 // pred_region
      %s3059 = ssub.s32 %s16, 2
      // Predicated region
      $region65: #{gcunet3_encoder.1} parent=63 // pred_check
        %p3060 = pneg %p218
      $region66: #{gcunet3_encoder.1} parent=63 // pred_check_branch
        %3062 = sbr.rel (%p3060) target = $region68
      $region67: #{gcunet3_encoder.1} parent=63 // pred_region
        %p3063 = scmp.lt.s32.totalorder %s22, 1
        %s3064 = scalar_select %p3063, %s22, 1
        %s3065 = smul.addr %s3064, 3
        %s3066 = smul.addr %s3065, 8
        %s3067 = scalar_lea.vmem %s8, %s3066
      $region68: #{gcunet3_encoder.1} parent=63 // pred_fallthru
        _
      // Predicated region
      $region69: #{gcunet3_encoder.1} parent=63 // pred_check
        %p3068 = pneg %p244
      $region70: #{gcunet3_encoder.1} parent=63 // pred_check_branch
        %3070 = sbr.rel (%p3068) target = $region72
      $region71: #{gcunet3_encoder.1} parent=63 // pred_region
        %p3071 = scmp.lt.s32.totalorder %s22, 1
        %s3072 = scalar_select %p3071, %s22, 1
        %s3073 = smul.addr %s3072, 3
        %s3074 = smul.addr %s3073, 8
        %s3075 = scalar_lea.vmem %s9, %s3074
      $region72: #{gcunet3_encoder.1} parent=63 // pred_fallthru
        _
    $region64: #{gcunet3_encoder.1} parent=5 // pred_fallthru
      _
  $region6: #{gcunet3_encoder.1} parent=0 // loop_footer
    %s20 = sadd.s32 1, %s16
  $region7: #{gcunet3_encoder.1} parent=0 // loop_footer_branch
    %15 = sbr.rel target = $region3
  $region8: #{gcunet3_encoder.1} parent=0 // loop_exit
    _

</llo_original>
